<compile_context>
chip_gen: v7x
topology: tpu7x:2x2x1
jax: 0.10.0
libtpu: 0.0.40
codegen_flags: <defaults>
</compile_context>

<pallas_src>
import functools

import jax
import jax.numpy as jnp
from jax.experimental import pallas as pl
from jax.experimental.pallas import tpu as pltpu


IN_FEATURES = 784          # 1 * 28 * 28
HIDDEN = 512               # already a multiple of 128


def _round_up(x, m):
    return (x + m - 1) // m * m


def _vae_kernel(x_ref, eps_ref,
                ew1_ref, eb1_ref, wml_ref, bml_ref,
                dw1_ref, db1_ref, dw2_ref, db2_ref,
                recon_ref, kl_ref, *, latent_dims, lp):
    """Fused VAE forward for one batch tile; weights resident in VMEM (bf16)."""
    # ---------------- encoder ----------------
    x16 = x_ref[...].astype(jnp.bfloat16)                                  # (TB, 896)
    h = jnp.dot(x16, ew1_ref[...], preferred_element_type=jnp.float32) + eb1_ref[...]
    h = jnp.maximum(h, 0.0)                                                # (TB, 512) f32

    # fused mu || log-sigma projection: one N=2*LP matmul
    ml = jnp.dot(h.astype(jnp.bfloat16), wml_ref[...],
                 preferred_element_type=jnp.float32) + bml_ref[...]        # (TB, 2*LP)
    mu = ml[:, :lp]                                                        # (TB, LP)
    logsig = ml[:, lp:]                                                    # (TB, LP)
    sigma = jnp.exp(logsig)

    # ------------- reparameterisation -------------
    z = mu + sigma * eps_ref[...]                                          # (TB, LP) f32

    # ---------------- decoder ----------------
    hd = jnp.dot(z.astype(jnp.bfloat16), dw1_ref[...],
                 preferred_element_type=jnp.float32) + db1_ref[...]
    hd = jnp.maximum(hd, 0.0)                                              # (TB, 512)
    o = jnp.dot(hd.astype(jnp.bfloat16), dw2_ref[...],
                preferred_element_type=jnp.float32) + db2_ref[...]         # (TB, 896)
    recon_ref[...] = jax.nn.sigmoid(o)

    # ---------------- per-row KL partial ----------------
    # Padded latent columns have mu=0, logsig=0 -> each would wrongly add 0.5; mask them.
    col = jax.lax.broadcasted_iota(jnp.int32, (1, lp), 1)
    terms = sigma * sigma + mu * mu - logsig - 0.5
    terms = jnp.where(col < latent_dims, terms, 0.0)
    kl_ref[...] = jnp.sum(terms, axis=-1, keepdims=True)                   # (TB, 1)


def vae_forward(x, params, eps, *, max_batch_tile=256):
    """x: (B,1,28,28) or (B,784) f32; eps: (B, latent_dims) f32 standard normal.

    Returns (reconstruction (B,1,28,28), kl scalar) — same math as the torch module.
    """
    B = x.shape[0]
    x2 = x.reshape(B, -1).astype(jnp.float32)
    assert x2.shape[1] == IN_FEATURES
    L = params["ew2"].shape[1]

    INP = _round_up(IN_FEATURES, 128)       # 896 (zero-padded K, harmless)
    OUTP = _round_up(IN_FEATURES, 128)      # 896 (zero-padded N, sliced off outside)
    LP = _round_up(max(L, 128), 128)        # latent padded to a full lane width

    # Batch tile: multiple of 8 sublanes, and (when B allows) >= 2 grid steps so a
    # v7x megacore can shard the "parallel" axis across both TensorCores.
    TB = max(8, min(max_batch_tile, _round_up(pl.cdiv(B, 2), 8)))
    B_pad = _round_up(B, TB)
    grid = (B_pad // TB,)

    def pad2(a, rows, cols):
        a = a.astype(jnp.float32)
        return jnp.pad(a, ((0, rows - a.shape[0]), (0, cols - a.shape[1])))

    bf16 = jnp.bfloat16

    x_p = pad2(x2, B_pad, INP)
    eps_p = pad2(eps, B_pad, LP)

    # weights -> bf16 (MXU inputs); biases stay f32 (added post-accumulation).
    ew1 = pad2(params["ew1"], INP, HIDDEN).astype(bf16)
    eb1 = params["eb1"].reshape(1, HIDDEN).astype(jnp.float32)
    wml = jnp.concatenate(
        [pad2(params["ew2"], HIDDEN, LP), pad2(params["ew3"], HIDDEN, LP)],
        axis=1).astype(bf16)                                          # (512, 2*LP)
    bml = jnp.concatenate(
        [pad2(params["eb2"].reshape(1, L), 1, LP),
         pad2(params["eb3"].reshape(1, L), 1, LP)], axis=1)           # (1, 2*LP) f32
    dw1 = pad2(params["dw1"], LP, HIDDEN).astype(bf16)
    db1 = params["db1"].reshape(1, HIDDEN).astype(jnp.float32)
    dw2 = pad2(params["dw2"], HIDDEN, OUTP).astype(bf16)
    db2 = pad2(params["db2"].reshape(1, IN_FEATURES), 1, OUTP)

    def _resident(shape):
        # Constant index_map -> block never changes; single-buffer to halve VMEM use.
        return pl.BlockSpec(shape, lambda i: (0, 0), pipeline_mode=pl.Buffered(1))

    kernel = functools.partial(_vae_kernel, latent_dims=L, lp=LP)

    recon_p, kl_rows = pl.pallas_call(
        kernel,
        out_shape=(
            jax.ShapeDtypeStruct((B_pad, OUTP), jnp.float32),
            jax.ShapeDtypeStruct((B_pad, 1), jnp.float32),
        ),
        grid_spec=pl.GridSpec(
            grid=grid,
            in_specs=[
                pl.BlockSpec((TB, INP), lambda i: (i, 0)),      # x tile
                pl.BlockSpec((TB, LP), lambda i: (i, 0)),       # eps tile
                _resident((INP, HIDDEN)),                       # enc W1 (bf16)
                _resident((1, HIDDEN)),                         # enc b1
                _resident((HIDDEN, 2 * LP)),                    # enc W2||W3 fused (bf16)
                _resident((1, 2 * LP)),                         # enc b2||b3
                _resident((LP, HIDDEN)),                        # dec W1 (bf16)
                _resident((1, HIDDEN)),                         # dec b1
                _resident((HIDDEN, OUTP)),                      # dec W2 (bf16)
                _resident((1, OUTP)),                           # dec b2
            ],
            out_specs=(
                pl.BlockSpec((TB, OUTP), lambda i: (i, 0)),     # reconstruction
                pl.BlockSpec((TB, 1), lambda i: (i, 0)),        # per-row KL partial
            ),
        ),
        compiler_params=pltpu.CompilerParams(
            dimension_semantics=("parallel",),                  # v7x: shard over TCs
            vmem_limit_bytes=64 * 1024 * 1024,                  # v5e scoped default is 16 MiB
        ),
    )(x_p, eps_p, ew1, eb1, wml, bml, dw1, db1, dw2, db2)

    recon = recon_p[:B, :IN_FEATURES].reshape(B, 1, 28, 28)
    kl = jnp.sum(kl_rows[:B, 0])                                # padded batch rows dropped
    return recon, kl


def init_params(key, latent_dims):
    """nn.Linear-style init: uniform(-1/sqrt(fan_in), 1/sqrt(fan_in)), weights stored (in, out)."""
    def linear(k, fan_in, fan_out):
        kw, kb = jax.random.split(k)
        bound = 1.0 / (fan_in ** 0.5)
        w = jax.random.uniform(kw, (fan_in, fan_out), jnp.float32, -bound, bound)
        b = jax.random.uniform(kb, (fan_out,), jnp.float32, -bound, bound)
        return w, b

    ks = jax.random.split(key, 5)
    ew1, eb1 = linear(ks[0], IN_FEATURES, HIDDEN)
    ew2, eb2 = linear(ks[1], HIDDEN, latent_dims)
    ew3, eb3 = linear(ks[2], HIDDEN, latent_dims)
    dw1, db1 = linear(ks[3], latent_dims, HIDDEN)
    dw2, db2 = linear(ks[4], HIDDEN, IN_FEATURES)
    return dict(ew1=ew1, eb1=eb1, ew2=ew2, eb2=eb2, ew3=ew3, eb3=eb3,
                dw1=dw1, db1=db1, dw2=dw2, db2=db2)


if __name__ == "__main__":
    key = jax.random.PRNGKey(0)
    latent_dims = 16
    batch = 16          # gives TB=8, grid=(2,) -> exercises the multi-step parallel grid

    kx, kp, ke = jax.random.split(key, 3)
    x = jax.random.uniform(kx, (batch, 1, 28, 28), jnp.float32)   # pixel-like input
    params = init_params(kp, latent_dims)
    eps = jax.random.normal(ke, (batch, latent_dims), jnp.float32)

    recon, kl = vae_forward(x, params, eps)
    jax.block_until_ready(recon)
    jax.block_until_ready(kl)

    # ---- plain-JAX f32 reference (same math as the PyTorch module, same noise) ----
    x2 = x.reshape(batch, -1)
    h = jnp.maximum(x2 @ params["ew1"] + params["eb1"], 0.0)
    mu_r = h @ params["ew2"] + params["eb2"]
    logsig_r = h @ params["ew3"] + params["eb3"]
    sigma_r = jnp.exp(logsig_r)
    z_r = mu_r + sigma_r * eps
    hd = jnp.maximum(z_r @ params["dw1"] + params["db1"], 0.0)
    o_r = hd @ params["dw2"] + params["db2"]
    ref_recon = jax.nn.sigmoid(o_r).reshape(batch, 1, 28, 28)
    ref_kl = jnp.sum(sigma_r ** 2 + mu_r ** 2 - logsig_r - 0.5)

    # bf16 MXU inputs vs f32 reference -> loosened tolerances.
    assert recon.shape == (batch, 1, 28, 28)
    assert jnp.allclose(recon, ref_recon, atol=2e-2, rtol=2e-2)
    assert jnp.allclose(kl, ref_kl, rtol=5e-2, atol=1.0)

    print("KERNEL_OK")
</pallas_src>

<mosaic_0001>
module attributes {stable_mosaic.version = 11 : i64} {
  func.func @_vae_kernel(%arg0: i32, %arg1: memref<8x896xf32, #tpu.memory_space<vmem>>, %arg2: memref<8x128xf32, #tpu.memory_space<vmem>>, %arg3: memref<896x512xbf16, #tpu.memory_space<vmem>>, %arg4: memref<1x512xf32, #tpu.memory_space<vmem>>, %arg5: memref<512x256xbf16, #tpu.memory_space<vmem>>, %arg6: memref<1x256xf32, #tpu.memory_space<vmem>>, %arg7: memref<128x512xbf16, #tpu.memory_space<vmem>>, %arg8: memref<1x512xf32, #tpu.memory_space<vmem>>, %arg9: memref<512x896xbf16, #tpu.memory_space<vmem>>, %arg10: memref<1x896xf32, #tpu.memory_space<vmem>>, %arg11: memref<8x896xf32, #tpu.memory_space<vmem>>, %arg12: memref<8x1xf32, #tpu.memory_space<vmem>>) attributes {dimension_semantics = [#tpu.dimension_semantics<parallel>], iteration_bounds = array<i64: 2>, scalar_prefetch = 0 : i64, scratch_operands = 0 : i64, tpu.core_type = #tpu.core_type<tc>, window_params = [{transform_indices = @transform_0, window_bounds = array<i64: 8, 896>}, {transform_indices = @transform_1, window_bounds = array<i64: 8, 128>}, {pipeline_mode = #tpu.pipeline_mode<synchronous>, transform_indices = @transform_2, window_bounds = array<i64: 896, 512>}, {pipeline_mode = #tpu.pipeline_mode<synchronous>, transform_indices = @transform_3, window_bounds = array<i64: 1, 512>}, {pipeline_mode = #tpu.pipeline_mode<synchronous>, transform_indices = @transform_4, window_bounds = array<i64: 512, 256>}, {pipeline_mode = #tpu.pipeline_mode<synchronous>, transform_indices = @transform_5, window_bounds = array<i64: 1, 256>}, {pipeline_mode = #tpu.pipeline_mode<synchronous>, transform_indices = @transform_6, window_bounds = array<i64: 128, 512>}, {pipeline_mode = #tpu.pipeline_mode<synchronous>, transform_indices = @transform_7, window_bounds = array<i64: 1, 512>}, {pipeline_mode = #tpu.pipeline_mode<synchronous>, transform_indices = @transform_8, window_bounds = array<i64: 512, 896>}, {pipeline_mode = #tpu.pipeline_mode<synchronous>, transform_indices = @transform_9, window_bounds = array<i64: 1, 896>}, {transform_indices = @transform_10, window_bounds = array<i64: 8, 896>}, {transform_indices = @transform_11, window_bounds = array<i64: 8, 1>}]} {
    %c0 = arith.constant 0 : index
    %c0_0 = arith.constant 0 : index
    %0 = vector.load %arg1[%c0, %c0_0] : memref<8x896xf32, #tpu.memory_space<vmem>>, vector<8x896xf32>
    %1 = arith.truncf %0 : vector<8x896xf32> to vector<8x896xbf16>
    %c0_1 = arith.constant 0 : index
    %c0_2 = arith.constant 0 : index
    %2 = vector.load %arg3[%c0_1, %c0_2] : memref<896x512xbf16, #tpu.memory_space<vmem>>, vector<896x512xbf16>
    %cst = arith.constant dense<0.000000e+00> : vector<8x512xf32>
    %3 = tpu.matmul %1, %2, %cst {dimension_numbers = #tpu.dot_dimension_numbers<[1], [0], [0], [1], [0, 0, 1, 1], [], []>} : vector<8x896xbf16>, vector<896x512xbf16>, vector<8x512xf32> -> vector<8x512xf32>
    %c0_3 = arith.constant 0 : index
    %c0_4 = arith.constant 0 : index
    %4 = vector.load %arg4[%c0_3, %c0_4] : memref<1x512xf32, #tpu.memory_space<vmem>>, vector<1x512xf32>
    %5 = vector.broadcast %4 : vector<1x512xf32> to vector<8x512xf32>
    %6 = arith.addf %3, %5 : vector<8x512xf32>
    %cst_5 = arith.constant 0.000000e+00 : f32
    %7 = vector.broadcast %cst_5 : f32 to vector<8x512xf32>
    %8 = arith.maximumf %6, %7 : vector<8x512xf32>
    %9 = arith.truncf %8 : vector<8x512xf32> to vector<8x512xbf16>
    %c0_6 = arith.constant 0 : index
    %c0_7 = arith.constant 0 : index
    %10 = vector.load %arg5[%c0_6, %c0_7] : memref<512x256xbf16, #tpu.memory_space<vmem>>, vector<512x256xbf16>
    %cst_8 = arith.constant dense<0.000000e+00> : vector<8x256xf32>
    %11 = tpu.matmul %9, %10, %cst_8 {dimension_numbers = #tpu.dot_dimension_numbers<[1], [0], [0], [1], [0, 0, 1, 1], [], []>} : vector<8x512xbf16>, vector<512x256xbf16>, vector<8x256xf32> -> vector<8x256xf32>
    %c0_9 = arith.constant 0 : index
    %c0_10 = arith.constant 0 : index
    %12 = vector.load %arg6[%c0_9, %c0_10] : memref<1x256xf32, #tpu.memory_space<vmem>>, vector<1x256xf32>
    %13 = vector.broadcast %12 : vector<1x256xf32> to vector<8x256xf32>
    %14 = arith.addf %11, %13 : vector<8x256xf32>
    %15 = vector.extract_strided_slice %14 {offsets = [0, 0], sizes = [8, 128], strides = [1, 1]} : vector<8x256xf32> to vector<8x128xf32>
    %16 = vector.extract_strided_slice %14 {offsets = [0, 128], sizes = [8, 128], strides = [1, 1]} : vector<8x256xf32> to vector<8x128xf32>
    %17 = math.exp %16 : vector<8x128xf32>
    %c0_11 = arith.constant 0 : index
    %c0_12 = arith.constant 0 : index
    %18 = vector.load %arg2[%c0_11, %c0_12] : memref<8x128xf32, #tpu.memory_space<vmem>>, vector<8x128xf32>
    %19 = arith.mulf %17, %18 : vector<8x128xf32>
    %20 = arith.addf %15, %19 : vector<8x128xf32>
    %21 = arith.truncf %20 : vector<8x128xf32> to vector<8x128xbf16>
    %c0_13 = arith.constant 0 : index
    %c0_14 = arith.constant 0 : index
    %22 = vector.load %arg7[%c0_13, %c0_14] : memref<128x512xbf16, #tpu.memory_space<vmem>>, vector<128x512xbf16>
    %cst_15 = arith.constant dense<0.000000e+00> : vector<8x512xf32>
    %23 = tpu.matmul %21, %22, %cst_15 {dimension_numbers = #tpu.dot_dimension_numbers<[1], [0], [0], [1], [0, 0, 1, 1], [], []>} : vector<8x128xbf16>, vector<128x512xbf16>, vector<8x512xf32> -> vector<8x512xf32>
    %c0_16 = arith.constant 0 : index
    %c0_17 = arith.constant 0 : index
    %24 = vector.load %arg8[%c0_16, %c0_17] : memref<1x512xf32, #tpu.memory_space<vmem>>, vector<1x512xf32>
    %25 = vector.broadcast %24 : vector<1x512xf32> to vector<8x512xf32>
    %26 = arith.addf %23, %25 : vector<8x512xf32>
    %cst_18 = arith.constant 0.000000e+00 : f32
    %27 = vector.broadcast %cst_18 : f32 to vector<8x512xf32>
    %28 = arith.maximumf %26, %27 : vector<8x512xf32>
    %29 = arith.truncf %28 : vector<8x512xf32> to vector<8x512xbf16>
    %c0_19 = arith.constant 0 : index
    %c0_20 = arith.constant 0 : index
    %30 = vector.load %arg9[%c0_19, %c0_20] : memref<512x896xbf16, #tpu.memory_space<vmem>>, vector<512x896xbf16>
    %cst_21 = arith.constant dense<0.000000e+00> : vector<8x896xf32>
    %31 = tpu.matmul %29, %30, %cst_21 {dimension_numbers = #tpu.dot_dimension_numbers<[1], [0], [0], [1], [0, 0, 1, 1], [], []>} : vector<8x512xbf16>, vector<512x896xbf16>, vector<8x896xf32> -> vector<8x896xf32>
    %c0_22 = arith.constant 0 : index
    %c0_23 = arith.constant 0 : index
    %32 = vector.load %arg10[%c0_22, %c0_23] : memref<1x896xf32, #tpu.memory_space<vmem>>, vector<1x896xf32>
    %33 = vector.broadcast %32 : vector<1x896xf32> to vector<8x896xf32>
    %34 = arith.addf %31, %33 : vector<8x896xf32>
    %35 = arith.negf %34 : vector<8x896xf32>
    %36 = math.exp %35 : vector<8x896xf32>
    %cst_24 = arith.constant 1.000000e+00 : f32
    %37 = vector.broadcast %cst_24 : f32 to vector<8x896xf32>
    %38 = arith.addf %37, %36 : vector<8x896xf32>
    %39 = arith.divf %37, %38 : vector<8x896xf32>
    %c0_25 = arith.constant 0 : index
    %c0_26 = arith.constant 0 : index
    %40 = vector.load %arg11[%c0_25, %c0_26] : memref<8x896xf32, #tpu.memory_space<vmem>>, vector<8x896xf32>
    tpu.vector_store %arg11[%c0_25, %c0_26], %39 {strides = array<i32>} : memref<8x896xf32, #tpu.memory_space<vmem>>, vector<8x896xf32>,
    %41 = tpu.iota {dimensions = array<i32: 1>} : vector<1x128xi32>
    %42 = arith.mulf %17, %17 : vector<8x128xf32>
    %43 = arith.mulf %15, %15 : vector<8x128xf32>
    %44 = arith.addf %42, %43 : vector<8x128xf32>
    %45 = arith.subf %44, %16 : vector<8x128xf32>
    %cst_27 = arith.constant 5.000000e-01 : f32
    %46 = vector.broadcast %cst_27 : f32 to vector<8x128xf32>
    %47 = arith.subf %45, %46 : vector<8x128xf32>
    %c16_i32 = arith.constant 16 : i32
    %48 = vector.broadcast %c16_i32 : i32 to vector<1x128xi32>
    %49 = arith.cmpi slt, %41, %48 : vector<1x128xi32>
    %cst_28 = arith.constant 0.000000e+00 : f32
    %50 = vector.shape_cast %49 : vector<1x128xi1> to vector<1x128xi1>
    %51 = vector.broadcast %50 : vector<1x128xi1> to vector<8x128xi1>
    %52 = vector.broadcast %cst_28 : f32 to vector<8x128xf32>
    %53 = arith.select %51, %47, %52 : vector<8x128xi1>, vector<8x128xf32>
    %cst_29 = arith.constant dense<0.000000e+00> : vector<8xf32>
    %54 = vector.multi_reduction <add>, %53, %cst_29 [1] : vector<8x128xf32> to vector<8xf32>
    %55 = vector.shape_cast %54 : vector<8xf32> to vector<8x1xf32>
    %c0_30 = arith.constant 0 : index
    %c0_31 = arith.constant 0 : index
    %56 = vector.load %arg12[%c0_30, %c0_31] : memref<8x1xf32, #tpu.memory_space<vmem>>, vector<8x1xf32>
    tpu.vector_store %arg12[%c0_30, %c0_31], %55 {strides = array<i32>} : memref<8x1xf32, #tpu.memory_space<vmem>>, vector<8x1xf32>,
    return
  }
  func.func @transform_0(%arg0: i32) -> (i32, i32) {
    %c0_i32 = arith.constant 0 : i32
    %c0_i32_0 = arith.constant 0 : i32
    return %arg0, %c0_i32 : i32, i32
  }
  func.func @transform_1(%arg0: i32) -> (i32, i32) {
    %c0_i32 = arith.constant 0 : i32
    %c0_i32_0 = arith.constant 0 : i32
    return %arg0, %c0_i32 : i32, i32
  }
  func.func @transform_2(%arg0: i32) -> (i32, i32) {
    %c0_i32 = arith.constant 0 : i32
    %c0_i32_0 = arith.constant 0 : i32
    %c0_i32_1 = arith.constant 0 : i32
    return %c0_i32, %c0_i32_0 : i32, i32
  }
  func.func @transform_3(%arg0: i32) -> (i32, i32) {
    %c0_i32 = arith.constant 0 : i32
    %c0_i32_0 = arith.constant 0 : i32
    %c0_i32_1 = arith.constant 0 : i32
    return %c0_i32, %c0_i32_0 : i32, i32
  }
  func.func @transform_4(%arg0: i32) -> (i32, i32) {
    %c0_i32 = arith.constant 0 : i32
    %c0_i32_0 = arith.constant 0 : i32
    %c0_i32_1 = arith.constant 0 : i32
    return %c0_i32, %c0_i32_0 : i32, i32
  }
  func.func @transform_5(%arg0: i32) -> (i32, i32) {
    %c0_i32 = arith.constant 0 : i32
    %c0_i32_0 = arith.constant 0 : i32
    %c0_i32_1 = arith.constant 0 : i32
    return %c0_i32, %c0_i32_0 : i32, i32
  }
  func.func @transform_6(%arg0: i32) -> (i32, i32) {
    %c0_i32 = arith.constant 0 : i32
    %c0_i32_0 = arith.constant 0 : i32
    %c0_i32_1 = arith.constant 0 : i32
    return %c0_i32, %c0_i32_0 : i32, i32
  }
  func.func @transform_7(%arg0: i32) -> (i32, i32) {
    %c0_i32 = arith.constant 0 : i32
    %c0_i32_0 = arith.constant 0 : i32
    %c0_i32_1 = arith.constant 0 : i32
    return %c0_i32, %c0_i32_0 : i32, i32
  }
  func.func @transform_8(%arg0: i32) -> (i32, i32) {
    %c0_i32 = arith.constant 0 : i32
    %c0_i32_0 = arith.constant 0 : i32
    %c0_i32_1 = arith.constant 0 : i32
    return %c0_i32, %c0_i32_0 : i32, i32
  }
  func.func @transform_9(%arg0: i32) -> (i32, i32) {
    %c0_i32 = arith.constant 0 : i32
    %c0_i32_0 = arith.constant 0 : i32
    %c0_i32_1 = arith.constant 0 : i32
    return %c0_i32, %c0_i32_0 : i32, i32
  }
  func.func @transform_10(%arg0: i32) -> (i32, i32) {
    %c0_i32 = arith.constant 0 : i32
    %c0_i32_0 = arith.constant 0 : i32
    return %arg0, %c0_i32 : i32, i32
  }
  func.func @transform_11(%arg0: i32) -> (i32, i32) {
    %c0_i32 = arith.constant 0 : i32
    %c0_i32_0 = arith.constant 0 : i32
    return %arg0, %c0_i32 : i32, i32
  }
}

</mosaic_0001>

<llo_original>
// kernel: tpu_custom_call.1
$region0: #{tpu_custom_call.1}
  #allocation0 [shape = 'u32[]', space=smem, size = 0x4, offset = 0x4, fixed_abs, tag = 'smem constant byte address 0x4 - core index']
  #allocation1 [shape = 'u32[144,128]{1,0:T(1,128)}', space=vmem, size = 0x12000, scoped, tag = 'internal scratch']
  %s0 = inlined_call_operand.hbm [shape: f32[16,896], index: 0, kind: input, shape index: {}]
  %s1 = inlined_call_operand.hbm [shape: f32[16,128], index: 1, kind: input, shape index: {}]
  %s2 = inlined_call_operand.hbm [shape: bf16[896,512], index: 2, kind: input, shape index: {}]
  %s3 = inlined_call_operand.hbm [shape: f32[1,512], index: 3, kind: input, shape index: {}]
  %s4 = inlined_call_operand.hbm [shape: bf16[512,256], index: 4, kind: input, shape index: {}]
  %s5 = inlined_call_operand.hbm [shape: f32[1,256], index: 5, kind: input, shape index: {}]
  %s6 = inlined_call_operand.hbm [shape: bf16[128,512], index: 6, kind: input, shape index: {}]
  %s7 = inlined_call_operand.hbm [shape: f32[1,512], index: 7, kind: input, shape index: {}]
  %s8 = inlined_call_operand.hbm [shape: bf16[512,896], index: 8, kind: input, shape index: {}]
  %s9 = inlined_call_operand.hbm [shape: f32[1,896], index: 9, kind: input, shape index: {}]
  %s10 = inlined_call_operand.hbm [shape: f32[16,896], index: 10, kind: output, shape index: {0}]
  %s11 = inlined_call_operand.hbm [shape: f32[16,1], index: 11, kind: output, shape index: {1}]
  %12 = xla_tuple %s10, %s11
  %s13 = sld [smem:[#allocation0]]
  $region121: #{tpu_custom_call.1} parent=0
    _
  %s15 = ssub.s32 1, %s13
  %s16 = scalar_select 0, %s15, %s13
  $region1: #{tpu_custom_call.1} parent=0
    #allocation2 [shape = 'u8[57344]{0}', space=vmem, size = 0xe000, scoped, tag = 'input window, operand 0']
    #allocation3 [shape = 's32[2]{0}', space=sflag, size = 0x8, scoped, tag = 'scoped memory for tpu_custom_call.1']
    #allocation4 [shape = 's32[2]{0}', space=sflag, size = 0x8, scoped, tag = 'scoped memory for tpu_custom_call.1']
    #allocation5 [shape = 'u8[8192]{0}', space=vmem, size = 0x2000, scoped, tag = 'input window, operand 1']
    #allocation6 [shape = 's32[2]{0}', space=sflag, size = 0x8, scoped, tag = 'scoped memory for tpu_custom_call.1']
    #allocation7 [shape = 'u8[917504]{0}', space=vmem, size = 0xe0000, scoped, tag = 'input window, operand 2, single buffered']
    #allocation8 [shape = 'u8[2048]{0}', space=vmem, size = 0x800, scoped, tag = 'input window, operand 3, single buffered']
    #allocation9 [shape = 's32[1]{0}', space=sflag, size = 0x4, scoped, tag = 'scoped memory for tpu_custom_call.1']
    #allocation10 [shape = 'u8[262144]{0}', space=vmem, size = 0x40000, scoped, tag = 'input window, operand 4, single buffered']
    #allocation11 [shape = 'u8[1024]{0}', space=vmem, size = 0x400, scoped, tag = 'input window, operand 5, single buffered']
    #allocation12 [shape = 's32[1]{0}', space=sflag, size = 0x4, scoped, tag = 'scoped memory for tpu_custom_call.1']
    #allocation13 [shape = 'u8[131072]{0}', space=vmem, size = 0x20000, scoped, tag = 'input window, operand 6, single buffered']
    #allocation14 [shape = 'u8[2048]{0}', space=vmem, size = 0x800, scoped, tag = 'input window, operand 7, single buffered']
    #allocation15 [shape = 's32[1]{0}', space=sflag, size = 0x4, scoped, tag = 'scoped memory for tpu_custom_call.1']
    #allocation16 [shape = 'u8[917504]{0}', space=vmem, size = 0xe0000, scoped, tag = 'input window, operand 8, single buffered']
    #allocation17 [shape = 'u8[3584]{0}', space=vmem, size = 0x1000, scoped, tag = 'input window, operand 9, single buffered']
    #allocation18 [shape = 's32[1]{0}', space=sflag, size = 0x4, scoped, tag = 'scoped memory for tpu_custom_call.1']
    #allocation19 [shape = 'u8[57344]{0}', space=vmem, size = 0xe000, scoped, tag = 'output window, operand 0']
    #allocation20 [shape = 'u8[8192]{0}', space=vmem, size = 0x2000, scoped, tag = 'output window, operand 1']
    #allocation21 [shape = 's32[2]{0}', space=sflag, size = 0x8, scoped, tag = 'scoped memory for tpu_custom_call.1']
    %17 = vsyncpa [#allocation3], 0
    %s18 = scalar_lea.sflag [#allocation3], 1
    %19 = vsyncpa %s18, 0
    %20 = vsyncpa [#allocation6], 0
    %s21 = scalar_lea.sflag [#allocation6], 1
    %22 = vsyncpa %s21, 0
    %23 = vsyncpa [#allocation9], 0
    %24 = vsyncpa [#allocation12], 0
    %25 = vsyncpa [#allocation15], 0
    %26 = vsyncpa [#allocation18], 0
    %27 = vsyncpa [#allocation4], 0
    %s28 = scalar_lea.sflag [#allocation4], 1
    %29 = vsyncpa %s28, 0
    %30 = vsyncpa [#allocation21], 0
    %s31 = scalar_lea.sflag [#allocation21], 1
    %32 = vsyncpa %s31, 0
    loop: start=0, step=1, limit=4
    $region2: #{tpu_custom_call.1} parent=1 // loop_pre_header
      _
    $region3: #{tpu_custom_call.1} parent=1 // loop_header
      %s34 = sphi 0, %s38
      %p35 = scmp.ge.s32.totalorder %s34, 4
      %s44 = sphi 0, %s46
      %s47 = sphi 0, %s44
      %s48 = sphi 0, %s47
      %s64 = sphi 0, %s48
      %s70 = sphi 0, %s72
      %s73 = sphi 0, %s70
      %s74 = sphi 0, %s73
      %s90 = sphi 0, %s74
      %s94 = sphi 0, %s94
      %s96 = sphi 0, %s94
      %s97 = sphi 0, %s96
      %s111 = sphi 0, %s97
      %s115 = sphi 0, %s115
      %s117 = sphi 0, %s115
      %s118 = sphi 0, %s117
      %s132 = sphi 0, %s118
      %s136 = sphi 0, %s136
      %s138 = sphi 0, %s136
      %s139 = sphi 0, %s138
      %s153 = sphi 0, %s139
      %s157 = sphi 0, %s157
      %s159 = sphi 0, %s157
      %s160 = sphi 0, %s159
      %s174 = sphi 0, %s160
      %s178 = sphi 0, %s178
      %s180 = sphi 0, %s178
      %s181 = sphi 0, %s180
      %s195 = sphi 0, %s181
      %s199 = sphi 0, %s199
      %s201 = sphi 0, %s199
      %s202 = sphi 0, %s201
      %s216 = sphi 0, %s202
      %s220 = sphi 0, %s220
      %s222 = sphi 0, %s220
      %s223 = sphi 0, %s222
      %s237 = sphi 0, %s223
      %s241 = sphi 0, %s241
      %s243 = sphi 0, %s241
      %s244 = sphi 0, %s243
      %s258 = sphi 0, %s244
      %s264 = sphi 0, %s266
      %s267 = sphi 0, %s264
      %s268 = sphi 0, %s267
      %s284 = sphi 0, %s268
      %s290 = sphi 0, %s292
      %s293 = sphi 0, %s290
      %s294 = sphi 0, %s293
      %s310 = sphi 0, %s294
    $region4: #{tpu_custom_call.1} parent=1 // loop_header_branch
      %37 = sbr.rel (%p35) target = $region8
    $region5: #{tpu_custom_call.1} parent=1 // loop_body
      %s39 = ssub.s32 %s34, 1
      %s40 = ssub.s32 %s34, 2
      %s41 = sadd.s32 %s34, 1
      %s42 = ssub.s32 %s34, %s41
      %p43 = scmp.eq.s32.totalorder %s42, 0
      %s45 = sadd.s32 %s44, 1
      %s46 = scalar_select %p43, %s44, %s45
      %p49 = pneg %p43
      %p50 = scmp.eq.s32.totalorder %s34, 1
      %p51 = por %p49, %p50
      %p52 = scmp.ne.s32.totalorder %s44, %s47
      %p53 = scmp.eq.s32.totalorder %s34, 0
      %p54 = por %p52, %p53
      %p55 = scmp.ne.s32.totalorder %s44, %s47
      %p56 = scmp.eq.s32.totalorder %s39, 1
      %p57 = por %p55, %p56
      %p58 = scmp.ne.s32.totalorder %s47, %s48
      %p59 = scmp.eq.s32.totalorder %s39, 0
      %p60 = por %p58, %p59
      %p61 = scmp.ne.s32.totalorder %s47, %s48
      %p62 = scmp.eq.s32.totalorder %s40, 1
      %p63 = por %p61, %p62
      %p65 = scmp.ne.s32.totalorder %s48, %s64
      %p66 = scmp.eq.s32.totalorder %s40, 0
      %p67 = por %p65, %p66
      %s68 = ssub.s32 %s34, %s41
      %p69 = scmp.eq.s32.totalorder %s68, 0
      %s71 = sadd.s32 %s70, 1
      %s72 = scalar_select %p69, %s70, %s71
      %p75 = pneg %p69
      %p76 = scmp.eq.s32.totalorder %s34, 1
      %p77 = por %p75, %p76
      %p78 = scmp.ne.s32.totalorder %s70, %s73
      %p79 = scmp.eq.s32.totalorder %s34, 0
      %p80 = por %p78, %p79
      %p81 = scmp.ne.s32.totalorder %s70, %s73
      %p82 = scmp.eq.s32.totalorder %s39, 1
      %p83 = por %p81, %p82
      %p84 = scmp.ne.s32.totalorder %s73, %s74
      %p85 = scmp.eq.s32.totalorder %s39, 0
      %p86 = por %p84, %p85
      %p87 = scmp.ne.s32.totalorder %s73, %s74
      %p88 = scmp.eq.s32.totalorder %s40, 1
      %p89 = por %p87, %p88
      %p91 = scmp.ne.s32.totalorder %s74, %s90
      %p92 = scmp.eq.s32.totalorder %s40, 0
      %p93 = por %p91, %p92
      %s95 = sadd.s32 %s94, 1
      %p98 = scmp.eq.s32.totalorder %s34, 1
      %p99 = scmp.ne.s32.totalorder %s94, %s96
      %p100 = scmp.eq.s32.totalorder %s34, 0
      %p101 = por %p99, %p100
      %p102 = scmp.ne.s32.totalorder %s94, %s96
      %p103 = scmp.eq.s32.totalorder %s39, 1
      %p104 = por %p102, %p103
      %p105 = scmp.ne.s32.totalorder %s96, %s97
      %p106 = scmp.eq.s32.totalorder %s39, 0
      %p107 = por %p105, %p106
      %p108 = scmp.ne.s32.totalorder %s96, %s97
      %p109 = scmp.eq.s32.totalorder %s40, 1
      %p110 = por %p108, %p109
      %p112 = scmp.ne.s32.totalorder %s97, %s111
      %p113 = scmp.eq.s32.totalorder %s40, 0
      %p114 = por %p112, %p113
      %s116 = sadd.s32 %s115, 1
      %p119 = scmp.eq.s32.totalorder %s34, 1
      %p120 = scmp.ne.s32.totalorder %s115, %s117
      %p121 = scmp.eq.s32.totalorder %s34, 0
      %p122 = por %p120, %p121
      %p123 = scmp.ne.s32.totalorder %s115, %s117
      %p124 = scmp.eq.s32.totalorder %s39, 1
      %p125 = por %p123, %p124
      %p126 = scmp.ne.s32.totalorder %s117, %s118
      %p127 = scmp.eq.s32.totalorder %s39, 0
      %p128 = por %p126, %p127
      %p129 = scmp.ne.s32.totalorder %s117, %s118
      %p130 = scmp.eq.s32.totalorder %s40, 1
      %p131 = por %p129, %p130
      %p133 = scmp.ne.s32.totalorder %s118, %s132
      %p134 = scmp.eq.s32.totalorder %s40, 0
      %p135 = por %p133, %p134
      %s137 = sadd.s32 %s136, 1
      %p140 = scmp.eq.s32.totalorder %s34, 1
      %p141 = scmp.ne.s32.totalorder %s136, %s138
      %p142 = scmp.eq.s32.totalorder %s34, 0
      %p143 = por %p141, %p142
      %p144 = scmp.ne.s32.totalorder %s136, %s138
      %p145 = scmp.eq.s32.totalorder %s39, 1
      %p146 = por %p144, %p145
      %p147 = scmp.ne.s32.totalorder %s138, %s139
      %p148 = scmp.eq.s32.totalorder %s39, 0
      %p149 = por %p147, %p148
      %p150 = scmp.ne.s32.totalorder %s138, %s139
      %p151 = scmp.eq.s32.totalorder %s40, 1
      %p152 = por %p150, %p151
      %p154 = scmp.ne.s32.totalorder %s139, %s153
      %p155 = scmp.eq.s32.totalorder %s40, 0
      %p156 = por %p154, %p155
      %s158 = sadd.s32 %s157, 1
      %p161 = scmp.eq.s32.totalorder %s34, 1
      %p162 = scmp.ne.s32.totalorder %s157, %s159
      %p163 = scmp.eq.s32.totalorder %s34, 0
      %p164 = por %p162, %p163
      %p165 = scmp.ne.s32.totalorder %s157, %s159
      %p166 = scmp.eq.s32.totalorder %s39, 1
      %p167 = por %p165, %p166
      %p168 = scmp.ne.s32.totalorder %s159, %s160
      %p169 = scmp.eq.s32.totalorder %s39, 0
      %p170 = por %p168, %p169
      %p171 = scmp.ne.s32.totalorder %s159, %s160
      %p172 = scmp.eq.s32.totalorder %s40, 1
      %p173 = por %p171, %p172
      %p175 = scmp.ne.s32.totalorder %s160, %s174
      %p176 = scmp.eq.s32.totalorder %s40, 0
      %p177 = por %p175, %p176
      %s179 = sadd.s32 %s178, 1
      %p182 = scmp.eq.s32.totalorder %s34, 1
      %p183 = scmp.ne.s32.totalorder %s178, %s180
      %p184 = scmp.eq.s32.totalorder %s34, 0
      %p185 = por %p183, %p184
      %p186 = scmp.ne.s32.totalorder %s178, %s180
      %p187 = scmp.eq.s32.totalorder %s39, 1
      %p188 = por %p186, %p187
      %p189 = scmp.ne.s32.totalorder %s180, %s181
      %p190 = scmp.eq.s32.totalorder %s39, 0
      %p191 = por %p189, %p190
      %p192 = scmp.ne.s32.totalorder %s180, %s181
      %p193 = scmp.eq.s32.totalorder %s40, 1
      %p194 = por %p192, %p193
      %p196 = scmp.ne.s32.totalorder %s181, %s195
      %p197 = scmp.eq.s32.totalorder %s40, 0
      %p198 = por %p196, %p197
      %s200 = sadd.s32 %s199, 1
      %p203 = scmp.eq.s32.totalorder %s34, 1
      %p204 = scmp.ne.s32.totalorder %s199, %s201
      %p205 = scmp.eq.s32.totalorder %s34, 0
      %p206 = por %p204, %p205
      %p207 = scmp.ne.s32.totalorder %s199, %s201
      %p208 = scmp.eq.s32.totalorder %s39, 1
      %p209 = por %p207, %p208
      %p210 = scmp.ne.s32.totalorder %s201, %s202
      %p211 = scmp.eq.s32.totalorder %s39, 0
      %p212 = por %p210, %p211
      %p213 = scmp.ne.s32.totalorder %s201, %s202
      %p214 = scmp.eq.s32.totalorder %s40, 1
      %p215 = por %p213, %p214
      %p217 = scmp.ne.s32.totalorder %s202, %s216
      %p218 = scmp.eq.s32.totalorder %s40, 0
      %p219 = por %p217, %p218
      %s221 = sadd.s32 %s220, 1
      %p224 = scmp.eq.s32.totalorder %s34, 1
      %p225 = scmp.ne.s32.totalorder %s220, %s222
      %p226 = scmp.eq.s32.totalorder %s34, 0
      %p227 = por %p225, %p226
      %p228 = scmp.ne.s32.totalorder %s220, %s222
      %p229 = scmp.eq.s32.totalorder %s39, 1
      %p230 = por %p228, %p229
      %p231 = scmp.ne.s32.totalorder %s222, %s223
      %p232 = scmp.eq.s32.totalorder %s39, 0
      %p233 = por %p231, %p232
      %p234 = scmp.ne.s32.totalorder %s222, %s223
      %p235 = scmp.eq.s32.totalorder %s40, 1
      %p236 = por %p234, %p235
      %p238 = scmp.ne.s32.totalorder %s223, %s237
      %p239 = scmp.eq.s32.totalorder %s40, 0
      %p240 = por %p238, %p239
      %s242 = sadd.s32 %s241, 1
      %p245 = scmp.eq.s32.totalorder %s34, 1
      %p246 = scmp.ne.s32.totalorder %s241, %s243
      %p247 = scmp.eq.s32.totalorder %s34, 0
      %p248 = por %p246, %p247
      %p249 = scmp.ne.s32.totalorder %s241, %s243
      %p250 = scmp.eq.s32.totalorder %s39, 1
      %p251 = por %p249, %p250
      %p252 = scmp.ne.s32.totalorder %s243, %s244
      %p253 = scmp.eq.s32.totalorder %s39, 0
      %p254 = por %p252, %p253
      %p255 = scmp.ne.s32.totalorder %s243, %s244
      %p256 = scmp.eq.s32.totalorder %s40, 1
      %p257 = por %p255, %p256
      %p259 = scmp.ne.s32.totalorder %s244, %s258
      %p260 = scmp.eq.s32.totalorder %s40, 0
      %p261 = por %p259, %p260
      %s262 = ssub.s32 %s34, %s41
      %p263 = scmp.eq.s32.totalorder %s262, 0
      %s265 = sadd.s32 %s264, 1
      %s266 = scalar_select %p263, %s264, %s265
      %p269 = pneg %p263
      %p270 = scmp.eq.s32.totalorder %s34, 1
      %p271 = por %p269, %p270
      %p272 = scmp.ne.s32.totalorder %s264, %s267
      %p273 = scmp.eq.s32.totalorder %s34, 0
      %p274 = por %p272, %p273
      %p275 = scmp.ne.s32.totalorder %s264, %s267
      %p276 = scmp.eq.s32.totalorder %s39, 1
      %p277 = por %p275, %p276
      %p278 = scmp.ne.s32.totalorder %s267, %s268
      %p279 = scmp.eq.s32.totalorder %s39, 0
      %p280 = por %p278, %p279
      %p281 = scmp.ne.s32.totalorder %s267, %s268
      %p282 = scmp.eq.s32.totalorder %s40, 1
      %p283 = por %p281, %p282
      %p285 = scmp.ne.s32.totalorder %s268, %s284
      %p286 = scmp.eq.s32.totalorder %s40, 0
      %p287 = por %p285, %p286
      %s288 = ssub.s32 %s34, %s41
      %p289 = scmp.eq.s32.totalorder %s288, 0
      %s291 = sadd.s32 %s290, 1
      %s292 = scalar_select %p289, %s290, %s291
      %p295 = pneg %p289
      %p296 = scmp.eq.s32.totalorder %s34, 1
      %p297 = por %p295, %p296
      %p298 = scmp.ne.s32.totalorder %s290, %s293
      %p299 = scmp.eq.s32.totalorder %s34, 0
      %p300 = por %p298, %p299
      %p301 = scmp.ne.s32.totalorder %s290, %s293
      %p302 = scmp.eq.s32.totalorder %s39, 1
      %p303 = por %p301, %p302
      %p304 = scmp.ne.s32.totalorder %s293, %s294
      %p305 = scmp.eq.s32.totalorder %s39, 0
      %p306 = por %p304, %p305
      %p307 = scmp.ne.s32.totalorder %s293, %s294
      %p308 = scmp.eq.s32.totalorder %s40, 1
      %p309 = por %p307, %p308
      %p311 = scmp.ne.s32.totalorder %s294, %s310
      %p312 = scmp.eq.s32.totalorder %s40, 0
      %p313 = por %p311, %p312
      %p314 = scmp.le.s32.totalorder 1, %s34
      %p315 = scmp.lt.s32.totalorder %s34, 3
      %p316 = pnand %p314, %p315
      %p317 = pneg %p316
      // Predicated region
      $region9: #{tpu_custom_call.1} parent=5 // pred_check
        _
      $region10: #{tpu_custom_call.1} parent=5 // pred_check_branch
        %319 = sbr.rel (%p316) target = $region12
      $region11: #{tpu_custom_call.1} parent=5 // pred_region
        %s320 = ssub.s32 %s34, 1
        // Predicated region
        $region13: #{tpu_custom_call.1} parent=11 // pred_check
          %p321 = pneg %p107
        $region14: #{tpu_custom_call.1} parent=11 // pred_check_branch
          %323 = sbr.rel (%p321) target = $region16
        $region15: #{tpu_custom_call.1} parent=11 // pred_region
          %s325 = ssub.s32 28672, 28672
          %326 = vsyncadd [#allocation6], %s325
          %s327 = sshll.u32 [#allocation7], 4
          %s328 = int_to_ptr.vmem [resolvable:$true] %s327
          %333 = dma.hbm_to_vmem [thread:$0]  %s2, 28672, %s328, [#allocation6], 256, 256, 16
        $region16: #{tpu_custom_call.1} parent=11 // pred_fallthru
          _
        // Predicated region
        $region17: #{tpu_custom_call.1} parent=11 // pred_check
          %p334 = pneg %p128
        $region18: #{tpu_custom_call.1} parent=11 // pred_check_branch
          %336 = sbr.rel (%p334) target = $region20
        $region19: #{tpu_custom_call.1} parent=11 // pred_region
          %s338 = ssub.s32 64, 64
          %339 = vsyncadd [#allocation9], %s338
          %s341 = sshll.u32 [#allocation8], 4
          %s342 = int_to_ptr.vmem [resolvable:$true] %s341
          %344 = dma.hbm_to_vmem [thread:$0]  %s3, 64, %s342, [#allocation9]
        $region20: #{tpu_custom_call.1} parent=11 // pred_fallthru
          _
        // Predicated region
        $region21: #{tpu_custom_call.1} parent=11 // pred_check
          %p345 = pneg %p149
        $region22: #{tpu_custom_call.1} parent=11 // pred_check_branch
          %347 = sbr.rel (%p345) target = $region24
        $region23: #{tpu_custom_call.1} parent=11 // pred_region
          %s349 = ssub.s32 8192, 8192
          %350 = vsyncadd [#allocation9], %s349
          %s351 = sshll.u32 [#allocation10], 4
          %s352 = int_to_ptr.vmem [resolvable:$true] %s351
          %357 = dma.hbm_to_vmem [thread:$0]  %s4, 8192, %s352, [#allocation9], 128, 128, 8
        $region24: #{tpu_custom_call.1} parent=11 // pred_fallthru
          _
        // Predicated region
        $region25: #{tpu_custom_call.1} parent=11 // pred_check
          %p358 = pneg %p170
        $region26: #{tpu_custom_call.1} parent=11 // pred_check_branch
          %360 = sbr.rel (%p358) target = $region28
        $region27: #{tpu_custom_call.1} parent=11 // pred_region
          %s362 = ssub.s32 32, 32
          %363 = vsyncadd [#allocation12], %s362
          %s365 = sshll.u32 [#allocation11], 4
          %s366 = int_to_ptr.vmem [resolvable:$true] %s365
          %368 = dma.hbm_to_vmem [thread:$0]  %s5, 32, %s366, [#allocation12]
        $region28: #{tpu_custom_call.1} parent=11 // pred_fallthru
          _
        // Predicated region
        $region29: #{tpu_custom_call.1} parent=11 // pred_check
          %p369 = pneg %p191
        $region30: #{tpu_custom_call.1} parent=11 // pred_check_branch
          %371 = sbr.rel (%p369) target = $region32
        $region31: #{tpu_custom_call.1} parent=11 // pred_region
          %s373 = ssub.s32 4096, 4096
          %374 = vsyncadd [#allocation12], %s373
          %s375 = sshll.u32 [#allocation13], 4
          %s376 = int_to_ptr.vmem [resolvable:$true] %s375
          %381 = dma.hbm_to_vmem [thread:$0]  %s6, 4096, %s376, [#allocation12], 256, 256, 16
        $region32: #{tpu_custom_call.1} parent=11 // pred_fallthru
          _
        // Predicated region
        $region33: #{tpu_custom_call.1} parent=11 // pred_check
          %p382 = pneg %p212
        $region34: #{tpu_custom_call.1} parent=11 // pred_check_branch
          %384 = sbr.rel (%p382) target = $region36
        $region35: #{tpu_custom_call.1} parent=11 // pred_region
          %s386 = ssub.s32 64, 64
          %387 = vsyncadd [#allocation15], %s386
          %s389 = sshll.u32 [#allocation14], 4
          %s390 = int_to_ptr.vmem [resolvable:$true] %s389
          %392 = dma.hbm_to_vmem [thread:$0]  %s7, 64, %s390, [#allocation15]
        $region36: #{tpu_custom_call.1} parent=11 // pred_fallthru
          _
        // Predicated region
        $region37: #{tpu_custom_call.1} parent=11 // pred_check
          %p393 = pneg %p233
        $region38: #{tpu_custom_call.1} parent=11 // pred_check_branch
          %395 = sbr.rel (%p393) target = $region40
        $region39: #{tpu_custom_call.1} parent=11 // pred_region
          %s397 = ssub.s32 28672, 28672
          %398 = vsyncadd [#allocation15], %s397
          %s399 = sshll.u32 [#allocation16], 4
          %s400 = int_to_ptr.vmem [resolvable:$true] %s399
          %405 = dma.hbm_to_vmem [thread:$0]  %s8, 28672, %s400, [#allocation15], 448, 448, 28
        $region40: #{tpu_custom_call.1} parent=11 // pred_fallthru
          _
        // Predicated region
        $region41: #{tpu_custom_call.1} parent=11 // pred_check
          %p406 = pneg %p254
        $region42: #{tpu_custom_call.1} parent=11 // pred_check_branch
          %408 = sbr.rel (%p406) target = $region44
        $region43: #{tpu_custom_call.1} parent=11 // pred_region
          %s410 = ssub.s32 112, 112
          %411 = vsyncadd [#allocation18], %s410
          %s413 = sshll.u32 [#allocation17], 4
          %s414 = int_to_ptr.vmem [resolvable:$true] %s413
          %416 = dma.hbm_to_vmem [thread:$0]  %s9, 112, %s414, [#allocation18]
        $region44: #{tpu_custom_call.1} parent=11 // pred_fallthru
          _
      $region12: #{tpu_custom_call.1} parent=5 // pred_fallthru
        _
      %p417 = scmp.lt.s32.totalorder %s34, 2
      // Predicated region
      $region45: #{tpu_custom_call.1} parent=5 // pred_check
        %p418 = pneg %p417
      $region46: #{tpu_custom_call.1} parent=5 // pred_check_branch
        %420 = sbr.rel (%p418) target = $region48
      $region47: #{tpu_custom_call.1} parent=5 // pred_region
        // Predicated region
        $region49: #{tpu_custom_call.1} parent=47 // pred_check
          %p421 = pneg %p54
        $region50: #{tpu_custom_call.1} parent=47 // pred_check_branch
          %423 = sbr.rel (%p421) target = $region52
        $region51: #{tpu_custom_call.1} parent=47 // pred_region
          %s424 = sand.u32 %s44, 1
          %s425 = scalar_lea.sflag [#allocation3], %s424
          %s426 = sand.u32 %s44, 1
          %s427 = smul.addr %s426, 56
          %s428 = scalar_lea.vmem [#allocation2], %s427
          %s430 = ssub.s32 896, 896
          %431 = vsyncadd %s425, %s430
          %s432 = smul.addr %s34, 7
          %s433 = smul.addr %s432, 128
          %s434 = scalar_lea.hbm %s0, %s433
          %s436 = sshll.u32 %s428, 4
          %s437 = int_to_ptr.vmem [resolvable:$true] %s436
          %439 = dma.hbm_to_vmem [thread:$0]  %s434, 896, %s437, %s425
        $region52: #{tpu_custom_call.1} parent=47 // pred_fallthru
          _
        // Predicated region
        $region53: #{tpu_custom_call.1} parent=47 // pred_check
          %p440 = pneg %p80
        $region54: #{tpu_custom_call.1} parent=47 // pred_check_branch
          %442 = sbr.rel (%p440) target = $region56
        $region55: #{tpu_custom_call.1} parent=47 // pred_region
          %s443 = sand.u32 %s34, 1
          %s444 = scalar_lea.sflag [#allocation6], %s443
          %s445 = sand.u32 %s70, 1
          %s446 = smul.addr %s445, 8
          %s447 = scalar_lea.vmem [#allocation5], %s446
          %s449 = ssub.s32 128, 128
          %450 = vsyncadd %s444, %s449
          %s451 = smul.addr %s34, 128
          %s452 = scalar_lea.hbm %s1, %s451
          %s454 = sshll.u32 %s447, 4
          %s455 = int_to_ptr.vmem [resolvable:$true] %s454
          %457 = dma.hbm_to_vmem [thread:$0]  %s452, 128, %s455, %s444
        $region56: #{tpu_custom_call.1} parent=47 // pred_fallthru
          _
      $region48: #{tpu_custom_call.1} parent=5 // pred_fallthru
        _
      %p458 = scmp.le.s32.totalorder 1, %s34
      %p459 = scmp.lt.s32.totalorder %s34, 3
      %p460 = pnand %p458, %p459
      %p461 = pneg %p460
      // Predicated region
      $region57: #{tpu_custom_call.1} parent=5 // pred_check
        _
      $region58: #{tpu_custom_call.1} parent=5 // pred_check_branch
        %463 = sbr.rel (%p460) target = $region60
      $region59: #{tpu_custom_call.1} parent=5 // pred_region
        %s464 = ssub.s32 %s34, 1
        %s465 = sand.u32 %s47, 1
        %s466 = scalar_lea.sflag [#allocation3], %s465
        %s467 = sand.u32 %s47, 1
        %s468 = smul.addr %s467, 56
        %s469 = scalar_lea.vmem [#allocation2], %s468
        // Predicated region
        $region61: #{tpu_custom_call.1} parent=59 // pred_check
          %p470 = pneg %p60
        $region62: #{tpu_custom_call.1} parent=59 // pred_check_branch
          %472 = sbr.rel (%p470) target = $region64
        $region63: #{tpu_custom_call.1} parent=59 // pred_region
          %473 = dma.done %s466, 896
        $region64: #{tpu_custom_call.1} parent=59 // pred_fallthru
          _
        %s474 = sand.u32 %s39, 1
        %s475 = scalar_lea.sflag [#allocation6], %s474
        %s476 = sand.u32 %s73, 1
        %s477 = smul.addr %s476, 8
        %s478 = scalar_lea.vmem [#allocation5], %s477
        // Predicated region
        $region65: #{tpu_custom_call.1} parent=59 // pred_check
          %p479 = pneg %p86
        $region66: #{tpu_custom_call.1} parent=59 // pred_check_branch
          %481 = sbr.rel (%p479) target = $region68
        $region67: #{tpu_custom_call.1} parent=59 // pred_region
          %482 = dma.done %s475, 128
        $region68: #{tpu_custom_call.1} parent=59 // pred_fallthru
          _
        // Predicated region
        $region69: #{tpu_custom_call.1} parent=59 // pred_check
          %p483 = pneg %p107
        $region70: #{tpu_custom_call.1} parent=59 // pred_check_branch
          %485 = sbr.rel (%p483) target = $region72
        $region71: #{tpu_custom_call.1} parent=59 // pred_region
          %486 = dma.done [#allocation6], 28672
        $region72: #{tpu_custom_call.1} parent=59 // pred_fallthru
          _
        // Predicated region
        $region73: #{tpu_custom_call.1} parent=59 // pred_check
          %p487 = pneg %p128
        $region74: #{tpu_custom_call.1} parent=59 // pred_check_branch
          %489 = sbr.rel (%p487) target = $region76
        $region75: #{tpu_custom_call.1} parent=59 // pred_region
          %490 = dma.done [#allocation9], 64
        $region76: #{tpu_custom_call.1} parent=59 // pred_fallthru
          _
        // Predicated region
        $region77: #{tpu_custom_call.1} parent=59 // pred_check
          %p491 = pneg %p149
        $region78: #{tpu_custom_call.1} parent=59 // pred_check_branch
          %493 = sbr.rel (%p491) target = $region80
        $region79: #{tpu_custom_call.1} parent=59 // pred_region
          %494 = dma.done [#allocation9], 8192
        $region80: #{tpu_custom_call.1} parent=59 // pred_fallthru
          _
        // Predicated region
        $region81: #{tpu_custom_call.1} parent=59 // pred_check
          %p495 = pneg %p170
        $region82: #{tpu_custom_call.1} parent=59 // pred_check_branch
          %497 = sbr.rel (%p495) target = $region84
        $region83: #{tpu_custom_call.1} parent=59 // pred_region
          %498 = dma.done [#allocation12], 32
        $region84: #{tpu_custom_call.1} parent=59 // pred_fallthru
          _
        // Predicated region
        $region85: #{tpu_custom_call.1} parent=59 // pred_check
          %p499 = pneg %p191
        $region86: #{tpu_custom_call.1} parent=59 // pred_check_branch
          %501 = sbr.rel (%p499) target = $region88
        $region87: #{tpu_custom_call.1} parent=59 // pred_region
          %502 = dma.done [#allocation12], 4096
        $region88: #{tpu_custom_call.1} parent=59 // pred_fallthru
          _
        // Predicated region
        $region89: #{tpu_custom_call.1} parent=59 // pred_check
          %p503 = pneg %p212
        $region90: #{tpu_custom_call.1} parent=59 // pred_check_branch
          %505 = sbr.rel (%p503) target = $region92
        $region91: #{tpu_custom_call.1} parent=59 // pred_region
          %506 = dma.done [#allocation15], 64
        $region92: #{tpu_custom_call.1} parent=59 // pred_fallthru
          _
        // Predicated region
        $region93: #{tpu_custom_call.1} parent=59 // pred_check
          %p507 = pneg %p233
        $region94: #{tpu_custom_call.1} parent=59 // pred_check_branch
          %509 = sbr.rel (%p507) target = $region96
        $region95: #{tpu_custom_call.1} parent=59 // pred_region
          %510 = dma.done [#allocation15], 28672
        $region96: #{tpu_custom_call.1} parent=59 // pred_fallthru
          _
        // Predicated region
        $region97: #{tpu_custom_call.1} parent=59 // pred_check
          %p511 = pneg %p254
        $region98: #{tpu_custom_call.1} parent=59 // pred_check_branch
          %513 = sbr.rel (%p511) target = $region100
        $region99: #{tpu_custom_call.1} parent=59 // pred_region
          %514 = dma.done [#allocation18], 112
        $region100: #{tpu_custom_call.1} parent=59 // pred_fallthru
          _
        %s515 = sand.u32 %s47, 1
        %s516 = scalar_lea.sflag [#allocation3], %s515
        %s517 = sand.u32 %s47, 1
        %s518 = smul.addr %s517, 56
        %s519 = scalar_lea.vmem [#allocation2], %s518
        %p520 = pneg %p60
        %p521 = pneg %p57
        %s522 = sand.u32 %s39, 1
        %s523 = scalar_lea.sflag [#allocation6], %s522
        %s524 = sand.u32 %s73, 1
        %s525 = smul.addr %s524, 8
        %s526 = scalar_lea.vmem [#allocation5], %s525
        %p527 = pneg %p86
        %p528 = pneg %p83
        %p529 = pneg %p107
        %p530 = pneg %p104
        %p531 = pneg %p128
        %p532 = pneg %p125
        %p533 = pneg %p149
        %p534 = pneg %p146
        %p535 = pneg %p170
        %p536 = pneg %p167
        %p537 = pneg %p191
        %p538 = pneg %p188
        %p539 = pneg %p212
        %p540 = pneg %p209
        %p541 = pneg %p233
        %p542 = pneg %p230
        %p543 = pneg %p254
        %p544 = pneg %p251
        %p545 = pneg %p280
        %p546 = pneg %p277
        %s547 = sand.u32 %s267, 1
        %s548 = scalar_lea.sflag [#allocation4], %s547
        %s549 = sand.u32 %s267, 1
        %s550 = smul.addr %s549, 56
        %s551 = scalar_lea.vmem [#allocation19], %s550
        %p552 = pneg %p306
        %p553 = pneg %p303
        %s554 = sand.u32 %s293, 1
        %s555 = scalar_lea.sflag [#allocation21], %s554
        %s556 = sand.u32 %s293, 1
        %s557 = smul.addr %s556, 8
        %s558 = scalar_lea.vmem [#allocation20], %s557
        %v560 = vld [vmem:[%s469] sm:$0xff]
        %v561 = vld [vmem:[%s469 + $0x8] sm:$0xff]
        %v562 = vld [vmem:[%s469 + $0x10] sm:$0xff]
        %v563 = vld [vmem:[%s469 + $0x18] sm:$0xff]
        %v564 = vld [vmem:[%s469 + $0x20] sm:$0xff]
        %v565 = vld [vmem:[%s469 + $0x28] sm:$0xff]
        %v566 = vld [vmem:[%s469 + $0x30] sm:$0xff]
        %v567 = vpack.c.bf16 %v560, %v560
        %v568 = vpack.c.bf16 %v561, %v561
        %v569 = vpack.c.bf16 %v562, %v562
        %v570 = vpack.c.bf16 %v563, %v563
        %v571 = vpack.c.bf16 %v564, %v564
        %v572 = vpack.c.bf16 %v565, %v565
        %v573 = vpack.c.bf16 %v566, %v566
        %v574 = vld [vmem:[#allocation7] sm:$0xff]
        %v575 = vld [vmem:[#allocation7 + $0x8] sm:$0xff]
        %v576 = vld [vmem:[#allocation7 + $0x10] sm:$0xff]
        %v577 = vld [vmem:[#allocation7 + $0x18] sm:$0xff]
        %v578 = vld [vmem:[#allocation7 + $0x20] sm:$0xff]
        %v579 = vld [vmem:[#allocation7 + $0x28] sm:$0xff]
        %v580 = vld [vmem:[#allocation7 + $0x30] sm:$0xff]
        %v581 = vld [vmem:[#allocation7 + $0x38] sm:$0xff]
        %v582 = vld [vmem:[#allocation7 + $0x40] sm:$0xff]
        %v583 = vld [vmem:[#allocation7 + $0x48] sm:$0xff]
        %v584 = vld [vmem:[#allocation7 + $0x50] sm:$0xff]
        %v585 = vld [vmem:[#allocation7 + $0x58] sm:$0xff]
        %v586 = vld [vmem:[#allocation7 + $0x60] sm:$0xff]
        %v587 = vld [vmem:[#allocation7 + $0x68] sm:$0xff]
        %v588 = vld [vmem:[#allocation7 + $0x70] sm:$0xff]
        %v589 = vld [vmem:[#allocation7 + $0x78] sm:$0xff]
        %v590 = vld [vmem:[#allocation7 + $0x80] sm:$0xff]
        %v591 = vld [vmem:[#allocation7 + $0x88] sm:$0xff]
        %v592 = vld [vmem:[#allocation7 + $0x90] sm:$0xff]
        %v593 = vld [vmem:[#allocation7 + $0x98] sm:$0xff]
        %v594 = vld [vmem:[#allocation7 + $0xa0] sm:$0xff]
        %v595 = vld [vmem:[#allocation7 + $0xa8] sm:$0xff]
        %v596 = vld [vmem:[#allocation7 + $0xb0] sm:$0xff]
        %v597 = vld [vmem:[#allocation7 + $0xb8] sm:$0xff]
        %v598 = vld [vmem:[#allocation7 + $0xc0] sm:$0xff]
        %v599 = vld [vmem:[#allocation7 + $0xc8] sm:$0xff]
        %v600 = vld [vmem:[#allocation7 + $0xd0] sm:$0xff]
        %v601 = vld [vmem:[#allocation7 + $0xd8] sm:$0xff]
        %v602 = vld [vmem:[#allocation7 + $0xe0] sm:$0xff]
        %v603 = vld [vmem:[#allocation7 + $0xe8] sm:$0xff]
        %v604 = vld [vmem:[#allocation7 + $0xf0] sm:$0xff]
        %v605 = vld [vmem:[#allocation7 + $0xf8] sm:$0xff]
        %v606 = vld [vmem:[#allocation7 + $0x100] sm:$0xff]
        %v607 = vld [vmem:[#allocation7 + $0x108] sm:$0xff]
        %v608 = vld [vmem:[#allocation7 + $0x110] sm:$0xff]
        %v609 = vld [vmem:[#allocation7 + $0x118] sm:$0xff]
        %v610 = vld [vmem:[#allocation7 + $0x120] sm:$0xff]
        %v611 = vld [vmem:[#allocation7 + $0x128] sm:$0xff]
        %v612 = vld [vmem:[#allocation7 + $0x130] sm:$0xff]
        %v613 = vld [vmem:[#allocation7 + $0x138] sm:$0xff]
        %v614 = vld [vmem:[#allocation7 + $0x140] sm:$0xff]
        %v615 = vld [vmem:[#allocation7 + $0x148] sm:$0xff]
        %v616 = vld [vmem:[#allocation7 + $0x150] sm:$0xff]
        %v617 = vld [vmem:[#allocation7 + $0x158] sm:$0xff]
        %v618 = vld [vmem:[#allocation7 + $0x160] sm:$0xff]
        %v619 = vld [vmem:[#allocation7 + $0x168] sm:$0xff]
        %v620 = vld [vmem:[#allocation7 + $0x170] sm:$0xff]
        %v621 = vld [vmem:[#allocation7 + $0x178] sm:$0xff]
        %v622 = vld [vmem:[#allocation7 + $0x180] sm:$0xff]
        %v623 = vld [vmem:[#allocation7 + $0x188] sm:$0xff]
        %v624 = vld [vmem:[#allocation7 + $0x190] sm:$0xff]
        %v625 = vld [vmem:[#allocation7 + $0x198] sm:$0xff]
        %v626 = vld [vmem:[#allocation7 + $0x1a0] sm:$0xff]
        %v627 = vld [vmem:[#allocation7 + $0x1a8] sm:$0xff]
        %v628 = vld [vmem:[#allocation7 + $0x1b0] sm:$0xff]
        %v629 = vld [vmem:[#allocation7 + $0x1b8] sm:$0xff]
        %v630 = vld [vmem:[#allocation7 + $0x1c0] sm:$0xff]
        %v631 = vld [vmem:[#allocation7 + $0x1c8] sm:$0xff]
        %v632 = vld [vmem:[#allocation7 + $0x1d0] sm:$0xff]
        %v633 = vld [vmem:[#allocation7 + $0x1d8] sm:$0xff]
        %v634 = vld [vmem:[#allocation7 + $0x1e0] sm:$0xff]
        %v635 = vld [vmem:[#allocation7 + $0x1e8] sm:$0xff]
        %v636 = vld [vmem:[#allocation7 + $0x1f0] sm:$0xff]
        %v637 = vld [vmem:[#allocation7 + $0x1f8] sm:$0xff]
        %v638 = vld [vmem:[#allocation7 + $0x200] sm:$0xff]
        %v639 = vld [vmem:[#allocation7 + $0x208] sm:$0xff]
        %v640 = vld [vmem:[#allocation7 + $0x210] sm:$0xff]
        %v641 = vld [vmem:[#allocation7 + $0x218] sm:$0xff]
        %v642 = vld [vmem:[#allocation7 + $0x220] sm:$0xff]
        %v643 = vld [vmem:[#allocation7 + $0x228] sm:$0xff]
        %v644 = vld [vmem:[#allocation7 + $0x230] sm:$0xff]
        %v645 = vld [vmem:[#allocation7 + $0x238] sm:$0xff]
        %v646 = vld [vmem:[#allocation7 + $0x240] sm:$0xff]
        %v647 = vld [vmem:[#allocation7 + $0x248] sm:$0xff]
        %v648 = vld [vmem:[#allocation7 + $0x250] sm:$0xff]
        %v649 = vld [vmem:[#allocation7 + $0x258] sm:$0xff]
        %v650 = vld [vmem:[#allocation7 + $0x260] sm:$0xff]
        %v651 = vld [vmem:[#allocation7 + $0x268] sm:$0xff]
        %v652 = vld [vmem:[#allocation7 + $0x270] sm:$0xff]
        %v653 = vld [vmem:[#allocation7 + $0x278] sm:$0xff]
        %v654 = vld [vmem:[#allocation7 + $0x280] sm:$0xff]
        %v655 = vld [vmem:[#allocation7 + $0x288] sm:$0xff]
        %v656 = vld [vmem:[#allocation7 + $0x290] sm:$0xff]
        %v657 = vld [vmem:[#allocation7 + $0x298] sm:$0xff]
        %v658 = vld [vmem:[#allocation7 + $0x2a0] sm:$0xff]
        %v659 = vld [vmem:[#allocation7 + $0x2a8] sm:$0xff]
        %v660 = vld [vmem:[#allocation7 + $0x2b0] sm:$0xff]
        %v661 = vld [vmem:[#allocation7 + $0x2b8] sm:$0xff]
        %v662 = vld [vmem:[#allocation7 + $0x2c0] sm:$0xff]
        %v663 = vld [vmem:[#allocation7 + $0x2c8] sm:$0xff]
        %v664 = vld [vmem:[#allocation7 + $0x2d0] sm:$0xff]
        %v665 = vld [vmem:[#allocation7 + $0x2d8] sm:$0xff]
        %v666 = vld [vmem:[#allocation7 + $0x2e0] sm:$0xff]
        %v667 = vld [vmem:[#allocation7 + $0x2e8] sm:$0xff]
        %v668 = vld [vmem:[#allocation7 + $0x2f0] sm:$0xff]
        %v669 = vld [vmem:[#allocation7 + $0x2f8] sm:$0xff]
        %v670 = vld [vmem:[#allocation7 + $0x300] sm:$0xff]
        %v671 = vld [vmem:[#allocation7 + $0x308] sm:$0xff]
        %v672 = vld [vmem:[#allocation7 + $0x310] sm:$0xff]
        %v673 = vld [vmem:[#allocation7 + $0x318] sm:$0xff]
        %v674 = vld [vmem:[#allocation7 + $0x320] sm:$0xff]
        %v675 = vld [vmem:[#allocation7 + $0x328] sm:$0xff]
        %v676 = vld [vmem:[#allocation7 + $0x330] sm:$0xff]
        %v677 = vld [vmem:[#allocation7 + $0x338] sm:$0xff]
        %v678 = vld [vmem:[#allocation7 + $0x340] sm:$0xff]
        %v679 = vld [vmem:[#allocation7 + $0x348] sm:$0xff]
        %v680 = vld [vmem:[#allocation7 + $0x350] sm:$0xff]
        %v681 = vld [vmem:[#allocation7 + $0x358] sm:$0xff]
        %v682 = vld [vmem:[#allocation7 + $0x360] sm:$0xff]
        %v683 = vld [vmem:[#allocation7 + $0x368] sm:$0xff]
        %v684 = vld [vmem:[#allocation7 + $0x370] sm:$0xff]
        %v685 = vld [vmem:[#allocation7 + $0x378] sm:$0xff]
        %v686 = vld [vmem:[#allocation7 + $0x380] sm:$0xff]
        %v687 = vld [vmem:[#allocation7 + $0x388] sm:$0xff]
        %v688 = vld [vmem:[#allocation7 + $0x390] sm:$0xff]
        %v689 = vld [vmem:[#allocation7 + $0x398] sm:$0xff]
        %v690 = vld [vmem:[#allocation7 + $0x3a0] sm:$0xff]
        %v691 = vld [vmem:[#allocation7 + $0x3a8] sm:$0xff]
        %v692 = vld [vmem:[#allocation7 + $0x3b0] sm:$0xff]
        %v693 = vld [vmem:[#allocation7 + $0x3b8] sm:$0xff]
        %v694 = vld [vmem:[#allocation7 + $0x3c0] sm:$0xff]
        %v695 = vld [vmem:[#allocation7 + $0x3c8] sm:$0xff]
        %v696 = vld [vmem:[#allocation7 + $0x3d0] sm:$0xff]
        %v697 = vld [vmem:[#allocation7 + $0x3d8] sm:$0xff]
        %v698 = vld [vmem:[#allocation7 + $0x3e0] sm:$0xff]
        %v699 = vld [vmem:[#allocation7 + $0x3e8] sm:$0xff]
        %v700 = vld [vmem:[#allocation7 + $0x3f0] sm:$0xff]
        %v701 = vld [vmem:[#allocation7 + $0x3f8] sm:$0xff]
        %v702 = vld [vmem:[#allocation7 + $0x400] sm:$0xff]
        %v703 = vld [vmem:[#allocation7 + $0x408] sm:$0xff]
        %v704 = vld [vmem:[#allocation7 + $0x410] sm:$0xff]
        %v705 = vld [vmem:[#allocation7 + $0x418] sm:$0xff]
        %v706 = vld [vmem:[#allocation7 + $0x420] sm:$0xff]
        %v707 = vld [vmem:[#allocation7 + $0x428] sm:$0xff]
        %v708 = vld [vmem:[#allocation7 + $0x430] sm:$0xff]
        %v709 = vld [vmem:[#allocation7 + $0x438] sm:$0xff]
        %v710 = vld [vmem:[#allocation7 + $0x440] sm:$0xff]
        %v711 = vld [vmem:[#allocation7 + $0x448] sm:$0xff]
        %v712 = vld [vmem:[#allocation7 + $0x450] sm:$0xff]
        %v713 = vld [vmem:[#allocation7 + $0x458] sm:$0xff]
        %v714 = vld [vmem:[#allocation7 + $0x460] sm:$0xff]
        %v715 = vld [vmem:[#allocation7 + $0x468] sm:$0xff]
        %v716 = vld [vmem:[#allocation7 + $0x470] sm:$0xff]
        %v717 = vld [vmem:[#allocation7 + $0x478] sm:$0xff]
        %v718 = vld [vmem:[#allocation7 + $0x480] sm:$0xff]
        %v719 = vld [vmem:[#allocation7 + $0x488] sm:$0xff]
        %v720 = vld [vmem:[#allocation7 + $0x490] sm:$0xff]
        %v721 = vld [vmem:[#allocation7 + $0x498] sm:$0xff]
        %v722 = vld [vmem:[#allocation7 + $0x4a0] sm:$0xff]
        %v723 = vld [vmem:[#allocation7 + $0x4a8] sm:$0xff]
        %v724 = vld [vmem:[#allocation7 + $0x4b0] sm:$0xff]
        %v725 = vld [vmem:[#allocation7 + $0x4b8] sm:$0xff]
        %v726 = vld [vmem:[#allocation7 + $0x4c0] sm:$0xff]
        %v727 = vld [vmem:[#allocation7 + $0x4c8] sm:$0xff]
        %v728 = vld [vmem:[#allocation7 + $0x4d0] sm:$0xff]
        %v729 = vld [vmem:[#allocation7 + $0x4d8] sm:$0xff]
        %v730 = vld [vmem:[#allocation7 + $0x4e0] sm:$0xff]
        %v731 = vld [vmem:[#allocation7 + $0x4e8] sm:$0xff]
        %v732 = vld [vmem:[#allocation7 + $0x4f0] sm:$0xff]
        %v733 = vld [vmem:[#allocation7 + $0x4f8] sm:$0xff]
        %v734 = vld [vmem:[#allocation7 + $0x500] sm:$0xff]
        %v735 = vld [vmem:[#allocation7 + $0x508] sm:$0xff]
        %v736 = vld [vmem:[#allocation7 + $0x510] sm:$0xff]
        %v737 = vld [vmem:[#allocation7 + $0x518] sm:$0xff]
        %v738 = vld [vmem:[#allocation7 + $0x520] sm:$0xff]
        %v739 = vld [vmem:[#allocation7 + $0x528] sm:$0xff]
        %v740 = vld [vmem:[#allocation7 + $0x530] sm:$0xff]
        %v741 = vld [vmem:[#allocation7 + $0x538] sm:$0xff]
        %v742 = vld [vmem:[#allocation7 + $0x540] sm:$0xff]
        %v743 = vld [vmem:[#allocation7 + $0x548] sm:$0xff]
        %v744 = vld [vmem:[#allocation7 + $0x550] sm:$0xff]
        %v745 = vld [vmem:[#allocation7 + $0x558] sm:$0xff]
        %v746 = vld [vmem:[#allocation7 + $0x560] sm:$0xff]
        %v747 = vld [vmem:[#allocation7 + $0x568] sm:$0xff]
        %v748 = vld [vmem:[#allocation7 + $0x570] sm:$0xff]
        %v749 = vld [vmem:[#allocation7 + $0x578] sm:$0xff]
        %v750 = vld [vmem:[#allocation7 + $0x580] sm:$0xff]
        %v751 = vld [vmem:[#allocation7 + $0x588] sm:$0xff]
        %v752 = vld [vmem:[#allocation7 + $0x590] sm:$0xff]
        %v753 = vld [vmem:[#allocation7 + $0x598] sm:$0xff]
        %v754 = vld [vmem:[#allocation7 + $0x5a0] sm:$0xff]
        %v755 = vld [vmem:[#allocation7 + $0x5a8] sm:$0xff]
        %v756 = vld [vmem:[#allocation7 + $0x5b0] sm:$0xff]
        %v757 = vld [vmem:[#allocation7 + $0x5b8] sm:$0xff]
        %v758 = vld [vmem:[#allocation7 + $0x5c0] sm:$0xff]
        %v759 = vld [vmem:[#allocation7 + $0x5c8] sm:$0xff]
        %v760 = vld [vmem:[#allocation7 + $0x5d0] sm:$0xff]
        %v761 = vld [vmem:[#allocation7 + $0x5d8] sm:$0xff]
        %v762 = vld [vmem:[#allocation7 + $0x5e0] sm:$0xff]
        %v763 = vld [vmem:[#allocation7 + $0x5e8] sm:$0xff]
        %v764 = vld [vmem:[#allocation7 + $0x5f0] sm:$0xff]
        %v765 = vld [vmem:[#allocation7 + $0x5f8] sm:$0xff]
        %v766 = vld [vmem:[#allocation7 + $0x600] sm:$0xff]
        %v767 = vld [vmem:[#allocation7 + $0x608] sm:$0xff]
        %v768 = vld [vmem:[#allocation7 + $0x610] sm:$0xff]
        %v769 = vld [vmem:[#allocation7 + $0x618] sm:$0xff]
        %v770 = vld [vmem:[#allocation7 + $0x620] sm:$0xff]
        %v771 = vld [vmem:[#allocation7 + $0x628] sm:$0xff]
        %v772 = vld [vmem:[#allocation7 + $0x630] sm:$0xff]
        %v773 = vld [vmem:[#allocation7 + $0x638] sm:$0xff]
        %v774 = vld [vmem:[#allocation7 + $0x640] sm:$0xff]
        %v775 = vld [vmem:[#allocation7 + $0x648] sm:$0xff]
        %v776 = vld [vmem:[#allocation7 + $0x650] sm:$0xff]
        %v777 = vld [vmem:[#allocation7 + $0x658] sm:$0xff]
        %v778 = vld [vmem:[#allocation7 + $0x660] sm:$0xff]
        %v779 = vld [vmem:[#allocation7 + $0x668] sm:$0xff]
        %v780 = vld [vmem:[#allocation7 + $0x670] sm:$0xff]
        %v781 = vld [vmem:[#allocation7 + $0x678] sm:$0xff]
        %v782 = vld [vmem:[#allocation7 + $0x680] sm:$0xff]
        %v783 = vld [vmem:[#allocation7 + $0x688] sm:$0xff]
        %v784 = vld [vmem:[#allocation7 + $0x690] sm:$0xff]
        %v785 = vld [vmem:[#allocation7 + $0x698] sm:$0xff]
        %v786 = vld [vmem:[#allocation7 + $0x6a0] sm:$0xff]
        %v787 = vld [vmem:[#allocation7 + $0x6a8] sm:$0xff]
        %v788 = vld [vmem:[#allocation7 + $0x6b0] sm:$0xff]
        %v789 = vld [vmem:[#allocation7 + $0x6b8] sm:$0xff]
        %v790 = vld [vmem:[#allocation7 + $0x6c0] sm:$0xff]
        %v791 = vld [vmem:[#allocation7 + $0x6c8] sm:$0xff]
        %v792 = vld [vmem:[#allocation7 + $0x6d0] sm:$0xff]
        %v793 = vld [vmem:[#allocation7 + $0x6d8] sm:$0xff]
        %v794 = vld [vmem:[#allocation7 + $0x6e0] sm:$0xff]
        %v795 = vld [vmem:[#allocation7 + $0x6e8] sm:$0xff]
        %v796 = vld [vmem:[#allocation7 + $0x6f0] sm:$0xff]
        %v797 = vld [vmem:[#allocation7 + $0x6f8] sm:$0xff]
        %v798 = vld [vmem:[#allocation8] sm:$0xf]
        %v800 = vlaneseq
        %v801 = vshrl.u32 %v800, 7
        %v802 = vsub.s32 0, %v801
        %v803 = vrot.slane %v798, %v802
        %v804 = vlaneseq
        %v805 = vshrl.u32 %v804, 7
        %v806 = vsub.s32 1, %v805
        %v807 = vrot.slane %v798, %v806
        %v808 = vlaneseq
        %v809 = vshrl.u32 %v808, 7
        %v810 = vsub.s32 2, %v809
        %v811 = vrot.slane %v798, %v810
        %v812 = vlaneseq
        %v813 = vshrl.u32 %v812, 7
        %v814 = vsub.s32 3, %v813
        %v815 = vrot.slane %v798, %v814
        %v1044 = vunpack.c.l.b16 %v574
        %v1045 = vunpack.c.h.b16 %v574
        %v1046 = vunpack.c.l.b16 %v575
        %v1047 = vunpack.c.h.b16 %v575
        %v1048 = vunpack.c.l.b16 %v576
        %v1049 = vunpack.c.h.b16 %v576
        %v1050 = vunpack.c.l.b16 %v577
        %v1051 = vunpack.c.h.b16 %v577
        %v1052 = vunpack.c.l.b16 %v578
        %v1053 = vunpack.c.h.b16 %v578
        %v1054 = vunpack.c.l.b16 %v579
        %v1055 = vunpack.c.h.b16 %v579
        %v1056 = vunpack.c.l.b16 %v580
        %v1057 = vunpack.c.h.b16 %v580
        %v1058 = vunpack.c.l.b16 %v581
        %v1059 = vunpack.c.h.b16 %v581
        %v1060 = vunpack.c.l.b16 %v582
        %v1061 = vunpack.c.h.b16 %v582
        %v1062 = vunpack.c.l.b16 %v583
        %v1063 = vunpack.c.h.b16 %v583
        %v1064 = vunpack.c.l.b16 %v584
        %v1065 = vunpack.c.h.b16 %v584
        %v1066 = vunpack.c.l.b16 %v585
        %v1067 = vunpack.c.h.b16 %v585
        %v1068 = vunpack.c.l.b16 %v586
        %v1069 = vunpack.c.h.b16 %v586
        %v1070 = vunpack.c.l.b16 %v587
        %v1071 = vunpack.c.h.b16 %v587
        %v1072 = vunpack.c.l.b16 %v588
        %v1073 = vunpack.c.h.b16 %v588
        %v1074 = vunpack.c.l.b16 %v589
        %v1075 = vunpack.c.h.b16 %v589
        %v1076 = vunpack.c.l.b16 %v590
        %v1077 = vunpack.c.h.b16 %v590
        %v1078 = vunpack.c.l.b16 %v591
        %v1079 = vunpack.c.h.b16 %v591
        %v1080 = vunpack.c.l.b16 %v592
        %v1081 = vunpack.c.h.b16 %v592
        %v1082 = vunpack.c.l.b16 %v593
        %v1083 = vunpack.c.h.b16 %v593
        %v1084 = vunpack.c.l.b16 %v594
        %v1085 = vunpack.c.h.b16 %v594
        %v1086 = vunpack.c.l.b16 %v595
        %v1087 = vunpack.c.h.b16 %v595
        %v1088 = vunpack.c.l.b16 %v596
        %v1089 = vunpack.c.h.b16 %v596
        %v1090 = vunpack.c.l.b16 %v597
        %v1091 = vunpack.c.h.b16 %v597
        %v1092 = vunpack.c.l.b16 %v598
        %v1093 = vunpack.c.h.b16 %v598
        %v1094 = vunpack.c.l.b16 %v599
        %v1095 = vunpack.c.h.b16 %v599
        %v1096 = vunpack.c.l.b16 %v600
        %v1097 = vunpack.c.h.b16 %v600
        %v1098 = vunpack.c.l.b16 %v601
        %v1099 = vunpack.c.h.b16 %v601
        %v1100 = vunpack.c.l.b16 %v602
        %v1101 = vunpack.c.h.b16 %v602
        %v1102 = vunpack.c.l.b16 %v603
        %v1103 = vunpack.c.h.b16 %v603
        %v1104 = vunpack.c.l.b16 %v604
        %v1105 = vunpack.c.h.b16 %v604
        %v1106 = vunpack.c.l.b16 %v605
        %v1107 = vunpack.c.h.b16 %v605
        %v1108 = vunpack.c.l.b16 %v606
        %v1109 = vunpack.c.h.b16 %v606
        %v1110 = vunpack.c.l.b16 %v607
        %v1111 = vunpack.c.h.b16 %v607
        %v1112 = vunpack.c.l.b16 %v608
        %v1113 = vunpack.c.h.b16 %v608
        %v1114 = vunpack.c.l.b16 %v609
        %v1115 = vunpack.c.h.b16 %v609
        %v1116 = vunpack.c.l.b16 %v610
        %v1117 = vunpack.c.h.b16 %v610
        %v1118 = vunpack.c.l.b16 %v611
        %v1119 = vunpack.c.h.b16 %v611
        %v1120 = vunpack.c.l.b16 %v612
        %v1121 = vunpack.c.h.b16 %v612
        %v1122 = vunpack.c.l.b16 %v613
        %v1123 = vunpack.c.h.b16 %v613
        %v1124 = vunpack.c.l.b16 %v614
        %v1125 = vunpack.c.h.b16 %v614
        %v1126 = vunpack.c.l.b16 %v615
        %v1127 = vunpack.c.h.b16 %v615
        %v1128 = vunpack.c.l.b16 %v616
        %v1129 = vunpack.c.h.b16 %v616
        %v1130 = vunpack.c.l.b16 %v617
        %v1131 = vunpack.c.h.b16 %v617
        %v1132 = vunpack.c.l.b16 %v618
        %v1133 = vunpack.c.h.b16 %v618
        %v1134 = vunpack.c.l.b16 %v619
        %v1135 = vunpack.c.h.b16 %v619
        %v1136 = vunpack.c.l.b16 %v620
        %v1137 = vunpack.c.h.b16 %v620
        %v1138 = vunpack.c.l.b16 %v621
        %v1139 = vunpack.c.h.b16 %v621
        %v1140 = vunpack.c.l.b16 %v622
        %v1141 = vunpack.c.h.b16 %v622
        %v1142 = vunpack.c.l.b16 %v623
        %v1143 = vunpack.c.h.b16 %v623
        %v1144 = vunpack.c.l.b16 %v624
        %v1145 = vunpack.c.h.b16 %v624
        %v1146 = vunpack.c.l.b16 %v625
        %v1147 = vunpack.c.h.b16 %v625
        %v1148 = vunpack.c.l.b16 %v626
        %v1149 = vunpack.c.h.b16 %v626
        %v1150 = vunpack.c.l.b16 %v627
        %v1151 = vunpack.c.h.b16 %v627
        %v1152 = vunpack.c.l.b16 %v628
        %v1153 = vunpack.c.h.b16 %v628
        %v1154 = vunpack.c.l.b16 %v629
        %v1155 = vunpack.c.h.b16 %v629
        %v1156 = vunpack.c.l.b16 %v630
        %v1157 = vunpack.c.h.b16 %v630
        %v1158 = vunpack.c.l.b16 %v631
        %v1159 = vunpack.c.h.b16 %v631
        %v1160 = vunpack.c.l.b16 %v632
        %v1161 = vunpack.c.h.b16 %v632
        %v1162 = vunpack.c.l.b16 %v633
        %v1163 = vunpack.c.h.b16 %v633
        %v1164 = vunpack.c.l.b16 %v634
        %v1165 = vunpack.c.h.b16 %v634
        %v1166 = vunpack.c.l.b16 %v635
        %v1167 = vunpack.c.h.b16 %v635
        %v1168 = vunpack.c.l.b16 %v636
        %v1169 = vunpack.c.h.b16 %v636
        %v1170 = vunpack.c.l.b16 %v637
        %v1171 = vunpack.c.h.b16 %v637
        %v1172 = vunpack.c.l.b16 %v638
        %v1173 = vunpack.c.h.b16 %v638
        %v1174 = vunpack.c.l.b16 %v639
        %v1175 = vunpack.c.h.b16 %v639
        %v1176 = vunpack.c.l.b16 %v640
        %v1177 = vunpack.c.h.b16 %v640
        %v1178 = vunpack.c.l.b16 %v641
        %v1179 = vunpack.c.h.b16 %v641
        %v1180 = vunpack.c.l.b16 %v642
        %v1181 = vunpack.c.h.b16 %v642
        %v1182 = vunpack.c.l.b16 %v643
        %v1183 = vunpack.c.h.b16 %v643
        %v1184 = vunpack.c.l.b16 %v644
        %v1185 = vunpack.c.h.b16 %v644
        %v1186 = vunpack.c.l.b16 %v645
        %v1187 = vunpack.c.h.b16 %v645
        %v1188 = vunpack.c.l.b16 %v646
        %v1189 = vunpack.c.h.b16 %v646
        %v1190 = vunpack.c.l.b16 %v647
        %v1191 = vunpack.c.h.b16 %v647
        %v1192 = vunpack.c.l.b16 %v648
        %v1193 = vunpack.c.h.b16 %v648
        %v1194 = vunpack.c.l.b16 %v649
        %v1195 = vunpack.c.h.b16 %v649
        %v1196 = vunpack.c.l.b16 %v650
        %v1197 = vunpack.c.h.b16 %v650
        %v1198 = vunpack.c.l.b16 %v651
        %v1199 = vunpack.c.h.b16 %v651
        %v1200 = vunpack.c.l.b16 %v652
        %v1201 = vunpack.c.h.b16 %v652
        %v1202 = vunpack.c.l.b16 %v653
        %v1203 = vunpack.c.h.b16 %v653
        %v1204 = vunpack.c.l.b16 %v654
        %v1205 = vunpack.c.h.b16 %v654
        %v1206 = vunpack.c.l.b16 %v655
        %v1207 = vunpack.c.h.b16 %v655
        %v1208 = vunpack.c.l.b16 %v656
        %v1209 = vunpack.c.h.b16 %v656
        %v1210 = vunpack.c.l.b16 %v657
        %v1211 = vunpack.c.h.b16 %v657
        %v1212 = vunpack.c.l.b16 %v658
        %v1213 = vunpack.c.h.b16 %v658
        %v1214 = vunpack.c.l.b16 %v659
        %v1215 = vunpack.c.h.b16 %v659
        %v1216 = vunpack.c.l.b16 %v660
        %v1217 = vunpack.c.h.b16 %v660
        %v1218 = vunpack.c.l.b16 %v661
        %v1219 = vunpack.c.h.b16 %v661
        %v1220 = vunpack.c.l.b16 %v662
        %v1221 = vunpack.c.h.b16 %v662
        %v1222 = vunpack.c.l.b16 %v663
        %v1223 = vunpack.c.h.b16 %v663
        %v1224 = vunpack.c.l.b16 %v664
        %v1225 = vunpack.c.h.b16 %v664
        %v1226 = vunpack.c.l.b16 %v665
        %v1227 = vunpack.c.h.b16 %v665
        %v1228 = vunpack.c.l.b16 %v666
        %v1229 = vunpack.c.h.b16 %v666
        %v1230 = vunpack.c.l.b16 %v667
        %v1231 = vunpack.c.h.b16 %v667
        %v1232 = vunpack.c.l.b16 %v668
        %v1233 = vunpack.c.h.b16 %v668
        %v1234 = vunpack.c.l.b16 %v669
        %v1235 = vunpack.c.h.b16 %v669
        %v1236 = vunpack.c.l.b16 %v670
        %v1237 = vunpack.c.h.b16 %v670
        %v1238 = vunpack.c.l.b16 %v671
        %v1239 = vunpack.c.h.b16 %v671
        %v1240 = vunpack.c.l.b16 %v672
        %v1241 = vunpack.c.h.b16 %v672
        %v1242 = vunpack.c.l.b16 %v673
        %v1243 = vunpack.c.h.b16 %v673
        %v1244 = vunpack.c.l.b16 %v674
        %v1245 = vunpack.c.h.b16 %v674
        %v1246 = vunpack.c.l.b16 %v675
        %v1247 = vunpack.c.h.b16 %v675
        %v1248 = vunpack.c.l.b16 %v676
        %v1249 = vunpack.c.h.b16 %v676
        %v1250 = vunpack.c.l.b16 %v677
        %v1251 = vunpack.c.h.b16 %v677
        %v1252 = vunpack.c.l.b16 %v678
        %v1253 = vunpack.c.h.b16 %v678
        %v1254 = vunpack.c.l.b16 %v679
        %v1255 = vunpack.c.h.b16 %v679
        %v1256 = vunpack.c.l.b16 %v680
        %v1257 = vunpack.c.h.b16 %v680
        %v1258 = vunpack.c.l.b16 %v681
        %v1259 = vunpack.c.h.b16 %v681
        %v1260 = vunpack.c.l.b16 %v682
        %v1261 = vunpack.c.h.b16 %v682
        %v1262 = vunpack.c.l.b16 %v683
        %v1263 = vunpack.c.h.b16 %v683
        %v1264 = vunpack.c.l.b16 %v684
        %v1265 = vunpack.c.h.b16 %v684
        %v1266 = vunpack.c.l.b16 %v685
        %v1267 = vunpack.c.h.b16 %v685
        %v1268 = vunpack.c.l.b16 %v686
        %v1269 = vunpack.c.h.b16 %v686
        %v1270 = vunpack.c.l.b16 %v687
        %v1271 = vunpack.c.h.b16 %v687
        %v1272 = vunpack.c.l.b16 %v688
        %v1273 = vunpack.c.h.b16 %v688
        %v1274 = vunpack.c.l.b16 %v689
        %v1275 = vunpack.c.h.b16 %v689
        %v1276 = vunpack.c.l.b16 %v690
        %v1277 = vunpack.c.h.b16 %v690
        %v1278 = vunpack.c.l.b16 %v691
        %v1279 = vunpack.c.h.b16 %v691
        %v1280 = vunpack.c.l.b16 %v692
        %v1281 = vunpack.c.h.b16 %v692
        %v1282 = vunpack.c.l.b16 %v693
        %v1283 = vunpack.c.h.b16 %v693
        %v1284 = vunpack.c.l.b16 %v694
        %v1285 = vunpack.c.h.b16 %v694
        %v1286 = vunpack.c.l.b16 %v695
        %v1287 = vunpack.c.h.b16 %v695
        %v1288 = vunpack.c.l.b16 %v696
        %v1289 = vunpack.c.h.b16 %v696
        %v1290 = vunpack.c.l.b16 %v697
        %v1291 = vunpack.c.h.b16 %v697
        %v1292 = vunpack.c.l.b16 %v698
        %v1293 = vunpack.c.h.b16 %v698
        %v1294 = vunpack.c.l.b16 %v699
        %v1295 = vunpack.c.h.b16 %v699
        %v1296 = vunpack.c.l.b16 %v700
        %v1297 = vunpack.c.h.b16 %v700
        %v1298 = vunpack.c.l.b16 %v701
        %v1299 = vunpack.c.h.b16 %v701
        %v1300 = vunpack.c.l.b16 %v702
        %v1301 = vunpack.c.h.b16 %v702
        %v1302 = vunpack.c.l.b16 %v703
        %v1303 = vunpack.c.h.b16 %v703
        %v1304 = vunpack.c.l.b16 %v704
        %v1305 = vunpack.c.h.b16 %v704
        %v1306 = vunpack.c.l.b16 %v705
        %v1307 = vunpack.c.h.b16 %v705
        %v1308 = vunpack.c.l.b16 %v706
        %v1309 = vunpack.c.h.b16 %v706
        %v1310 = vunpack.c.l.b16 %v707
        %v1311 = vunpack.c.h.b16 %v707
        %v1312 = vunpack.c.l.b16 %v708
        %v1313 = vunpack.c.h.b16 %v708
        %v1314 = vunpack.c.l.b16 %v709
        %v1315 = vunpack.c.h.b16 %v709
        %v1316 = vunpack.c.l.b16 %v710
        %v1317 = vunpack.c.h.b16 %v710
        %v1318 = vunpack.c.l.b16 %v711
        %v1319 = vunpack.c.h.b16 %v711
        %v1320 = vunpack.c.l.b16 %v712
        %v1321 = vunpack.c.h.b16 %v712
        %v1322 = vunpack.c.l.b16 %v713
        %v1323 = vunpack.c.h.b16 %v713
        %v1324 = vunpack.c.l.b16 %v714
        %v1325 = vunpack.c.h.b16 %v714
        %v1326 = vunpack.c.l.b16 %v715
        %v1327 = vunpack.c.h.b16 %v715
        %v1328 = vunpack.c.l.b16 %v716
        %v1329 = vunpack.c.h.b16 %v716
        %v1330 = vunpack.c.l.b16 %v717
        %v1331 = vunpack.c.h.b16 %v717
        %v1332 = vunpack.c.l.b16 %v718
        %v1333 = vunpack.c.h.b16 %v718
        %v1334 = vunpack.c.l.b16 %v719
        %v1335 = vunpack.c.h.b16 %v719
        %v1336 = vunpack.c.l.b16 %v720
        %v1337 = vunpack.c.h.b16 %v720
        %v1338 = vunpack.c.l.b16 %v721
        %v1339 = vunpack.c.h.b16 %v721
        %v1340 = vunpack.c.l.b16 %v722
        %v1341 = vunpack.c.h.b16 %v722
        %v1342 = vunpack.c.l.b16 %v723
        %v1343 = vunpack.c.h.b16 %v723
        %v1344 = vunpack.c.l.b16 %v724
        %v1345 = vunpack.c.h.b16 %v724
        %v1346 = vunpack.c.l.b16 %v725
        %v1347 = vunpack.c.h.b16 %v725
        %v1348 = vunpack.c.l.b16 %v726
        %v1349 = vunpack.c.h.b16 %v726
        %v1350 = vunpack.c.l.b16 %v727
        %v1351 = vunpack.c.h.b16 %v727
        %v1352 = vunpack.c.l.b16 %v728
        %v1353 = vunpack.c.h.b16 %v728
        %v1354 = vunpack.c.l.b16 %v729
        %v1355 = vunpack.c.h.b16 %v729
        %v1356 = vunpack.c.l.b16 %v730
        %v1357 = vunpack.c.h.b16 %v730
        %v1358 = vunpack.c.l.b16 %v731
        %v1359 = vunpack.c.h.b16 %v731
        %v1360 = vunpack.c.l.b16 %v732
        %v1361 = vunpack.c.h.b16 %v732
        %v1362 = vunpack.c.l.b16 %v733
        %v1363 = vunpack.c.h.b16 %v733
        %v1364 = vunpack.c.l.b16 %v734
        %v1365 = vunpack.c.h.b16 %v734
        %v1366 = vunpack.c.l.b16 %v735
        %v1367 = vunpack.c.h.b16 %v735
        %v1368 = vunpack.c.l.b16 %v736
        %v1369 = vunpack.c.h.b16 %v736
        %v1370 = vunpack.c.l.b16 %v737
        %v1371 = vunpack.c.h.b16 %v737
        %v1372 = vunpack.c.l.b16 %v738
        %v1373 = vunpack.c.h.b16 %v738
        %v1374 = vunpack.c.l.b16 %v739
        %v1375 = vunpack.c.h.b16 %v739
        %v1376 = vunpack.c.l.b16 %v740
        %v1377 = vunpack.c.h.b16 %v740
        %v1378 = vunpack.c.l.b16 %v741
        %v1379 = vunpack.c.h.b16 %v741
        %v1380 = vunpack.c.l.b16 %v742
        %v1381 = vunpack.c.h.b16 %v742
        %v1382 = vunpack.c.l.b16 %v743
        %v1383 = vunpack.c.h.b16 %v743
        %v1384 = vunpack.c.l.b16 %v744
        %v1385 = vunpack.c.h.b16 %v744
        %v1386 = vunpack.c.l.b16 %v745
        %v1387 = vunpack.c.h.b16 %v745
        %v1388 = vunpack.c.l.b16 %v746
        %v1389 = vunpack.c.h.b16 %v746
        %v1390 = vunpack.c.l.b16 %v747
        %v1391 = vunpack.c.h.b16 %v747
        %v1392 = vunpack.c.l.b16 %v748
        %v1393 = vunpack.c.h.b16 %v748
        %v1394 = vunpack.c.l.b16 %v749
        %v1395 = vunpack.c.h.b16 %v749
        %v1396 = vunpack.c.l.b16 %v750
        %v1397 = vunpack.c.h.b16 %v750
        %v1398 = vunpack.c.l.b16 %v751
        %v1399 = vunpack.c.h.b16 %v751
        %v1400 = vunpack.c.l.b16 %v752
        %v1401 = vunpack.c.h.b16 %v752
        %v1402 = vunpack.c.l.b16 %v753
        %v1403 = vunpack.c.h.b16 %v753
        %v1404 = vunpack.c.l.b16 %v754
        %v1405 = vunpack.c.h.b16 %v754
        %v1406 = vunpack.c.l.b16 %v755
        %v1407 = vunpack.c.h.b16 %v755
        %v1408 = vunpack.c.l.b16 %v756
        %v1409 = vunpack.c.h.b16 %v756
        %v1410 = vunpack.c.l.b16 %v757
        %v1411 = vunpack.c.h.b16 %v757
        %v1412 = vunpack.c.l.b16 %v758
        %v1413 = vunpack.c.h.b16 %v758
        %v1414 = vunpack.c.l.b16 %v759
        %v1415 = vunpack.c.h.b16 %v759
        %v1416 = vunpack.c.l.b16 %v760
        %v1417 = vunpack.c.h.b16 %v760
        %v1418 = vunpack.c.l.b16 %v761
        %v1419 = vunpack.c.h.b16 %v761
        %v1420 = vunpack.c.l.b16 %v762
        %v1421 = vunpack.c.h.b16 %v762
        %v1422 = vunpack.c.l.b16 %v763
        %v1423 = vunpack.c.h.b16 %v763
        %v1424 = vunpack.c.l.b16 %v764
        %v1425 = vunpack.c.h.b16 %v764
        %v1426 = vunpack.c.l.b16 %v765
        %v1427 = vunpack.c.h.b16 %v765
        %v1428 = vunpack.c.l.b16 %v766
        %v1429 = vunpack.c.h.b16 %v766
        %v1430 = vunpack.c.l.b16 %v767
        %v1431 = vunpack.c.h.b16 %v767
        %v1432 = vunpack.c.l.b16 %v768
        %v1433 = vunpack.c.h.b16 %v768
        %v1434 = vunpack.c.l.b16 %v769
        %v1435 = vunpack.c.h.b16 %v769
        %v1436 = vunpack.c.l.b16 %v770
        %v1437 = vunpack.c.h.b16 %v770
        %v1438 = vunpack.c.l.b16 %v771
        %v1439 = vunpack.c.h.b16 %v771
        %v1440 = vunpack.c.l.b16 %v772
        %v1441 = vunpack.c.h.b16 %v772
        %v1442 = vunpack.c.l.b16 %v773
        %v1443 = vunpack.c.h.b16 %v773
        %v1444 = vunpack.c.l.b16 %v774
        %v1445 = vunpack.c.h.b16 %v774
        %v1446 = vunpack.c.l.b16 %v775
        %v1447 = vunpack.c.h.b16 %v775
        %v1448 = vunpack.c.l.b16 %v776
        %v1449 = vunpack.c.h.b16 %v776
        %v1450 = vunpack.c.l.b16 %v777
        %v1451 = vunpack.c.h.b16 %v777
        %v1452 = vunpack.c.l.b16 %v778
        %v1453 = vunpack.c.h.b16 %v778
        %v1454 = vunpack.c.l.b16 %v779
        %v1455 = vunpack.c.h.b16 %v779
        %v1456 = vunpack.c.l.b16 %v780
        %v1457 = vunpack.c.h.b16 %v780
        %v1458 = vunpack.c.l.b16 %v781
        %v1459 = vunpack.c.h.b16 %v781
        %v1460 = vunpack.c.l.b16 %v782
        %v1461 = vunpack.c.h.b16 %v782
        %v1462 = vunpack.c.l.b16 %v783
        %v1463 = vunpack.c.h.b16 %v783
        %v1464 = vunpack.c.l.b16 %v784
        %v1465 = vunpack.c.h.b16 %v784
        %v1466 = vunpack.c.l.b16 %v785
        %v1467 = vunpack.c.h.b16 %v785
        %v1468 = vunpack.c.l.b16 %v786
        %v1469 = vunpack.c.h.b16 %v786
        %v1470 = vunpack.c.l.b16 %v787
        %v1471 = vunpack.c.h.b16 %v787
        %v1472 = vunpack.c.l.b16 %v788
        %v1473 = vunpack.c.h.b16 %v788
        %v1474 = vunpack.c.l.b16 %v789
        %v1475 = vunpack.c.h.b16 %v789
        %v1476 = vunpack.c.l.b16 %v790
        %v1477 = vunpack.c.h.b16 %v790
        %v1478 = vunpack.c.l.b16 %v791
        %v1479 = vunpack.c.h.b16 %v791
        %v1480 = vunpack.c.l.b16 %v792
        %v1481 = vunpack.c.h.b16 %v792
        %v1482 = vunpack.c.l.b16 %v793
        %v1483 = vunpack.c.h.b16 %v793
        %v1484 = vunpack.c.l.b16 %v794
        %v1485 = vunpack.c.h.b16 %v794
        %v1486 = vunpack.c.l.b16 %v795
        %v1487 = vunpack.c.h.b16 %v795
        %v1488 = vunpack.c.l.b16 %v796
        %v1489 = vunpack.c.h.b16 %v796
        %v1490 = vunpack.c.l.b16 %v797
        %v1491 = vunpack.c.h.b16 %v797
        %v1492 = vpack.c.b16 %v1048, %v1044
        %v1493 = vpack.c.b16 %v1049, %v1045
        %v1494 = vpack.c.b16 %v1050, %v1046
        %v1495 = vpack.c.b16 %v1051, %v1047
        %v1496 = vpack.c.b16 %v1056, %v1052
        %v1497 = vpack.c.b16 %v1057, %v1053
        %v1498 = vpack.c.b16 %v1058, %v1054
        %v1499 = vpack.c.b16 %v1059, %v1055
        %v1500 = vpack.c.b16 %v1064, %v1060
        %v1501 = vpack.c.b16 %v1065, %v1061
        %v1502 = vpack.c.b16 %v1066, %v1062
        %v1503 = vpack.c.b16 %v1067, %v1063
        %v1504 = vpack.c.b16 %v1072, %v1068
        %v1505 = vpack.c.b16 %v1073, %v1069
        %v1506 = vpack.c.b16 %v1074, %v1070
        %v1507 = vpack.c.b16 %v1075, %v1071
        %v1508 = vpack.c.b16 %v1080, %v1076
        %v1509 = vpack.c.b16 %v1081, %v1077
        %v1510 = vpack.c.b16 %v1082, %v1078
        %v1511 = vpack.c.b16 %v1083, %v1079
        %v1512 = vpack.c.b16 %v1088, %v1084
        %v1513 = vpack.c.b16 %v1089, %v1085
        %v1514 = vpack.c.b16 %v1090, %v1086
        %v1515 = vpack.c.b16 %v1091, %v1087
        %v1516 = vpack.c.b16 %v1096, %v1092
        %v1517 = vpack.c.b16 %v1097, %v1093
        %v1518 = vpack.c.b16 %v1098, %v1094
        %v1519 = vpack.c.b16 %v1099, %v1095
        %v1520 = vpack.c.b16 %v1104, %v1100
        %v1521 = vpack.c.b16 %v1105, %v1101
        %v1522 = vpack.c.b16 %v1106, %v1102
        %v1523 = vpack.c.b16 %v1107, %v1103
        %v1524 = vpack.c.b16 %v1112, %v1108
        %v1525 = vpack.c.b16 %v1113, %v1109
        %v1526 = vpack.c.b16 %v1114, %v1110
        %v1527 = vpack.c.b16 %v1115, %v1111
        %v1528 = vpack.c.b16 %v1120, %v1116
        %v1529 = vpack.c.b16 %v1121, %v1117
        %v1530 = vpack.c.b16 %v1122, %v1118
        %v1531 = vpack.c.b16 %v1123, %v1119
        %v1532 = vpack.c.b16 %v1128, %v1124
        %v1533 = vpack.c.b16 %v1129, %v1125
        %v1534 = vpack.c.b16 %v1130, %v1126
        %v1535 = vpack.c.b16 %v1131, %v1127
        %v1536 = vpack.c.b16 %v1136, %v1132
        %v1537 = vpack.c.b16 %v1137, %v1133
        %v1538 = vpack.c.b16 %v1138, %v1134
        %v1539 = vpack.c.b16 %v1139, %v1135
        %v1540 = vpack.c.b16 %v1144, %v1140
        %v1541 = vpack.c.b16 %v1145, %v1141
        %v1542 = vpack.c.b16 %v1146, %v1142
        %v1543 = vpack.c.b16 %v1147, %v1143
        %v1544 = vpack.c.b16 %v1152, %v1148
        %v1545 = vpack.c.b16 %v1153, %v1149
        %v1546 = vpack.c.b16 %v1154, %v1150
        %v1547 = vpack.c.b16 %v1155, %v1151
        %v1548 = vpack.c.b16 %v1160, %v1156
        %v1549 = vpack.c.b16 %v1161, %v1157
        %v1550 = vpack.c.b16 %v1162, %v1158
        %v1551 = vpack.c.b16 %v1163, %v1159
        %v1552 = vpack.c.b16 %v1168, %v1164
        %v1553 = vpack.c.b16 %v1169, %v1165
        %v1554 = vpack.c.b16 %v1170, %v1166
        %v1555 = vpack.c.b16 %v1171, %v1167
        %v1556 = vpack.c.b16 %v1176, %v1172
        %v1557 = vpack.c.b16 %v1177, %v1173
        %v1558 = vpack.c.b16 %v1178, %v1174
        %v1559 = vpack.c.b16 %v1179, %v1175
        %v1560 = vpack.c.b16 %v1184, %v1180
        %v1561 = vpack.c.b16 %v1185, %v1181
        %v1562 = vpack.c.b16 %v1186, %v1182
        %v1563 = vpack.c.b16 %v1187, %v1183
        %v1564 = vpack.c.b16 %v1192, %v1188
        %v1565 = vpack.c.b16 %v1193, %v1189
        %v1566 = vpack.c.b16 %v1194, %v1190
        %v1567 = vpack.c.b16 %v1195, %v1191
        %v1568 = vpack.c.b16 %v1200, %v1196
        %v1569 = vpack.c.b16 %v1201, %v1197
        %v1570 = vpack.c.b16 %v1202, %v1198
        %v1571 = vpack.c.b16 %v1203, %v1199
        %v1572 = vpack.c.b16 %v1208, %v1204
        %v1573 = vpack.c.b16 %v1209, %v1205
        %v1574 = vpack.c.b16 %v1210, %v1206
        %v1575 = vpack.c.b16 %v1211, %v1207
        %v1576 = vpack.c.b16 %v1216, %v1212
        %v1577 = vpack.c.b16 %v1217, %v1213
        %v1578 = vpack.c.b16 %v1218, %v1214
        %v1579 = vpack.c.b16 %v1219, %v1215
        %v1580 = vpack.c.b16 %v1224, %v1220
        %v1581 = vpack.c.b16 %v1225, %v1221
        %v1582 = vpack.c.b16 %v1226, %v1222
        %v1583 = vpack.c.b16 %v1227, %v1223
        %v1584 = vpack.c.b16 %v1232, %v1228
        %v1585 = vpack.c.b16 %v1233, %v1229
        %v1586 = vpack.c.b16 %v1234, %v1230
        %v1587 = vpack.c.b16 %v1235, %v1231
        %v1588 = vpack.c.b16 %v1240, %v1236
        %v1589 = vpack.c.b16 %v1241, %v1237
        %v1590 = vpack.c.b16 %v1242, %v1238
        %v1591 = vpack.c.b16 %v1243, %v1239
        %v1592 = vpack.c.b16 %v1248, %v1244
        %v1593 = vpack.c.b16 %v1249, %v1245
        %v1594 = vpack.c.b16 %v1250, %v1246
        %v1595 = vpack.c.b16 %v1251, %v1247
        %v1596 = vpack.c.b16 %v1256, %v1252
        %v1597 = vpack.c.b16 %v1257, %v1253
        %v1598 = vpack.c.b16 %v1258, %v1254
        %v1599 = vpack.c.b16 %v1259, %v1255
        %v1600 = vpack.c.b16 %v1264, %v1260
        %v1601 = vpack.c.b16 %v1265, %v1261
        %v1602 = vpack.c.b16 %v1266, %v1262
        %v1603 = vpack.c.b16 %v1267, %v1263
        %v1604 = vpack.c.b16 %v1272, %v1268
        %v1605 = vpack.c.b16 %v1273, %v1269
        %v1606 = vpack.c.b16 %v1274, %v1270
        %v1607 = vpack.c.b16 %v1275, %v1271
        %v1608 = vpack.c.b16 %v1280, %v1276
        %v1609 = vpack.c.b16 %v1281, %v1277
        %v1610 = vpack.c.b16 %v1282, %v1278
        %v1611 = vpack.c.b16 %v1283, %v1279
        %v1612 = vpack.c.b16 %v1288, %v1284
        %v1613 = vpack.c.b16 %v1289, %v1285
        %v1614 = vpack.c.b16 %v1290, %v1286
        %v1615 = vpack.c.b16 %v1291, %v1287
        %v1616 = vpack.c.b16 %v1296, %v1292
        %v1617 = vpack.c.b16 %v1297, %v1293
        %v1618 = vpack.c.b16 %v1298, %v1294
        %v1619 = vpack.c.b16 %v1299, %v1295
        %v1620 = vpack.c.b16 %v1304, %v1300
        %v1621 = vpack.c.b16 %v1305, %v1301
        %v1622 = vpack.c.b16 %v1306, %v1302
        %v1623 = vpack.c.b16 %v1307, %v1303
        %v1624 = vpack.c.b16 %v1312, %v1308
        %v1625 = vpack.c.b16 %v1313, %v1309
        %v1626 = vpack.c.b16 %v1314, %v1310
        %v1627 = vpack.c.b16 %v1315, %v1311
        %v1628 = vpack.c.b16 %v1320, %v1316
        %v1629 = vpack.c.b16 %v1321, %v1317
        %v1630 = vpack.c.b16 %v1322, %v1318
        %v1631 = vpack.c.b16 %v1323, %v1319
        %v1632 = vpack.c.b16 %v1328, %v1324
        %v1633 = vpack.c.b16 %v1329, %v1325
        %v1634 = vpack.c.b16 %v1330, %v1326
        %v1635 = vpack.c.b16 %v1331, %v1327
        %v1636 = vpack.c.b16 %v1336, %v1332
        %v1637 = vpack.c.b16 %v1337, %v1333
        %v1638 = vpack.c.b16 %v1338, %v1334
        %v1639 = vpack.c.b16 %v1339, %v1335
        %v1640 = vpack.c.b16 %v1344, %v1340
        %v1641 = vpack.c.b16 %v1345, %v1341
        %v1642 = vpack.c.b16 %v1346, %v1342
        %v1643 = vpack.c.b16 %v1347, %v1343
        %v1644 = vpack.c.b16 %v1352, %v1348
        %v1645 = vpack.c.b16 %v1353, %v1349
        %v1646 = vpack.c.b16 %v1354, %v1350
        %v1647 = vpack.c.b16 %v1355, %v1351
        %v1648 = vpack.c.b16 %v1360, %v1356
        %v1649 = vpack.c.b16 %v1361, %v1357
        %v1650 = vpack.c.b16 %v1362, %v1358
        %v1651 = vpack.c.b16 %v1363, %v1359
        %v1652 = vpack.c.b16 %v1368, %v1364
        %v1653 = vpack.c.b16 %v1369, %v1365
        %v1654 = vpack.c.b16 %v1370, %v1366
        %v1655 = vpack.c.b16 %v1371, %v1367
        %v1656 = vpack.c.b16 %v1376, %v1372
        %v1657 = vpack.c.b16 %v1377, %v1373
        %v1658 = vpack.c.b16 %v1378, %v1374
        %v1659 = vpack.c.b16 %v1379, %v1375
        %v1660 = vpack.c.b16 %v1384, %v1380
        %v1661 = vpack.c.b16 %v1385, %v1381
        %v1662 = vpack.c.b16 %v1386, %v1382
        %v1663 = vpack.c.b16 %v1387, %v1383
        %v1664 = vpack.c.b16 %v1392, %v1388
        %v1665 = vpack.c.b16 %v1393, %v1389
        %v1666 = vpack.c.b16 %v1394, %v1390
        %v1667 = vpack.c.b16 %v1395, %v1391
        %v1668 = vpack.c.b16 %v1400, %v1396
        %v1669 = vpack.c.b16 %v1401, %v1397
        %v1670 = vpack.c.b16 %v1402, %v1398
        %v1671 = vpack.c.b16 %v1403, %v1399
        %v1672 = vpack.c.b16 %v1408, %v1404
        %v1673 = vpack.c.b16 %v1409, %v1405
        %v1674 = vpack.c.b16 %v1410, %v1406
        %v1675 = vpack.c.b16 %v1411, %v1407
        %v1676 = vpack.c.b16 %v1416, %v1412
        %v1677 = vpack.c.b16 %v1417, %v1413
        %v1678 = vpack.c.b16 %v1418, %v1414
        %v1679 = vpack.c.b16 %v1419, %v1415
        %v1680 = vpack.c.b16 %v1424, %v1420
        %v1681 = vpack.c.b16 %v1425, %v1421
        %v1682 = vpack.c.b16 %v1426, %v1422
        %v1683 = vpack.c.b16 %v1427, %v1423
        %v1684 = vpack.c.b16 %v1432, %v1428
        %v1685 = vpack.c.b16 %v1433, %v1429
        %v1686 = vpack.c.b16 %v1434, %v1430
        %v1687 = vpack.c.b16 %v1435, %v1431
        %v1688 = vpack.c.b16 %v1440, %v1436
        %v1689 = vpack.c.b16 %v1441, %v1437
        %v1690 = vpack.c.b16 %v1442, %v1438
        %v1691 = vpack.c.b16 %v1443, %v1439
        %v1692 = vpack.c.b16 %v1448, %v1444
        %v1693 = vpack.c.b16 %v1449, %v1445
        %v1694 = vpack.c.b16 %v1450, %v1446
        %v1695 = vpack.c.b16 %v1451, %v1447
        %v1696 = vpack.c.b16 %v1456, %v1452
        %v1697 = vpack.c.b16 %v1457, %v1453
        %v1698 = vpack.c.b16 %v1458, %v1454
        %v1699 = vpack.c.b16 %v1459, %v1455
        %v1700 = vpack.c.b16 %v1464, %v1460
        %v1701 = vpack.c.b16 %v1465, %v1461
        %v1702 = vpack.c.b16 %v1466, %v1462
        %v1703 = vpack.c.b16 %v1467, %v1463
        %v1704 = vpack.c.b16 %v1472, %v1468
        %v1705 = vpack.c.b16 %v1473, %v1469
        %v1706 = vpack.c.b16 %v1474, %v1470
        %v1707 = vpack.c.b16 %v1475, %v1471
        %v1708 = vpack.c.b16 %v1480, %v1476
        %v1709 = vpack.c.b16 %v1481, %v1477
        %v1710 = vpack.c.b16 %v1482, %v1478
        %v1711 = vpack.c.b16 %v1483, %v1479
        %v1712 = vpack.c.b16 %v1488, %v1484
        %v1713 = vpack.c.b16 %v1489, %v1485
        %v1714 = vpack.c.b16 %v1490, %v1486
        %v1715 = vpack.c.b16 %v1491, %v1487
        %1940 = vmatprep.subr.bf16.mxu0 %v1493
        %1941 = vmatpush1.bf16.msra.mxu0 %v1492
        %1942 = vmatprep.subr.bf16.mxu0 %v1497
        %1943 = vmatpush1.bf16.msra.mxu0 %v1496
        %1944 = vmatprep.subr.bf16.mxu0 %v1501
        %1945 = vmatpush1.bf16.msra.mxu0 %v1500
        %1946 = vmatprep.subr.bf16.mxu0 %v1505
        %1947 = vmatpush1.bf16.msra.mxu0 %v1504
        %1948 = vmatprep.subr.bf16.mxu0 %v1509
        %1949 = vmatpush1.bf16.msra.mxu0 %v1508
        %1950 = vmatprep.subr.bf16.mxu0 %v1513
        %1951 = vmatpush1.bf16.msra.mxu0 %v1512
        %1952 = vmatprep.subr.bf16.mxu0 %v1517
        %1953 = vmatpush1.bf16.msra.mxu0 %v1516
        %1954 = vmatprep.subr.bf16.mxu0 %v1521
        %1955 = vmatpush1.bf16.msra.mxu0 %v1520
        %1956 = vmatprep.subr.bf16.mxu0 %v1525
        %1957 = vmatpush1.bf16.msra.mxu0 %v1524
        %1958 = vmatprep.subr.bf16.mxu0 %v1529
        %1959 = vmatpush1.bf16.msra.mxu0 %v1528
        %1960 = vmatprep.subr.bf16.mxu0 %v1533
        %1961 = vmatpush1.bf16.msra.mxu0 %v1532
        %1962 = vmatprep.subr.bf16.mxu0 %v1537
        %1963 = vmatpush1.bf16.msra.mxu0 %v1536
        %1964 = vmatprep.subr.bf16.mxu0 %v1541
        %1965 = vmatpush1.bf16.msra.mxu0 %v1540
        %1966 = vmatprep.subr.bf16.mxu0 %v1545
        %1967 = vmatpush1.bf16.msra.mxu0 %v1544
        %1968 = vmatprep.subr.bf16.mxu0 %v1549
        %1969 = vmatpush1.bf16.msra.mxu0 %v1548
        %1970 = vmatprep.subr.bf16.mxu0 %v1553
        %1971 = vmatpush1.bf16.msra.mxu0 %v1552
        %1972 = vmatprep.mubr.bf16.mxu0 %v568
        %1973 = vmatmul.mubr.bf16.gmra.mrb[0].mxu0 %v567
        %v1974 = vpop.f32.mrb[0].mxu0
        %v1975 = vadd.f32 %v803, %v1974
        %v1976 = vpop.f32.mrb[0].mxu0
        %v1977 = vadd.f32 %v807, %v1976
        %v1978 = vpop.f32.mrb[0].mxu0
        %v1979 = vpop.f32.mrb[0].mxu0
        %1980 = vdwg.mxu0
        %1981 = vmatprep.subr.bf16.mxu0 %v1557
        %1982 = vmatpush1.bf16.msra.mxu0 %v1556
        %1983 = vmatprep.subr.bf16.mxu0 %v1561
        %1984 = vmatpush1.bf16.msra.mxu0 %v1560
        %1985 = vmatprep.subr.bf16.mxu0 %v1565
        %1986 = vmatpush1.bf16.msra.mxu0 %v1564
        %1987 = vmatprep.subr.bf16.mxu0 %v1569
        %1988 = vmatpush1.bf16.msra.mxu0 %v1568
        %1989 = vmatprep.subr.bf16.mxu0 %v1573
        %1990 = vmatpush1.bf16.msra.mxu0 %v1572
        %1991 = vmatprep.subr.bf16.mxu0 %v1577
        %1992 = vmatpush1.bf16.msra.mxu0 %v1576
        %1993 = vmatprep.subr.bf16.mxu0 %v1581
        %1994 = vmatpush1.bf16.msra.mxu0 %v1580
        %1995 = vmatprep.subr.bf16.mxu0 %v1585
        %1996 = vmatpush1.bf16.msra.mxu0 %v1584
        %1997 = vmatprep.subr.bf16.mxu0 %v1589
        %1998 = vmatpush1.bf16.msra.mxu0 %v1588
        %1999 = vmatprep.subr.bf16.mxu0 %v1593
        %2000 = vmatpush1.bf16.msra.mxu0 %v1592
        %2001 = vmatprep.subr.bf16.mxu0 %v1597
        %2002 = vmatpush1.bf16.msra.mxu0 %v1596
        %2003 = vmatprep.subr.bf16.mxu0 %v1601
        %2004 = vmatpush1.bf16.msra.mxu0 %v1600
        %2005 = vmatprep.subr.bf16.mxu0 %v1605
        %2006 = vmatpush1.bf16.msra.mxu0 %v1604
        %2007 = vmatprep.subr.bf16.mxu0 %v1609
        %2008 = vmatpush1.bf16.msra.mxu0 %v1608
        %2009 = vmatprep.subr.bf16.mxu0 %v1613
        %2010 = vmatpush1.bf16.msra.mxu0 %v1612
        %2011 = vmatprep.subr.bf16.mxu0 %v1617
        %2012 = vmatpush1.bf16.msra.mxu0 %v1616
        %2013 = vmatprep.mubr.bf16.mxu0 %v570
        %2014 = vmatmul.mubr.bf16.gmra.mrb[0].mxu0 %v569
        %v2015 = vpop.f32.mrb[0].mxu0
        %v2016 = vadd.f32 %v1975, %v2015
        %v2017 = vpop.f32.mrb[0].mxu0
        %v2018 = vadd.f32 %v1977, %v2017
        %v2019 = vpop.f32.mrb[0].mxu0
        %v2020 = vpop.f32.mrb[0].mxu0
        %2021 = vdwg.mxu0
        %2022 = vmatprep.subr.bf16.mxu0 %v1621
        %2023 = vmatpush1.bf16.msra.mxu0 %v1620
        %2024 = vmatprep.subr.bf16.mxu0 %v1625
        %2025 = vmatpush1.bf16.msra.mxu0 %v1624
        %2026 = vmatprep.subr.bf16.mxu0 %v1629
        %2027 = vmatpush1.bf16.msra.mxu0 %v1628
        %2028 = vmatprep.subr.bf16.mxu0 %v1633
        %2029 = vmatpush1.bf16.msra.mxu0 %v1632
        %2030 = vmatprep.subr.bf16.mxu0 %v1637
        %2031 = vmatpush1.bf16.msra.mxu0 %v1636
        %2032 = vmatprep.subr.bf16.mxu0 %v1641
        %2033 = vmatpush1.bf16.msra.mxu0 %v1640
        %2034 = vmatprep.subr.bf16.mxu0 %v1645
        %2035 = vmatpush1.bf16.msra.mxu0 %v1644
        %2036 = vmatprep.subr.bf16.mxu0 %v1649
        %2037 = vmatpush1.bf16.msra.mxu0 %v1648
        %2038 = vmatprep.subr.bf16.mxu0 %v1653
        %2039 = vmatpush1.bf16.msra.mxu0 %v1652
        %2040 = vmatprep.subr.bf16.mxu0 %v1657
        %2041 = vmatpush1.bf16.msra.mxu0 %v1656
        %2042 = vmatprep.subr.bf16.mxu0 %v1661
        %2043 = vmatpush1.bf16.msra.mxu0 %v1660
        %2044 = vmatprep.subr.bf16.mxu0 %v1665
        %2045 = vmatpush1.bf16.msra.mxu0 %v1664
        %2046 = vmatprep.subr.bf16.mxu0 %v1669
        %2047 = vmatpush1.bf16.msra.mxu0 %v1668
        %2048 = vmatprep.subr.bf16.mxu0 %v1673
        %2049 = vmatpush1.bf16.msra.mxu0 %v1672
        %2050 = vmatprep.subr.bf16.mxu0 %v1677
        %2051 = vmatpush1.bf16.msra.mxu0 %v1676
        %2052 = vmatprep.subr.bf16.mxu0 %v1681
        %2053 = vmatpush1.bf16.msra.mxu0 %v1680
        %2054 = vmatprep.mubr.bf16.mxu0 %v572
        %2055 = vmatmul.mubr.bf16.gmra.mrb[0].mxu0 %v571
        %v2056 = vpop.f32.mrb[0].mxu0
        %v2057 = vadd.f32 %v2016, %v2056
        %v2058 = vpop.f32.mrb[0].mxu0
        %v2059 = vadd.f32 %v2018, %v2058
        %v2060 = vpop.f32.mrb[0].mxu0
        %v2061 = vpop.f32.mrb[0].mxu0
        %2062 = vdwg.mxu0
        %2063 = vmatprep.subr.bf16.mxu0 %v1685
        %2064 = vmatpush1.bf16.msra.mxu0 %v1684
        %2065 = vmatprep.subr.bf16.mxu0 %v1689
        %2066 = vmatpush1.bf16.msra.mxu0 %v1688
        %2067 = vmatprep.subr.bf16.mxu0 %v1693
        %2068 = vmatpush1.bf16.msra.mxu0 %v1692
        %2069 = vmatprep.subr.bf16.mxu0 %v1697
        %2070 = vmatpush1.bf16.msra.mxu0 %v1696
        %2071 = vmatprep.subr.bf16.mxu0 %v1701
        %2072 = vmatpush1.bf16.msra.mxu0 %v1700
        %2073 = vmatprep.subr.bf16.mxu0 %v1705
        %2074 = vmatpush1.bf16.msra.mxu0 %v1704
        %2075 = vmatprep.subr.bf16.mxu0 %v1709
        %2076 = vmatpush1.bf16.msra.mxu0 %v1708
        %2077 = vmatprep.subr.bf16.mxu0 %v1713
        %2078 = vmatpush1.bf16.msra.mxu0 %v1712
        %2079 = vmatprep.subr.bf16.mxu0 0
        %2080 = vmatpush1.bf16.msra.mxu0 0
        %2081 = vmatprep.subr.bf16.mxu0 0
        %2082 = vmatpush1.bf16.msra.mxu0 0
        %2083 = vmatprep.subr.bf16.mxu0 0
        %2084 = vmatpush1.bf16.msra.mxu0 0
        %2085 = vmatprep.subr.bf16.mxu0 0
        %2086 = vmatpush1.bf16.msra.mxu0 0
        %2087 = vmatprep.subr.bf16.mxu0 0
        %2088 = vmatpush1.bf16.msra.mxu0 0
        %2089 = vmatprep.subr.bf16.mxu0 0
        %2090 = vmatpush1.bf16.msra.mxu0 0
        %2091 = vmatprep.subr.bf16.mxu0 0
        %2092 = vmatpush1.bf16.msra.mxu0 0
        %2093 = vmatprep.subr.bf16.mxu0 0
        %2094 = vmatpush1.bf16.msra.mxu0 0
        %2095 = vmatprep.mubr.bf16.mxu0 0
        %2096 = vmatmul.mubr.bf16.gmra.mrb[0].mxu0 %v573
        %v2097 = vpop.f32.mrb[0].mxu0
        %v2098 = vadd.f32 %v2057, %v2097
        %v2099 = vpop.f32.mrb[0].mxu0
        %v2100 = vadd.f32 %v2059, %v2099
        %v2101 = vpop.f32.mrb[0].mxu0
        %v2102 = vpop.f32.mrb[0].mxu0
        %2103 = vdwg.mxu0
        %2104 = vmatprep.subr.bf16.mxu0 %v1495
        %2105 = vmatpush1.bf16.msra.mxu0 %v1494
        %2106 = vmatprep.subr.bf16.mxu0 %v1499
        %2107 = vmatpush1.bf16.msra.mxu0 %v1498
        %2108 = vmatprep.subr.bf16.mxu0 %v1503
        %2109 = vmatpush1.bf16.msra.mxu0 %v1502
        %2110 = vmatprep.subr.bf16.mxu0 %v1507
        %2111 = vmatpush1.bf16.msra.mxu0 %v1506
        %2112 = vmatprep.subr.bf16.mxu0 %v1511
        %2113 = vmatpush1.bf16.msra.mxu0 %v1510
        %2114 = vmatprep.subr.bf16.mxu0 %v1515
        %2115 = vmatpush1.bf16.msra.mxu0 %v1514
        %2116 = vmatprep.subr.bf16.mxu0 %v1519
        %2117 = vmatpush1.bf16.msra.mxu0 %v1518
        %2118 = vmatprep.subr.bf16.mxu0 %v1523
        %2119 = vmatpush1.bf16.msra.mxu0 %v1522
        %2120 = vmatprep.subr.bf16.mxu0 %v1527
        %2121 = vmatpush1.bf16.msra.mxu0 %v1526
        %2122 = vmatprep.subr.bf16.mxu0 %v1531
        %2123 = vmatpush1.bf16.msra.mxu0 %v1530
        %2124 = vmatprep.subr.bf16.mxu0 %v1535
        %2125 = vmatpush1.bf16.msra.mxu0 %v1534
        %2126 = vmatprep.subr.bf16.mxu0 %v1539
        %2127 = vmatpush1.bf16.msra.mxu0 %v1538
        %2128 = vmatprep.subr.bf16.mxu0 %v1543
        %2129 = vmatpush1.bf16.msra.mxu0 %v1542
        %2130 = vmatprep.subr.bf16.mxu0 %v1547
        %2131 = vmatpush1.bf16.msra.mxu0 %v1546
        %2132 = vmatprep.subr.bf16.mxu0 %v1551
        %2133 = vmatpush1.bf16.msra.mxu0 %v1550
        %2134 = vmatprep.subr.bf16.mxu0 %v1555
        %2135 = vmatpush1.bf16.msra.mxu0 %v1554
        %2136 = vmatprep.mubr.bf16.mxu0 %v568
        %2137 = vmatmul.mubr.bf16.gmra.mrb[0].mxu0 %v567
        %v2138 = vpop.f32.mrb[0].mxu0
        %v2139 = vadd.f32 %v811, %v2138
        %v2140 = vpop.f32.mrb[0].mxu0
        %v2141 = vadd.f32 %v815, %v2140
        %v2142 = vpop.f32.mrb[0].mxu0
        %v2143 = vpop.f32.mrb[0].mxu0
        %2144 = vdwg.mxu0
        %2145 = vmatprep.subr.bf16.mxu0 %v1559
        %2146 = vmatpush1.bf16.msra.mxu0 %v1558
        %2147 = vmatprep.subr.bf16.mxu0 %v1563
        %2148 = vmatpush1.bf16.msra.mxu0 %v1562
        %2149 = vmatprep.subr.bf16.mxu0 %v1567
        %2150 = vmatpush1.bf16.msra.mxu0 %v1566
        %2151 = vmatprep.subr.bf16.mxu0 %v1571
        %2152 = vmatpush1.bf16.msra.mxu0 %v1570
        %2153 = vmatprep.subr.bf16.mxu0 %v1575
        %2154 = vmatpush1.bf16.msra.mxu0 %v1574
        %2155 = vmatprep.subr.bf16.mxu0 %v1579
        %2156 = vmatpush1.bf16.msra.mxu0 %v1578
        %2157 = vmatprep.subr.bf16.mxu0 %v1583
        %2158 = vmatpush1.bf16.msra.mxu0 %v1582
        %2159 = vmatprep.subr.bf16.mxu0 %v1587
        %2160 = vmatpush1.bf16.msra.mxu0 %v1586
        %2161 = vmatprep.subr.bf16.mxu0 %v1591
        %2162 = vmatpush1.bf16.msra.mxu0 %v1590
        %2163 = vmatprep.subr.bf16.mxu0 %v1595
        %2164 = vmatpush1.bf16.msra.mxu0 %v1594
        %2165 = vmatprep.subr.bf16.mxu0 %v1599
        %2166 = vmatpush1.bf16.msra.mxu0 %v1598
        %2167 = vmatprep.subr.bf16.mxu0 %v1603
        %2168 = vmatpush1.bf16.msra.mxu0 %v1602
        %2169 = vmatprep.subr.bf16.mxu0 %v1607
        %2170 = vmatpush1.bf16.msra.mxu0 %v1606
        %2171 = vmatprep.subr.bf16.mxu0 %v1611
        %2172 = vmatpush1.bf16.msra.mxu0 %v1610
        %2173 = vmatprep.subr.bf16.mxu0 %v1615
        %2174 = vmatpush1.bf16.msra.mxu0 %v1614
        %2175 = vmatprep.subr.bf16.mxu0 %v1619
        %2176 = vmatpush1.bf16.msra.mxu0 %v1618
        %2177 = vmatprep.mubr.bf16.mxu0 %v570
        %2178 = vmatmul.mubr.bf16.gmra.mrb[0].mxu0 %v569
        %v2179 = vpop.f32.mrb[0].mxu0
        %v2180 = vadd.f32 %v2139, %v2179
        %v2181 = vpop.f32.mrb[0].mxu0
        %v2182 = vadd.f32 %v2141, %v2181
        %v2183 = vpop.f32.mrb[0].mxu0
        %v2184 = vpop.f32.mrb[0].mxu0
        %2185 = vdwg.mxu0
        %2186 = vmatprep.subr.bf16.mxu0 %v1623
        %2187 = vmatpush1.bf16.msra.mxu0 %v1622
        %2188 = vmatprep.subr.bf16.mxu0 %v1627
        %2189 = vmatpush1.bf16.msra.mxu0 %v1626
        %2190 = vmatprep.subr.bf16.mxu0 %v1631
        %2191 = vmatpush1.bf16.msra.mxu0 %v1630
        %2192 = vmatprep.subr.bf16.mxu0 %v1635
        %2193 = vmatpush1.bf16.msra.mxu0 %v1634
        %2194 = vmatprep.subr.bf16.mxu0 %v1639
        %2195 = vmatpush1.bf16.msra.mxu0 %v1638
        %2196 = vmatprep.subr.bf16.mxu0 %v1643
        %2197 = vmatpush1.bf16.msra.mxu0 %v1642
        %2198 = vmatprep.subr.bf16.mxu0 %v1647
        %2199 = vmatpush1.bf16.msra.mxu0 %v1646
        %2200 = vmatprep.subr.bf16.mxu0 %v1651
        %2201 = vmatpush1.bf16.msra.mxu0 %v1650
        %2202 = vmatprep.subr.bf16.mxu0 %v1655
        %2203 = vmatpush1.bf16.msra.mxu0 %v1654
        %2204 = vmatprep.subr.bf16.mxu0 %v1659
        %2205 = vmatpush1.bf16.msra.mxu0 %v1658
        %2206 = vmatprep.subr.bf16.mxu0 %v1663
        %2207 = vmatpush1.bf16.msra.mxu0 %v1662
        %2208 = vmatprep.subr.bf16.mxu0 %v1667
        %2209 = vmatpush1.bf16.msra.mxu0 %v1666
        %2210 = vmatprep.subr.bf16.mxu0 %v1671
        %2211 = vmatpush1.bf16.msra.mxu0 %v1670
        %2212 = vmatprep.subr.bf16.mxu0 %v1675
        %2213 = vmatpush1.bf16.msra.mxu0 %v1674
        %2214 = vmatprep.subr.bf16.mxu0 %v1679
        %2215 = vmatpush1.bf16.msra.mxu0 %v1678
        %2216 = vmatprep.subr.bf16.mxu0 %v1683
        %2217 = vmatpush1.bf16.msra.mxu0 %v1682
        %2218 = vmatprep.mubr.bf16.mxu0 %v572
        %2219 = vmatmul.mubr.bf16.gmra.mrb[0].mxu0 %v571
        %v2220 = vpop.f32.mrb[0].mxu0
        %v2221 = vadd.f32 %v2180, %v2220
        %v2222 = vpop.f32.mrb[0].mxu0
        %v2223 = vadd.f32 %v2182, %v2222
        %v2224 = vpop.f32.mrb[0].mxu0
        %v2225 = vpop.f32.mrb[0].mxu0
        %2226 = vdwg.mxu0
        %2227 = vmatprep.subr.bf16.mxu0 %v1687
        %2228 = vmatpush1.bf16.msra.mxu0 %v1686
        %2229 = vmatprep.subr.bf16.mxu0 %v1691
        %2230 = vmatpush1.bf16.msra.mxu0 %v1690
        %2231 = vmatprep.subr.bf16.mxu0 %v1695
        %2232 = vmatpush1.bf16.msra.mxu0 %v1694
        %2233 = vmatprep.subr.bf16.mxu0 %v1699
        %2234 = vmatpush1.bf16.msra.mxu0 %v1698
        %2235 = vmatprep.subr.bf16.mxu0 %v1703
        %2236 = vmatpush1.bf16.msra.mxu0 %v1702
        %2237 = vmatprep.subr.bf16.mxu0 %v1707
        %2238 = vmatpush1.bf16.msra.mxu0 %v1706
        %2239 = vmatprep.subr.bf16.mxu0 %v1711
        %2240 = vmatpush1.bf16.msra.mxu0 %v1710
        %2241 = vmatprep.subr.bf16.mxu0 %v1715
        %2242 = vmatpush1.bf16.msra.mxu0 %v1714
        %2243 = vmatprep.subr.bf16.mxu0 0
        %2244 = vmatpush1.bf16.msra.mxu0 0
        %2245 = vmatprep.subr.bf16.mxu0 0
        %2246 = vmatpush1.bf16.msra.mxu0 0
        %2247 = vmatprep.subr.bf16.mxu0 0
        %2248 = vmatpush1.bf16.msra.mxu0 0
        %2249 = vmatprep.subr.bf16.mxu0 0
        %2250 = vmatpush1.bf16.msra.mxu0 0
        %2251 = vmatprep.subr.bf16.mxu0 0
        %2252 = vmatpush1.bf16.msra.mxu0 0
        %2253 = vmatprep.subr.bf16.mxu0 0
        %2254 = vmatpush1.bf16.msra.mxu0 0
        %2255 = vmatprep.subr.bf16.mxu0 0
        %2256 = vmatpush1.bf16.msra.mxu0 0
        %2257 = vmatprep.subr.bf16.mxu0 0
        %2258 = vmatpush1.bf16.msra.mxu0 0
        %2259 = vmatprep.mubr.bf16.mxu0 0
        %2260 = vmatmul.mubr.bf16.gmra.mrb[0].mxu0 %v573
        %v2261 = vpop.f32.mrb[0].mxu0
        %v2262 = vadd.f32 %v2221, %v2261
        %v2263 = vpop.f32.mrb[0].mxu0
        %v2264 = vadd.f32 %v2223, %v2263
        %v2265 = vpop.f32.mrb[0].mxu0
        %v2266 = vpop.f32.mrb[0].mxu0
        %2267 = vdwg.mxu0
        %v2268 = vmax.f32 %v2098, 0.0
        %v2269 = vmax.f32 %v2100, 0.0
        %v2270 = vmax.f32 %v2262, 0.0
        %v2271 = vmax.f32 %v2264, 0.0
        %v2272 = vpack.c.bf16 %v2268, %v2268
        %v2273 = vpack.c.bf16 %v2269, %v2269
        %v2274 = vpack.c.bf16 %v2270, %v2270
        %v2275 = vpack.c.bf16 %v2271, %v2271
        %v2276 = vld [vmem:[#allocation10] sm:$0xff]
        %v2277 = vld [vmem:[#allocation10 + $0x8] sm:$0xff]
        %v2278 = vld [vmem:[#allocation10 + $0x10] sm:$0xff]
        %v2279 = vld [vmem:[#allocation10 + $0x18] sm:$0xff]
        %v2280 = vld [vmem:[#allocation10 + $0x20] sm:$0xff]
        %v2281 = vld [vmem:[#allocation10 + $0x28] sm:$0xff]
        %v2282 = vld [vmem:[#allocation10 + $0x30] sm:$0xff]
        %v2283 = vld [vmem:[#allocation10 + $0x38] sm:$0xff]
        %v2284 = vld [vmem:[#allocation10 + $0x40] sm:$0xff]
        %v2285 = vld [vmem:[#allocation10 + $0x48] sm:$0xff]
        %v2286 = vld [vmem:[#allocation10 + $0x50] sm:$0xff]
        %v2287 = vld [vmem:[#allocation10 + $0x58] sm:$0xff]
        %v2288 = vld [vmem:[#allocation10 + $0x60] sm:$0xff]
        %v2289 = vld [vmem:[#allocation10 + $0x68] sm:$0xff]
        %v2290 = vld [vmem:[#allocation10 + $0x70] sm:$0xff]
        %v2291 = vld [vmem:[#allocation10 + $0x78] sm:$0xff]
        %v2292 = vld [vmem:[#allocation10 + $0x80] sm:$0xff]
        %v2293 = vld [vmem:[#allocation10 + $0x88] sm:$0xff]
        %v2294 = vld [vmem:[#allocation10 + $0x90] sm:$0xff]
        %v2295 = vld [vmem:[#allocation10 + $0x98] sm:$0xff]
        %v2296 = vld [vmem:[#allocation10 + $0xa0] sm:$0xff]
        %v2297 = vld [vmem:[#allocation10 + $0xa8] sm:$0xff]
        %v2298 = vld [vmem:[#allocation10 + $0xb0] sm:$0xff]
        %v2299 = vld [vmem:[#allocation10 + $0xb8] sm:$0xff]
        %v2300 = vld [vmem:[#allocation10 + $0xc0] sm:$0xff]
        %v2301 = vld [vmem:[#allocation10 + $0xc8] sm:$0xff]
        %v2302 = vld [vmem:[#allocation10 + $0xd0] sm:$0xff]
        %v2303 = vld [vmem:[#allocation10 + $0xd8] sm:$0xff]
        %v2304 = vld [vmem:[#allocation10 + $0xe0] sm:$0xff]
        %v2305 = vld [vmem:[#allocation10 + $0xe8] sm:$0xff]
        %v2306 = vld [vmem:[#allocation10 + $0xf0] sm:$0xff]
        %v2307 = vld [vmem:[#allocation10 + $0xf8] sm:$0xff]
        %v2308 = vld [vmem:[#allocation10 + $0x100] sm:$0xff]
        %v2309 = vld [vmem:[#allocation10 + $0x108] sm:$0xff]
        %v2310 = vld [vmem:[#allocation10 + $0x110] sm:$0xff]
        %v2311 = vld [vmem:[#allocation10 + $0x118] sm:$0xff]
        %v2312 = vld [vmem:[#allocation10 + $0x120] sm:$0xff]
        %v2313 = vld [vmem:[#allocation10 + $0x128] sm:$0xff]
        %v2314 = vld [vmem:[#allocation10 + $0x130] sm:$0xff]
        %v2315 = vld [vmem:[#allocation10 + $0x138] sm:$0xff]
        %v2316 = vld [vmem:[#allocation10 + $0x140] sm:$0xff]
        %v2317 = vld [vmem:[#allocation10 + $0x148] sm:$0xff]
        %v2318 = vld [vmem:[#allocation10 + $0x150] sm:$0xff]
        %v2319 = vld [vmem:[#allocation10 + $0x158] sm:$0xff]
        %v2320 = vld [vmem:[#allocation10 + $0x160] sm:$0xff]
        %v2321 = vld [vmem:[#allocation10 + $0x168] sm:$0xff]
        %v2322 = vld [vmem:[#allocation10 + $0x170] sm:$0xff]
        %v2323 = vld [vmem:[#allocation10 + $0x178] sm:$0xff]
        %v2324 = vld [vmem:[#allocation10 + $0x180] sm:$0xff]
        %v2325 = vld [vmem:[#allocation10 + $0x188] sm:$0xff]
        %v2326 = vld [vmem:[#allocation10 + $0x190] sm:$0xff]
        %v2327 = vld [vmem:[#allocation10 + $0x198] sm:$0xff]
        %v2328 = vld [vmem:[#allocation10 + $0x1a0] sm:$0xff]
        %v2329 = vld [vmem:[#allocation10 + $0x1a8] sm:$0xff]
        %v2330 = vld [vmem:[#allocation10 + $0x1b0] sm:$0xff]
        %v2331 = vld [vmem:[#allocation10 + $0x1b8] sm:$0xff]
        %v2332 = vld [vmem:[#allocation10 + $0x1c0] sm:$0xff]
        %v2333 = vld [vmem:[#allocation10 + $0x1c8] sm:$0xff]
        %v2334 = vld [vmem:[#allocation10 + $0x1d0] sm:$0xff]
        %v2335 = vld [vmem:[#allocation10 + $0x1d8] sm:$0xff]
        %v2336 = vld [vmem:[#allocation10 + $0x1e0] sm:$0xff]
        %v2337 = vld [vmem:[#allocation10 + $0x1e8] sm:$0xff]
        %v2338 = vld [vmem:[#allocation10 + $0x1f0] sm:$0xff]
        %v2339 = vld [vmem:[#allocation10 + $0x1f8] sm:$0xff]
        %v2340 = vld [vmem:[#allocation11] sm:$0x3]
        %v2342 = vlaneseq
        %v2343 = vshrl.u32 %v2342, 7
        %v2344 = vsub.s32 0, %v2343
        %v2345 = vrot.slane %v2340, %v2344
        %v2346 = vlaneseq
        %v2347 = vshrl.u32 %v2346, 7
        %v2348 = vsub.s32 1, %v2347
        %v2349 = vrot.slane %v2340, %v2348
        %v2416 = vunpack.c.l.b16 %v2276
        %v2417 = vunpack.c.h.b16 %v2276
        %v2418 = vunpack.c.l.b16 %v2277
        %v2419 = vunpack.c.h.b16 %v2277
        %v2420 = vunpack.c.l.b16 %v2278
        %v2421 = vunpack.c.h.b16 %v2278
        %v2422 = vunpack.c.l.b16 %v2279
        %v2423 = vunpack.c.h.b16 %v2279
        %v2424 = vunpack.c.l.b16 %v2280
        %v2425 = vunpack.c.h.b16 %v2280
        %v2426 = vunpack.c.l.b16 %v2281
        %v2427 = vunpack.c.h.b16 %v2281
        %v2428 = vunpack.c.l.b16 %v2282
        %v2429 = vunpack.c.h.b16 %v2282
        %v2430 = vunpack.c.l.b16 %v2283
        %v2431 = vunpack.c.h.b16 %v2283
        %v2432 = vunpack.c.l.b16 %v2284
        %v2433 = vunpack.c.h.b16 %v2284
        %v2434 = vunpack.c.l.b16 %v2285
        %v2435 = vunpack.c.h.b16 %v2285
        %v2436 = vunpack.c.l.b16 %v2286
        %v2437 = vunpack.c.h.b16 %v2286
        %v2438 = vunpack.c.l.b16 %v2287
        %v2439 = vunpack.c.h.b16 %v2287
        %v2440 = vunpack.c.l.b16 %v2288
        %v2441 = vunpack.c.h.b16 %v2288
        %v2442 = vunpack.c.l.b16 %v2289
        %v2443 = vunpack.c.h.b16 %v2289
        %v2444 = vunpack.c.l.b16 %v2290
        %v2445 = vunpack.c.h.b16 %v2290
        %v2446 = vunpack.c.l.b16 %v2291
        %v2447 = vunpack.c.h.b16 %v2291
        %v2448 = vunpack.c.l.b16 %v2292
        %v2449 = vunpack.c.h.b16 %v2292
        %v2450 = vunpack.c.l.b16 %v2293
        %v2451 = vunpack.c.h.b16 %v2293
        %v2452 = vunpack.c.l.b16 %v2294
        %v2453 = vunpack.c.h.b16 %v2294
        %v2454 = vunpack.c.l.b16 %v2295
        %v2455 = vunpack.c.h.b16 %v2295
        %v2456 = vunpack.c.l.b16 %v2296
        %v2457 = vunpack.c.h.b16 %v2296
        %v2458 = vunpack.c.l.b16 %v2297
        %v2459 = vunpack.c.h.b16 %v2297
        %v2460 = vunpack.c.l.b16 %v2298
        %v2461 = vunpack.c.h.b16 %v2298
        %v2462 = vunpack.c.l.b16 %v2299
        %v2463 = vunpack.c.h.b16 %v2299
        %v2464 = vunpack.c.l.b16 %v2300
        %v2465 = vunpack.c.h.b16 %v2300
        %v2466 = vunpack.c.l.b16 %v2301
        %v2467 = vunpack.c.h.b16 %v2301
        %v2468 = vunpack.c.l.b16 %v2302
        %v2469 = vunpack.c.h.b16 %v2302
        %v2470 = vunpack.c.l.b16 %v2303
        %v2471 = vunpack.c.h.b16 %v2303
        %v2472 = vunpack.c.l.b16 %v2304
        %v2473 = vunpack.c.h.b16 %v2304
        %v2474 = vunpack.c.l.b16 %v2305
        %v2475 = vunpack.c.h.b16 %v2305
        %v2476 = vunpack.c.l.b16 %v2306
        %v2477 = vunpack.c.h.b16 %v2306
        %v2478 = vunpack.c.l.b16 %v2307
        %v2479 = vunpack.c.h.b16 %v2307
        %v2480 = vunpack.c.l.b16 %v2308
        %v2481 = vunpack.c.h.b16 %v2308
        %v2482 = vunpack.c.l.b16 %v2309
        %v2483 = vunpack.c.h.b16 %v2309
        %v2484 = vunpack.c.l.b16 %v2310
        %v2485 = vunpack.c.h.b16 %v2310
        %v2486 = vunpack.c.l.b16 %v2311
        %v2487 = vunpack.c.h.b16 %v2311
        %v2488 = vunpack.c.l.b16 %v2312
        %v2489 = vunpack.c.h.b16 %v2312
        %v2490 = vunpack.c.l.b16 %v2313
        %v2491 = vunpack.c.h.b16 %v2313
        %v2492 = vunpack.c.l.b16 %v2314
        %v2493 = vunpack.c.h.b16 %v2314
        %v2494 = vunpack.c.l.b16 %v2315
        %v2495 = vunpack.c.h.b16 %v2315
        %v2496 = vunpack.c.l.b16 %v2316
        %v2497 = vunpack.c.h.b16 %v2316
        %v2498 = vunpack.c.l.b16 %v2317
        %v2499 = vunpack.c.h.b16 %v2317
        %v2500 = vunpack.c.l.b16 %v2318
        %v2501 = vunpack.c.h.b16 %v2318
        %v2502 = vunpack.c.l.b16 %v2319
        %v2503 = vunpack.c.h.b16 %v2319
        %v2504 = vunpack.c.l.b16 %v2320
        %v2505 = vunpack.c.h.b16 %v2320
        %v2506 = vunpack.c.l.b16 %v2321
        %v2507 = vunpack.c.h.b16 %v2321
        %v2508 = vunpack.c.l.b16 %v2322
        %v2509 = vunpack.c.h.b16 %v2322
        %v2510 = vunpack.c.l.b16 %v2323
        %v2511 = vunpack.c.h.b16 %v2323
        %v2512 = vunpack.c.l.b16 %v2324
        %v2513 = vunpack.c.h.b16 %v2324
        %v2514 = vunpack.c.l.b16 %v2325
        %v2515 = vunpack.c.h.b16 %v2325
        %v2516 = vunpack.c.l.b16 %v2326
        %v2517 = vunpack.c.h.b16 %v2326
        %v2518 = vunpack.c.l.b16 %v2327
        %v2519 = vunpack.c.h.b16 %v2327
        %v2520 = vunpack.c.l.b16 %v2328
        %v2521 = vunpack.c.h.b16 %v2328
        %v2522 = vunpack.c.l.b16 %v2329
        %v2523 = vunpack.c.h.b16 %v2329
        %v2524 = vunpack.c.l.b16 %v2330
        %v2525 = vunpack.c.h.b16 %v2330
        %v2526 = vunpack.c.l.b16 %v2331
        %v2527 = vunpack.c.h.b16 %v2331
        %v2528 = vunpack.c.l.b16 %v2332
        %v2529 = vunpack.c.h.b16 %v2332
        %v2530 = vunpack.c.l.b16 %v2333
        %v2531 = vunpack.c.h.b16 %v2333
        %v2532 = vunpack.c.l.b16 %v2334
        %v2533 = vunpack.c.h.b16 %v2334
        %v2534 = vunpack.c.l.b16 %v2335
        %v2535 = vunpack.c.h.b16 %v2335
        %v2536 = vunpack.c.l.b16 %v2336
        %v2537 = vunpack.c.h.b16 %v2336
        %v2538 = vunpack.c.l.b16 %v2337
        %v2539 = vunpack.c.h.b16 %v2337
        %v2540 = vunpack.c.l.b16 %v2338
        %v2541 = vunpack.c.h.b16 %v2338
        %v2542 = vunpack.c.l.b16 %v2339
        %v2543 = vunpack.c.h.b16 %v2339
        %v2544 = vpack.c.b16 %v2418, %v2416
        %v2545 = vpack.c.b16 %v2419, %v2417
        %v2546 = vpack.c.b16 %v2422, %v2420
        %v2547 = vpack.c.b16 %v2423, %v2421
        %v2548 = vpack.c.b16 %v2426, %v2424
        %v2549 = vpack.c.b16 %v2427, %v2425
        %v2550 = vpack.c.b16 %v2430, %v2428
        %v2551 = vpack.c.b16 %v2431, %v2429
        %v2552 = vpack.c.b16 %v2434, %v2432
        %v2553 = vpack.c.b16 %v2435, %v2433
        %v2554 = vpack.c.b16 %v2438, %v2436
        %v2555 = vpack.c.b16 %v2439, %v2437
        %v2556 = vpack.c.b16 %v2442, %v2440
        %v2557 = vpack.c.b16 %v2443, %v2441
        %v2558 = vpack.c.b16 %v2446, %v2444
        %v2559 = vpack.c.b16 %v2447, %v2445
        %v2560 = vpack.c.b16 %v2450, %v2448
        %v2561 = vpack.c.b16 %v2451, %v2449
        %v2562 = vpack.c.b16 %v2454, %v2452
        %v2563 = vpack.c.b16 %v2455, %v2453
        %v2564 = vpack.c.b16 %v2458, %v2456
        %v2565 = vpack.c.b16 %v2459, %v2457
        %v2566 = vpack.c.b16 %v2462, %v2460
        %v2567 = vpack.c.b16 %v2463, %v2461
        %v2568 = vpack.c.b16 %v2466, %v2464
        %v2569 = vpack.c.b16 %v2467, %v2465
        %v2570 = vpack.c.b16 %v2470, %v2468
        %v2571 = vpack.c.b16 %v2471, %v2469
        %v2572 = vpack.c.b16 %v2474, %v2472
        %v2573 = vpack.c.b16 %v2475, %v2473
        %v2574 = vpack.c.b16 %v2478, %v2476
        %v2575 = vpack.c.b16 %v2479, %v2477
        %v2576 = vpack.c.b16 %v2482, %v2480
        %v2577 = vpack.c.b16 %v2483, %v2481
        %v2578 = vpack.c.b16 %v2486, %v2484
        %v2579 = vpack.c.b16 %v2487, %v2485
        %v2580 = vpack.c.b16 %v2490, %v2488
        %v2581 = vpack.c.b16 %v2491, %v2489
        %v2582 = vpack.c.b16 %v2494, %v2492
        %v2583 = vpack.c.b16 %v2495, %v2493
        %v2584 = vpack.c.b16 %v2498, %v2496
        %v2585 = vpack.c.b16 %v2499, %v2497
        %v2586 = vpack.c.b16 %v2502, %v2500
        %v2587 = vpack.c.b16 %v2503, %v2501
        %v2588 = vpack.c.b16 %v2506, %v2504
        %v2589 = vpack.c.b16 %v2507, %v2505
        %v2590 = vpack.c.b16 %v2510, %v2508
        %v2591 = vpack.c.b16 %v2511, %v2509
        %v2592 = vpack.c.b16 %v2514, %v2512
        %v2593 = vpack.c.b16 %v2515, %v2513
        %v2594 = vpack.c.b16 %v2518, %v2516
        %v2595 = vpack.c.b16 %v2519, %v2517
        %v2596 = vpack.c.b16 %v2522, %v2520
        %v2597 = vpack.c.b16 %v2523, %v2521
        %v2598 = vpack.c.b16 %v2526, %v2524
        %v2599 = vpack.c.b16 %v2527, %v2525
        %v2600 = vpack.c.b16 %v2530, %v2528
        %v2601 = vpack.c.b16 %v2531, %v2529
        %v2602 = vpack.c.b16 %v2534, %v2532
        %v2603 = vpack.c.b16 %v2535, %v2533
        %v2604 = vpack.c.b16 %v2538, %v2536
        %v2605 = vpack.c.b16 %v2539, %v2537
        %v2606 = vpack.c.b16 %v2542, %v2540
        %v2607 = vpack.c.b16 %v2543, %v2541
        %2672 = vmatprep.subr.bf16.mxu0 %v2545
        %2673 = vmatpush1.bf16.msra.mxu0 %v2544
        %2674 = vmatprep.subr.bf16.mxu0 %v2547
        %2675 = vmatpush1.bf16.msra.mxu0 %v2546
        %2676 = vmatprep.subr.bf16.mxu0 %v2549
        %2677 = vmatpush1.bf16.msra.mxu0 %v2548
        %2678 = vmatprep.subr.bf16.mxu0 %v2551
        %2679 = vmatpush1.bf16.msra.mxu0 %v2550
        %2680 = vmatprep.subr.bf16.mxu0 %v2553
        %2681 = vmatpush1.bf16.msra.mxu0 %v2552
        %2682 = vmatprep.subr.bf16.mxu0 %v2555
        %2683 = vmatpush1.bf16.msra.mxu0 %v2554
        %2684 = vmatprep.subr.bf16.mxu0 %v2557
        %2685 = vmatpush1.bf16.msra.mxu0 %v2556
        %2686 = vmatprep.subr.bf16.mxu0 %v2559
        %2687 = vmatpush1.bf16.msra.mxu0 %v2558
        %2688 = vmatprep.subr.bf16.mxu0 %v2561
        %2689 = vmatpush1.bf16.msra.mxu0 %v2560
        %2690 = vmatprep.subr.bf16.mxu0 %v2563
        %2691 = vmatpush1.bf16.msra.mxu0 %v2562
        %2692 = vmatprep.subr.bf16.mxu0 %v2565
        %2693 = vmatpush1.bf16.msra.mxu0 %v2564
        %2694 = vmatprep.subr.bf16.mxu0 %v2567
        %2695 = vmatpush1.bf16.msra.mxu0 %v2566
        %2696 = vmatprep.subr.bf16.mxu0 %v2569
        %2697 = vmatpush1.bf16.msra.mxu0 %v2568
        %2698 = vmatprep.subr.bf16.mxu0 %v2571
        %2699 = vmatpush1.bf16.msra.mxu0 %v2570
        %2700 = vmatprep.subr.bf16.mxu0 %v2573
        %2701 = vmatpush1.bf16.msra.mxu0 %v2572
        %2702 = vmatprep.subr.bf16.mxu0 %v2575
        %2703 = vmatpush1.bf16.msra.mxu0 %v2574
        %2704 = vmatprep.mubr.bf16.mxu0 %v2273
        %2705 = vmatmul.mubr.bf16.gmra.mrb[0].mxu0 %v2272
        %v2706 = vpop.f32.mrb[0].mxu0
        %v2707 = vadd.f32 %v2345, %v2706
        %v2708 = vpop.f32.mrb[0].mxu0
        %v2709 = vadd.f32 %v2349, %v2708
        %v2710 = vpop.f32.mrb[0].mxu0
        %v2711 = vpop.f32.mrb[0].mxu0
        %2712 = vdwg.mxu0
        %2713 = vmatprep.subr.bf16.mxu0 %v2577
        %2714 = vmatpush1.bf16.msra.mxu0 %v2576
        %2715 = vmatprep.subr.bf16.mxu0 %v2579
        %2716 = vmatpush1.bf16.msra.mxu0 %v2578
        %2717 = vmatprep.subr.bf16.mxu0 %v2581
        %2718 = vmatpush1.bf16.msra.mxu0 %v2580
        %2719 = vmatprep.subr.bf16.mxu0 %v2583
        %2720 = vmatpush1.bf16.msra.mxu0 %v2582
        %2721 = vmatprep.subr.bf16.mxu0 %v2585
        %2722 = vmatpush1.bf16.msra.mxu0 %v2584
        %2723 = vmatprep.subr.bf16.mxu0 %v2587
        %2724 = vmatpush1.bf16.msra.mxu0 %v2586
        %2725 = vmatprep.subr.bf16.mxu0 %v2589
        %2726 = vmatpush1.bf16.msra.mxu0 %v2588
        %2727 = vmatprep.subr.bf16.mxu0 %v2591
        %2728 = vmatpush1.bf16.msra.mxu0 %v2590
        %2729 = vmatprep.subr.bf16.mxu0 %v2593
        %2730 = vmatpush1.bf16.msra.mxu0 %v2592
        %2731 = vmatprep.subr.bf16.mxu0 %v2595
        %2732 = vmatpush1.bf16.msra.mxu0 %v2594
        %2733 = vmatprep.subr.bf16.mxu0 %v2597
        %2734 = vmatpush1.bf16.msra.mxu0 %v2596
        %2735 = vmatprep.subr.bf16.mxu0 %v2599
        %2736 = vmatpush1.bf16.msra.mxu0 %v2598
        %2737 = vmatprep.subr.bf16.mxu0 %v2601
        %2738 = vmatpush1.bf16.msra.mxu0 %v2600
        %2739 = vmatprep.subr.bf16.mxu0 %v2603
        %2740 = vmatpush1.bf16.msra.mxu0 %v2602
        %2741 = vmatprep.subr.bf16.mxu0 %v2605
        %2742 = vmatpush1.bf16.msra.mxu0 %v2604
        %2743 = vmatprep.subr.bf16.mxu0 %v2607
        %2744 = vmatpush1.bf16.msra.mxu0 %v2606
        %2745 = vmatprep.mubr.bf16.mxu0 %v2275
        %2746 = vmatmul.mubr.bf16.gmra.mrb[0].mxu0 %v2274
        %v2747 = vpop.f32.mrb[0].mxu0
        %v2748 = vadd.f32 %v2707, %v2747
        %v2749 = vpop.f32.mrb[0].mxu0
        %v2750 = vadd.f32 %v2709, %v2749
        %v2751 = vpop.f32.mrb[0].mxu0
        %v2752 = vpop.f32.mrb[0].mxu0
        %2753 = vdwg.mxu0
        %v2754 = vmul.f32 %v2750, 1.442695
        %v2755 = vpow.pop %v2754
        %v2756 = vld [vmem:[%s478] sm:$0xff]
        %v2757 = vmul.f32 %v2755, %v2756
        %v2758 = vadd.f32 %v2748, %v2757
        %v2759 = vpack.c.bf16 %v2758, %v2758
        %v2760 = vld [vmem:[#allocation13] sm:$0xff]
        %v2761 = vld [vmem:[#allocation13 + $0x8] sm:$0xff]
        %v2762 = vld [vmem:[#allocation13 + $0x10] sm:$0xff]
        %v2763 = vld [vmem:[#allocation13 + $0x18] sm:$0xff]
        %v2764 = vld [vmem:[#allocation13 + $0x20] sm:$0xff]
        %v2765 = vld [vmem:[#allocation13 + $0x28] sm:$0xff]
        %v2766 = vld [vmem:[#allocation13 + $0x30] sm:$0xff]
        %v2767 = vld [vmem:[#allocation13 + $0x38] sm:$0xff]
        %v2768 = vld [vmem:[#allocation13 + $0x40] sm:$0xff]
        %v2769 = vld [vmem:[#allocation13 + $0x48] sm:$0xff]
        %v2770 = vld [vmem:[#allocation13 + $0x50] sm:$0xff]
        %v2771 = vld [vmem:[#allocation13 + $0x58] sm:$0xff]
        %v2772 = vld [vmem:[#allocation13 + $0x60] sm:$0xff]
        %v2773 = vld [vmem:[#allocation13 + $0x68] sm:$0xff]
        %v2774 = vld [vmem:[#allocation13 + $0x70] sm:$0xff]
        %v2775 = vld [vmem:[#allocation13 + $0x78] sm:$0xff]
        %v2776 = vld [vmem:[#allocation13 + $0x80] sm:$0xff]
        %v2777 = vld [vmem:[#allocation13 + $0x88] sm:$0xff]
        %v2778 = vld [vmem:[#allocation13 + $0x90] sm:$0xff]
        %v2779 = vld [vmem:[#allocation13 + $0x98] sm:$0xff]
        %v2780 = vld [vmem:[#allocation13 + $0xa0] sm:$0xff]
        %v2781 = vld [vmem:[#allocation13 + $0xa8] sm:$0xff]
        %v2782 = vld [vmem:[#allocation13 + $0xb0] sm:$0xff]
        %v2783 = vld [vmem:[#allocation13 + $0xb8] sm:$0xff]
        %v2784 = vld [vmem:[#allocation13 + $0xc0] sm:$0xff]
        %v2785 = vld [vmem:[#allocation13 + $0xc8] sm:$0xff]
        %v2786 = vld [vmem:[#allocation13 + $0xd0] sm:$0xff]
        %v2787 = vld [vmem:[#allocation13 + $0xd8] sm:$0xff]
        %v2788 = vld [vmem:[#allocation13 + $0xe0] sm:$0xff]
        %v2789 = vld [vmem:[#allocation13 + $0xe8] sm:$0xff]
        %v2790 = vld [vmem:[#allocation13 + $0xf0] sm:$0xff]
        %v2791 = vld [vmem:[#allocation13 + $0xf8] sm:$0xff]
        %v2792 = vld [vmem:[#allocation14] sm:$0xf]
        %v2794 = vlaneseq
        %v2795 = vshrl.u32 %v2794, 7
        %v2796 = vsub.s32 0, %v2795
        %v2797 = vrot.slane %v2792, %v2796
        %v2798 = vlaneseq
        %v2799 = vshrl.u32 %v2798, 7
        %v2800 = vsub.s32 1, %v2799
        %v2801 = vrot.slane %v2792, %v2800
        %v2802 = vlaneseq
        %v2803 = vshrl.u32 %v2802, 7
        %v2804 = vsub.s32 2, %v2803
        %v2805 = vrot.slane %v2792, %v2804
        %v2806 = vlaneseq
        %v2807 = vshrl.u32 %v2806, 7
        %v2808 = vsub.s32 3, %v2807
        %v2809 = vrot.slane %v2792, %v2808
        %v2846 = vunpack.c.l.b16 %v2760
        %v2847 = vunpack.c.h.b16 %v2760
        %v2848 = vunpack.c.l.b16 %v2761
        %v2849 = vunpack.c.h.b16 %v2761
        %v2850 = vunpack.c.l.b16 %v2762
        %v2851 = vunpack.c.h.b16 %v2762
        %v2852 = vunpack.c.l.b16 %v2763
        %v2853 = vunpack.c.h.b16 %v2763
        %v2854 = vunpack.c.l.b16 %v2764
        %v2855 = vunpack.c.h.b16 %v2764
        %v2856 = vunpack.c.l.b16 %v2765
        %v2857 = vunpack.c.h.b16 %v2765
        %v2858 = vunpack.c.l.b16 %v2766
        %v2859 = vunpack.c.h.b16 %v2766
        %v2860 = vunpack.c.l.b16 %v2767
        %v2861 = vunpack.c.h.b16 %v2767
        %v2862 = vunpack.c.l.b16 %v2768
        %v2863 = vunpack.c.h.b16 %v2768
        %v2864 = vunpack.c.l.b16 %v2769
        %v2865 = vunpack.c.h.b16 %v2769
        %v2866 = vunpack.c.l.b16 %v2770
        %v2867 = vunpack.c.h.b16 %v2770
        %v2868 = vunpack.c.l.b16 %v2771
        %v2869 = vunpack.c.h.b16 %v2771
        %v2870 = vunpack.c.l.b16 %v2772
        %v2871 = vunpack.c.h.b16 %v2772
        %v2872 = vunpack.c.l.b16 %v2773
        %v2873 = vunpack.c.h.b16 %v2773
        %v2874 = vunpack.c.l.b16 %v2774
        %v2875 = vunpack.c.h.b16 %v2774
        %v2876 = vunpack.c.l.b16 %v2775
        %v2877 = vunpack.c.h.b16 %v2775
        %v2878 = vunpack.c.l.b16 %v2776
        %v2879 = vunpack.c.h.b16 %v2776
        %v2880 = vunpack.c.l.b16 %v2777
        %v2881 = vunpack.c.h.b16 %v2777
        %v2882 = vunpack.c.l.b16 %v2778
        %v2883 = vunpack.c.h.b16 %v2778
        %v2884 = vunpack.c.l.b16 %v2779
        %v2885 = vunpack.c.h.b16 %v2779
        %v2886 = vunpack.c.l.b16 %v2780
        %v2887 = vunpack.c.h.b16 %v2780
        %v2888 = vunpack.c.l.b16 %v2781
        %v2889 = vunpack.c.h.b16 %v2781
        %v2890 = vunpack.c.l.b16 %v2782
        %v2891 = vunpack.c.h.b16 %v2782
        %v2892 = vunpack.c.l.b16 %v2783
        %v2893 = vunpack.c.h.b16 %v2783
        %v2894 = vunpack.c.l.b16 %v2784
        %v2895 = vunpack.c.h.b16 %v2784
        %v2896 = vunpack.c.l.b16 %v2785
        %v2897 = vunpack.c.h.b16 %v2785
        %v2898 = vunpack.c.l.b16 %v2786
        %v2899 = vunpack.c.h.b16 %v2786
        %v2900 = vunpack.c.l.b16 %v2787
        %v2901 = vunpack.c.h.b16 %v2787
        %v2902 = vunpack.c.l.b16 %v2788
        %v2903 = vunpack.c.h.b16 %v2788
        %v2904 = vunpack.c.l.b16 %v2789
        %v2905 = vunpack.c.h.b16 %v2789
        %v2906 = vunpack.c.l.b16 %v2790
        %v2907 = vunpack.c.h.b16 %v2790
        %v2908 = vunpack.c.l.b16 %v2791
        %v2909 = vunpack.c.h.b16 %v2791
        %v2910 = vpack.c.b16 %v2850, %v2846
        %v2911 = vpack.c.b16 %v2851, %v2847
        %v2912 = vpack.c.b16 %v2852, %v2848
        %v2913 = vpack.c.b16 %v2853, %v2849
        %v2914 = vpack.c.b16 %v2858, %v2854
        %v2915 = vpack.c.b16 %v2859, %v2855
        %v2916 = vpack.c.b16 %v2860, %v2856
        %v2917 = vpack.c.b16 %v2861, %v2857
        %v2918 = vpack.c.b16 %v2866, %v2862
        %v2919 = vpack.c.b16 %v2867, %v2863
        %v2920 = vpack.c.b16 %v2868, %v2864
        %v2921 = vpack.c.b16 %v2869, %v2865
        %v2922 = vpack.c.b16 %v2874, %v2870
        %v2923 = vpack.c.b16 %v2875, %v2871
        %v2924 = vpack.c.b16 %v2876, %v2872
        %v2925 = vpack.c.b16 %v2877, %v2873
        %v2926 = vpack.c.b16 %v2882, %v2878
        %v2927 = vpack.c.b16 %v2883, %v2879
        %v2928 = vpack.c.b16 %v2884, %v2880
        %v2929 = vpack.c.b16 %v2885, %v2881
        %v2930 = vpack.c.b16 %v2890, %v2886
        %v2931 = vpack.c.b16 %v2891, %v2887
        %v2932 = vpack.c.b16 %v2892, %v2888
        %v2933 = vpack.c.b16 %v2893, %v2889
        %v2934 = vpack.c.b16 %v2898, %v2894
        %v2935 = vpack.c.b16 %v2899, %v2895
        %v2936 = vpack.c.b16 %v2900, %v2896
        %v2937 = vpack.c.b16 %v2901, %v2897
        %v2938 = vpack.c.b16 %v2906, %v2902
        %v2939 = vpack.c.b16 %v2907, %v2903
        %v2940 = vpack.c.b16 %v2908, %v2904
        %v2941 = vpack.c.b16 %v2909, %v2905
        %2974 = vmatprep.subr.bf16.mxu0 %v2911
        %2975 = vmatpush1.bf16.msra.mxu0 %v2910
        %2976 = vmatprep.subr.bf16.mxu0 %v2915
        %2977 = vmatpush1.bf16.msra.mxu0 %v2914
        %2978 = vmatprep.subr.bf16.mxu0 %v2919
        %2979 = vmatpush1.bf16.msra.mxu0 %v2918
        %2980 = vmatprep.subr.bf16.mxu0 %v2923
        %2981 = vmatpush1.bf16.msra.mxu0 %v2922
        %2982 = vmatprep.subr.bf16.mxu0 %v2927
        %2983 = vmatpush1.bf16.msra.mxu0 %v2926
        %2984 = vmatprep.subr.bf16.mxu0 %v2931
        %2985 = vmatpush1.bf16.msra.mxu0 %v2930
        %2986 = vmatprep.subr.bf16.mxu0 %v2935
        %2987 = vmatpush1.bf16.msra.mxu0 %v2934
        %2988 = vmatprep.subr.bf16.mxu0 %v2939
        %2989 = vmatpush1.bf16.msra.mxu0 %v2938
        %2990 = vmatprep.subr.bf16.mxu0 0
        %2991 = vmatpush1.bf16.msra.mxu0 0
        %2992 = vmatprep.subr.bf16.mxu0 0
        %2993 = vmatpush1.bf16.msra.mxu0 0
        %2994 = vmatprep.subr.bf16.mxu0 0
        %2995 = vmatpush1.bf16.msra.mxu0 0
        %2996 = vmatprep.subr.bf16.mxu0 0
        %2997 = vmatpush1.bf16.msra.mxu0 0
        %2998 = vmatprep.subr.bf16.mxu0 0
        %2999 = vmatpush1.bf16.msra.mxu0 0
        %3000 = vmatprep.subr.bf16.mxu0 0
        %3001 = vmatpush1.bf16.msra.mxu0 0
        %3002 = vmatprep.subr.bf16.mxu0 0
        %3003 = vmatpush1.bf16.msra.mxu0 0
        %3004 = vmatprep.subr.bf16.mxu0 0
        %3005 = vmatpush1.bf16.msra.mxu0 0
        %3006 = vmatprep.mubr.bf16.mxu0 0
        %3007 = vmatmul.mubr.bf16.gmra.mrb[0].mxu0 %v2759
        %v3008 = vpop.f32.mrb[0].mxu0
        %v3009 = vadd.f32 %v2797, %v3008
        %v3010 = vpop.f32.mrb[0].mxu0
        %v3011 = vadd.f32 %v2801, %v3010
        %v3012 = vpop.f32.mrb[0].mxu0
        %v3013 = vpop.f32.mrb[0].mxu0
        %3014 = vdwg.mxu0
        %3015 = vmatprep.subr.bf16.mxu0 %v2913
        %3016 = vmatpush1.bf16.msra.mxu0 %v2912
        %3017 = vmatprep.subr.bf16.mxu0 %v2917
        %3018 = vmatpush1.bf16.msra.mxu0 %v2916
        %3019 = vmatprep.subr.bf16.mxu0 %v2921
        %3020 = vmatpush1.bf16.msra.mxu0 %v2920
        %3021 = vmatprep.subr.bf16.mxu0 %v2925
        %3022 = vmatpush1.bf16.msra.mxu0 %v2924
        %3023 = vmatprep.subr.bf16.mxu0 %v2929
        %3024 = vmatpush1.bf16.msra.mxu0 %v2928
        %3025 = vmatprep.subr.bf16.mxu0 %v2933
        %3026 = vmatpush1.bf16.msra.mxu0 %v2932
        %3027 = vmatprep.subr.bf16.mxu0 %v2937
        %3028 = vmatpush1.bf16.msra.mxu0 %v2936
        %3029 = vmatprep.subr.bf16.mxu0 %v2941
        %3030 = vmatpush1.bf16.msra.mxu0 %v2940
        %3031 = vmatprep.subr.bf16.mxu0 0
        %3032 = vmatpush1.bf16.msra.mxu0 0
        %3033 = vmatprep.subr.bf16.mxu0 0
        %3034 = vmatpush1.bf16.msra.mxu0 0
        %3035 = vmatprep.subr.bf16.mxu0 0
        %3036 = vmatpush1.bf16.msra.mxu0 0
        %3037 = vmatprep.subr.bf16.mxu0 0
        %3038 = vmatpush1.bf16.msra.mxu0 0
        %3039 = vmatprep.subr.bf16.mxu0 0
        %3040 = vmatpush1.bf16.msra.mxu0 0
        %3041 = vmatprep.subr.bf16.mxu0 0
        %3042 = vmatpush1.bf16.msra.mxu0 0
        %3043 = vmatprep.subr.bf16.mxu0 0
        %3044 = vmatpush1.bf16.msra.mxu0 0
        %3045 = vmatprep.subr.bf16.mxu0 0
        %3046 = vmatpush1.bf16.msra.mxu0 0
        %3047 = vmatprep.mubr.bf16.mxu0 0
        %3048 = vmatmul.mubr.bf16.gmra.mrb[0].mxu0 %v2759
        %v3049 = vpop.f32.mrb[0].mxu0
        %v3050 = vadd.f32 %v2805, %v3049
        %v3051 = vpop.f32.mrb[0].mxu0
        %v3052 = vadd.f32 %v2809, %v3051
        %v3053 = vpop.f32.mrb[0].mxu0
        %v3054 = vpop.f32.mrb[0].mxu0
        %3055 = vdwg.mxu0
        %v3056 = vmax.f32 %v3009, 0.0
        %v3057 = vmax.f32 %v3011, 0.0
        %v3058 = vmax.f32 %v3050, 0.0
        %v3059 = vmax.f32 %v3052, 0.0
        %v3060 = vpack.c.bf16 %v3056, %v3056
        %v3061 = vpack.c.bf16 %v3057, %v3057
        %v3062 = vpack.c.bf16 %v3058, %v3058
        %v3063 = vpack.c.bf16 %v3059, %v3059
        %v3064 = vld [vmem:[#allocation16] sm:$0xff]
        %v3065 = vld [vmem:[#allocation16 + $0x8] sm:$0xff]
        %v3066 = vld [vmem:[#allocation16 + $0x10] sm:$0xff]
        %v3067 = vld [vmem:[#allocation16 + $0x18] sm:$0xf]
        %v3068 = vld [vmem:[#allocation16 + $0x1c] sm:$0xff]
        %v3069 = vld [vmem:[#allocation16 + $0x24] sm:$0xff]
        %v3070 = vld [vmem:[#allocation16 + $0x2c] sm:$0xff]
        %v3071 = vld [vmem:[#allocation16 + $0x34] sm:$0xf]
        %v3072 = vld [vmem:[#allocation16 + $0x38] sm:$0xff]
        %v3073 = vld [vmem:[#allocation16 + $0x40] sm:$0xff]
        %v3074 = vld [vmem:[#allocation16 + $0x48] sm:$0xff]
        %v3075 = vld [vmem:[#allocation16 + $0x50] sm:$0xf]
        %v3076 = vld [vmem:[#allocation16 + $0x54] sm:$0xff]
        %v3077 = vld [vmem:[#allocation16 + $0x5c] sm:$0xff]
        %v3078 = vld [vmem:[#allocation16 + $0x64] sm:$0xff]
        %v3079 = vld [vmem:[#allocation16 + $0x6c] sm:$0xf]
        %v3080 = vld [vmem:[#allocation16 + $0x70] sm:$0xff]
        %v3081 = vld [vmem:[#allocation16 + $0x78] sm:$0xff]
        %v3082 = vld [vmem:[#allocation16 + $0x80] sm:$0xff]
        %v3083 = vld [vmem:[#allocation16 + $0x88] sm:$0xf]
        %v3084 = vld [vmem:[#allocation16 + $0x8c] sm:$0xff]
        %v3085 = vld [vmem:[#allocation16 + $0x94] sm:$0xff]
        %v3086 = vld [vmem:[#allocation16 + $0x9c] sm:$0xff]
        %v3087 = vld [vmem:[#allocation16 + $0xa4] sm:$0xf]
        %v3088 = vld [vmem:[#allocation16 + $0xa8] sm:$0xff]
        %v3089 = vld [vmem:[#allocation16 + $0xb0] sm:$0xff]
        %v3090 = vld [vmem:[#allocation16 + $0xb8] sm:$0xff]
        %v3091 = vld [vmem:[#allocation16 + $0xc0] sm:$0xf]
        %v3092 = vld [vmem:[#allocation16 + $0xc4] sm:$0xff]
        %v3093 = vld [vmem:[#allocation16 + $0xcc] sm:$0xff]
        %v3094 = vld [vmem:[#allocation16 + $0xd4] sm:$0xff]
        %v3095 = vld [vmem:[#allocation16 + $0xdc] sm:$0xf]
        %v3096 = vld [vmem:[#allocation16 + $0xe0] sm:$0xff]
        %v3097 = vld [vmem:[#allocation16 + $0xe8] sm:$0xff]
        %v3098 = vld [vmem:[#allocation16 + $0xf0] sm:$0xff]
        %v3099 = vld [vmem:[#allocation16 + $0xf8] sm:$0xf]
        %v3100 = vld [vmem:[#allocation16 + $0xfc] sm:$0xff]
        %v3101 = vld [vmem:[#allocation16 + $0x104] sm:$0xff]
        %v3102 = vld [vmem:[#allocation16 + $0x10c] sm:$0xff]
        %v3103 = vld [vmem:[#allocation16 + $0x114] sm:$0xf]
        %v3104 = vld [vmem:[#allocation16 + $0x118] sm:$0xff]
        %v3105 = vld [vmem:[#allocation16 + $0x120] sm:$0xff]
        %v3106 = vld [vmem:[#allocation16 + $0x128] sm:$0xff]
        %v3107 = vld [vmem:[#allocation16 + $0x130] sm:$0xf]
        %v3108 = vld [vmem:[#allocation16 + $0x134] sm:$0xff]
        %v3109 = vld [vmem:[#allocation16 + $0x13c] sm:$0xff]
        %v3110 = vld [vmem:[#allocation16 + $0x144] sm:$0xff]
        %v3111 = vld [vmem:[#allocation16 + $0x14c] sm:$0xf]
        %v3112 = vld [vmem:[#allocation16 + $0x150] sm:$0xff]
        %v3113 = vld [vmem:[#allocation16 + $0x158] sm:$0xff]
        %v3114 = vld [vmem:[#allocation16 + $0x160] sm:$0xff]
        %v3115 = vld [vmem:[#allocation16 + $0x168] sm:$0xf]
        %v3116 = vld [vmem:[#allocation16 + $0x16c] sm:$0xff]
        %v3117 = vld [vmem:[#allocation16 + $0x174] sm:$0xff]
        %v3118 = vld [vmem:[#allocation16 + $0x17c] sm:$0xff]
        %v3119 = vld [vmem:[#allocation16 + $0x184] sm:$0xf]
        %v3120 = vld [vmem:[#allocation16 + $0x188] sm:$0xff]
        %v3121 = vld [vmem:[#allocation16 + $0x190] sm:$0xff]
        %v3122 = vld [vmem:[#allocation16 + $0x198] sm:$0xff]
        %v3123 = vld [vmem:[#allocation16 + $0x1a0] sm:$0xf]
        %v3124 = vld [vmem:[#allocation16 + $0x1a4] sm:$0xff]
        %v3125 = vld [vmem:[#allocation16 + $0x1ac] sm:$0xff]
        %v3126 = vld [vmem:[#allocation16 + $0x1b4] sm:$0xff]
        %v3127 = vld [vmem:[#allocation16 + $0x1bc] sm:$0xf]
        %v3128 = vld [vmem:[#allocation16 + $0x1c0] sm:$0xff]
        %v3129 = vld [vmem:[#allocation16 + $0x1c8] sm:$0xff]
        %v3130 = vld [vmem:[#allocation16 + $0x1d0] sm:$0xff]
        %v3131 = vld [vmem:[#allocation16 + $0x1d8] sm:$0xf]
        %v3132 = vld [vmem:[#allocation16 + $0x1dc] sm:$0xff]
        %v3133 = vld [vmem:[#allocation16 + $0x1e4] sm:$0xff]
        %v3134 = vld [vmem:[#allocation16 + $0x1ec] sm:$0xff]
        %v3135 = vld [vmem:[#allocation16 + $0x1f4] sm:$0xf]
        %v3136 = vld [vmem:[#allocation16 + $0x1f8] sm:$0xff]
        %v3137 = vld [vmem:[#allocation16 + $0x200] sm:$0xff]
        %v3138 = vld [vmem:[#allocation16 + $0x208] sm:$0xff]
        %v3139 = vld [vmem:[#allocation16 + $0x210] sm:$0xf]
        %v3140 = vld [vmem:[#allocation16 + $0x214] sm:$0xff]
        %v3141 = vld [vmem:[#allocation16 + $0x21c] sm:$0xff]
        %v3142 = vld [vmem:[#allocation16 + $0x224] sm:$0xff]
        %v3143 = vld [vmem:[#allocation16 + $0x22c] sm:$0xf]
        %v3144 = vld [vmem:[#allocation16 + $0x230] sm:$0xff]
        %v3145 = vld [vmem:[#allocation16 + $0x238] sm:$0xff]
        %v3146 = vld [vmem:[#allocation16 + $0x240] sm:$0xff]
        %v3147 = vld [vmem:[#allocation16 + $0x248] sm:$0xf]
        %v3148 = vld [vmem:[#allocation16 + $0x24c] sm:$0xff]
        %v3149 = vld [vmem:[#allocation16 + $0x254] sm:$0xff]
        %v3150 = vld [vmem:[#allocation16 + $0x25c] sm:$0xff]
        %v3151 = vld [vmem:[#allocation16 + $0x264] sm:$0xf]
        %v3152 = vld [vmem:[#allocation16 + $0x268] sm:$0xff]
        %v3153 = vld [vmem:[#allocation16 + $0x270] sm:$0xff]
        %v3154 = vld [vmem:[#allocation16 + $0x278] sm:$0xff]
        %v3155 = vld [vmem:[#allocation16 + $0x280] sm:$0xf]
        %v3156 = vld [vmem:[#allocation16 + $0x284] sm:$0xff]
        %v3157 = vld [vmem:[#allocation16 + $0x28c] sm:$0xff]
        %v3158 = vld [vmem:[#allocation16 + $0x294] sm:$0xff]
        %v3159 = vld [vmem:[#allocation16 + $0x29c] sm:$0xf]
        %v3160 = vld [vmem:[#allocation16 + $0x2a0] sm:$0xff]
        %v3161 = vld [vmem:[#allocation16 + $0x2a8] sm:$0xff]
        %v3162 = vld [vmem:[#allocation16 + $0x2b0] sm:$0xff]
        %v3163 = vld [vmem:[#allocation16 + $0x2b8] sm:$0xf]
        %v3164 = vld [vmem:[#allocation16 + $0x2bc] sm:$0xff]
        %v3165 = vld [vmem:[#allocation16 + $0x2c4] sm:$0xff]
        %v3166 = vld [vmem:[#allocation16 + $0x2cc] sm:$0xff]
        %v3167 = vld [vmem:[#allocation16 + $0x2d4] sm:$0xf]
        %v3168 = vld [vmem:[#allocation16 + $0x2d8] sm:$0xff]
        %v3169 = vld [vmem:[#allocation16 + $0x2e0] sm:$0xff]
        %v3170 = vld [vmem:[#allocation16 + $0x2e8] sm:$0xff]
        %v3171 = vld [vmem:[#allocation16 + $0x2f0] sm:$0xf]
        %v3172 = vld [vmem:[#allocation16 + $0x2f4] sm:$0xff]
        %v3173 = vld [vmem:[#allocation16 + $0x2fc] sm:$0xff]
        %v3174 = vld [vmem:[#allocation16 + $0x304] sm:$0xff]
        %v3175 = vld [vmem:[#allocation16 + $0x30c] sm:$0xf]
        %v3176 = vld [vmem:[#allocation16 + $0x310] sm:$0xff]
        %v3177 = vld [vmem:[#allocation16 + $0x318] sm:$0xff]
        %v3178 = vld [vmem:[#allocation16 + $0x320] sm:$0xff]
        %v3179 = vld [vmem:[#allocation16 + $0x328] sm:$0xf]
        %v3180 = vld [vmem:[#allocation16 + $0x32c] sm:$0xff]
        %v3181 = vld [vmem:[#allocation16 + $0x334] sm:$0xff]
        %v3182 = vld [vmem:[#allocation16 + $0x33c] sm:$0xff]
        %v3183 = vld [vmem:[#allocation16 + $0x344] sm:$0xf]
        %v3184 = vld [vmem:[#allocation16 + $0x348] sm:$0xff]
        %v3185 = vld [vmem:[#allocation16 + $0x350] sm:$0xff]
        %v3186 = vld [vmem:[#allocation16 + $0x358] sm:$0xff]
        %v3187 = vld [vmem:[#allocation16 + $0x360] sm:$0xf]
        %v3188 = vld [vmem:[#allocation16 + $0x364] sm:$0xff]
        %v3189 = vld [vmem:[#allocation16 + $0x36c] sm:$0xff]
        %v3190 = vld [vmem:[#allocation16 + $0x374] sm:$0xff]
        %v3191 = vld [vmem:[#allocation16 + $0x37c] sm:$0xf]
        %v3192 = vld [vmem:[#allocation16 + $0x380] sm:$0xff]
        %v3193 = vld [vmem:[#allocation16 + $0x388] sm:$0xff]
        %v3194 = vld [vmem:[#allocation16 + $0x390] sm:$0xff]
        %v3195 = vld [vmem:[#allocation16 + $0x398] sm:$0xf]
        %v3196 = vld [vmem:[#allocation16 + $0x39c] sm:$0xff]
        %v3197 = vld [vmem:[#allocation16 + $0x3a4] sm:$0xff]
        %v3198 = vld [vmem:[#allocation16 + $0x3ac] sm:$0xff]
        %v3199 = vld [vmem:[#allocation16 + $0x3b4] sm:$0xf]
        %v3200 = vld [vmem:[#allocation16 + $0x3b8] sm:$0xff]
        %v3201 = vld [vmem:[#allocation16 + $0x3c0] sm:$0xff]
        %v3202 = vld [vmem:[#allocation16 + $0x3c8] sm:$0xff]
        %v3203 = vld [vmem:[#allocation16 + $0x3d0] sm:$0xf]
        %v3204 = vld [vmem:[#allocation16 + $0x3d4] sm:$0xff]
        %v3205 = vld [vmem:[#allocation16 + $0x3dc] sm:$0xff]
        %v3206 = vld [vmem:[#allocation16 + $0x3e4] sm:$0xff]
        %v3207 = vld [vmem:[#allocation16 + $0x3ec] sm:$0xf]
        %v3208 = vld [vmem:[#allocation16 + $0x3f0] sm:$0xff]
        %v3209 = vld [vmem:[#allocation16 + $0x3f8] sm:$0xff]
        %v3210 = vld [vmem:[#allocation16 + $0x400] sm:$0xff]
        %v3211 = vld [vmem:[#allocation16 + $0x408] sm:$0xf]
        %v3212 = vld [vmem:[#allocation16 + $0x40c] sm:$0xff]
        %v3213 = vld [vmem:[#allocation16 + $0x414] sm:$0xff]
        %v3214 = vld [vmem:[#allocation16 + $0x41c] sm:$0xff]
        %v3215 = vld [vmem:[#allocation16 + $0x424] sm:$0xf]
        %v3216 = vld [vmem:[#allocation16 + $0x428] sm:$0xff]
        %v3217 = vld [vmem:[#allocation16 + $0x430] sm:$0xff]
        %v3218 = vld [vmem:[#allocation16 + $0x438] sm:$0xff]
        %v3219 = vld [vmem:[#allocation16 + $0x440] sm:$0xf]
        %v3220 = vld [vmem:[#allocation16 + $0x444] sm:$0xff]
        %v3221 = vld [vmem:[#allocation16 + $0x44c] sm:$0xff]
        %v3222 = vld [vmem:[#allocation16 + $0x454] sm:$0xff]
        %v3223 = vld [vmem:[#allocation16 + $0x45c] sm:$0xf]
        %v3224 = vld [vmem:[#allocation16 + $0x460] sm:$0xff]
        %v3225 = vld [vmem:[#allocation16 + $0x468] sm:$0xff]
        %v3226 = vld [vmem:[#allocation16 + $0x470] sm:$0xff]
        %v3227 = vld [vmem:[#allocation16 + $0x478] sm:$0xf]
        %v3228 = vld [vmem:[#allocation16 + $0x47c] sm:$0xff]
        %v3229 = vld [vmem:[#allocation16 + $0x484] sm:$0xff]
        %v3230 = vld [vmem:[#allocation16 + $0x48c] sm:$0xff]
        %v3231 = vld [vmem:[#allocation16 + $0x494] sm:$0xf]
        %v3232 = vld [vmem:[#allocation16 + $0x498] sm:$0xff]
        %v3233 = vld [vmem:[#allocation16 + $0x4a0] sm:$0xff]
        %v3234 = vld [vmem:[#allocation16 + $0x4a8] sm:$0xff]
        %v3235 = vld [vmem:[#allocation16 + $0x4b0] sm:$0xf]
        %v3236 = vld [vmem:[#allocation16 + $0x4b4] sm:$0xff]
        %v3237 = vld [vmem:[#allocation16 + $0x4bc] sm:$0xff]
        %v3238 = vld [vmem:[#allocation16 + $0x4c4] sm:$0xff]
        %v3239 = vld [vmem:[#allocation16 + $0x4cc] sm:$0xf]
        %v3240 = vld [vmem:[#allocation16 + $0x4d0] sm:$0xff]
        %v3241 = vld [vmem:[#allocation16 + $0x4d8] sm:$0xff]
        %v3242 = vld [vmem:[#allocation16 + $0x4e0] sm:$0xff]
        %v3243 = vld [vmem:[#allocation16 + $0x4e8] sm:$0xf]
        %v3244 = vld [vmem:[#allocation16 + $0x4ec] sm:$0xff]
        %v3245 = vld [vmem:[#allocation16 + $0x4f4] sm:$0xff]
        %v3246 = vld [vmem:[#allocation16 + $0x4fc] sm:$0xff]
        %v3247 = vld [vmem:[#allocation16 + $0x504] sm:$0xf]
        %v3248 = vld [vmem:[#allocation16 + $0x508] sm:$0xff]
        %v3249 = vld [vmem:[#allocation16 + $0x510] sm:$0xff]
        %v3250 = vld [vmem:[#allocation16 + $0x518] sm:$0xff]
        %v3251 = vld [vmem:[#allocation16 + $0x520] sm:$0xf]
        %v3252 = vld [vmem:[#allocation16 + $0x524] sm:$0xff]
        %v3253 = vld [vmem:[#allocation16 + $0x52c] sm:$0xff]
        %v3254 = vld [vmem:[#allocation16 + $0x534] sm:$0xff]
        %v3255 = vld [vmem:[#allocation16 + $0x53c] sm:$0xf]
        %v3256 = vld [vmem:[#allocation16 + $0x540] sm:$0xff]
        %v3257 = vld [vmem:[#allocation16 + $0x548] sm:$0xff]
        %v3258 = vld [vmem:[#allocation16 + $0x550] sm:$0xff]
        %v3259 = vld [vmem:[#allocation16 + $0x558] sm:$0xf]
        %v3260 = vld [vmem:[#allocation16 + $0x55c] sm:$0xff]
        %v3261 = vld [vmem:[#allocation16 + $0x564] sm:$0xff]
        %v3262 = vld [vmem:[#allocation16 + $0x56c] sm:$0xff]
        %v3263 = vld [vmem:[#allocation16 + $0x574] sm:$0xf]
        %v3264 = vld [vmem:[#allocation16 + $0x578] sm:$0xff]
        %v3265 = vld [vmem:[#allocation16 + $0x580] sm:$0xff]
        %v3266 = vld [vmem:[#allocation16 + $0x588] sm:$0xff]
        %v3267 = vld [vmem:[#allocation16 + $0x590] sm:$0xf]
        %v3268 = vld [vmem:[#allocation16 + $0x594] sm:$0xff]
        %v3269 = vld [vmem:[#allocation16 + $0x59c] sm:$0xff]
        %v3270 = vld [vmem:[#allocation16 + $0x5a4] sm:$0xff]
        %v3271 = vld [vmem:[#allocation16 + $0x5ac] sm:$0xf]
        %v3272 = vld [vmem:[#allocation16 + $0x5b0] sm:$0xff]
        %v3273 = vld [vmem:[#allocation16 + $0x5b8] sm:$0xff]
        %v3274 = vld [vmem:[#allocation16 + $0x5c0] sm:$0xff]
        %v3275 = vld [vmem:[#allocation16 + $0x5c8] sm:$0xf]
        %v3276 = vld [vmem:[#allocation16 + $0x5cc] sm:$0xff]
        %v3277 = vld [vmem:[#allocation16 + $0x5d4] sm:$0xff]
        %v3278 = vld [vmem:[#allocation16 + $0x5dc] sm:$0xff]
        %v3279 = vld [vmem:[#allocation16 + $0x5e4] sm:$0xf]
        %v3280 = vld [vmem:[#allocation16 + $0x5e8] sm:$0xff]
        %v3281 = vld [vmem:[#allocation16 + $0x5f0] sm:$0xff]
        %v3282 = vld [vmem:[#allocation16 + $0x5f8] sm:$0xff]
        %v3283 = vld [vmem:[#allocation16 + $0x600] sm:$0xf]
        %v3284 = vld [vmem:[#allocation16 + $0x604] sm:$0xff]
        %v3285 = vld [vmem:[#allocation16 + $0x60c] sm:$0xff]
        %v3286 = vld [vmem:[#allocation16 + $0x614] sm:$0xff]
        %v3287 = vld [vmem:[#allocation16 + $0x61c] sm:$0xf]
        %v3288 = vld [vmem:[#allocation16 + $0x620] sm:$0xff]
        %v3289 = vld [vmem:[#allocation16 + $0x628] sm:$0xff]
        %v3290 = vld [vmem:[#allocation16 + $0x630] sm:$0xff]
        %v3291 = vld [vmem:[#allocation16 + $0x638] sm:$0xf]
        %v3292 = vld [vmem:[#allocation16 + $0x63c] sm:$0xff]
        %v3293 = vld [vmem:[#allocation16 + $0x644] sm:$0xff]
        %v3294 = vld [vmem:[#allocation16 + $0x64c] sm:$0xff]
        %v3295 = vld [vmem:[#allocation16 + $0x654] sm:$0xf]
        %v3296 = vld [vmem:[#allocation16 + $0x658] sm:$0xff]
        %v3297 = vld [vmem:[#allocation16 + $0x660] sm:$0xff]
        %v3298 = vld [vmem:[#allocation16 + $0x668] sm:$0xff]
        %v3299 = vld [vmem:[#allocation16 + $0x670] sm:$0xf]
        %v3300 = vld [vmem:[#allocation16 + $0x674] sm:$0xff]
        %v3301 = vld [vmem:[#allocation16 + $0x67c] sm:$0xff]
        %v3302 = vld [vmem:[#allocation16 + $0x684] sm:$0xff]
        %v3303 = vld [vmem:[#allocation16 + $0x68c] sm:$0xf]
        %v3304 = vld [vmem:[#allocation16 + $0x690] sm:$0xff]
        %v3305 = vld [vmem:[#allocation16 + $0x698] sm:$0xff]
        %v3306 = vld [vmem:[#allocation16 + $0x6a0] sm:$0xff]
        %v3307 = vld [vmem:[#allocation16 + $0x6a8] sm:$0xf]
        %v3308 = vld [vmem:[#allocation16 + $0x6ac] sm:$0xff]
        %v3309 = vld [vmem:[#allocation16 + $0x6b4] sm:$0xff]
        %v3310 = vld [vmem:[#allocation16 + $0x6bc] sm:$0xff]
        %v3311 = vld [vmem:[#allocation16 + $0x6c4] sm:$0xf]
        %v3312 = vld [vmem:[#allocation16 + $0x6c8] sm:$0xff]
        %v3313 = vld [vmem:[#allocation16 + $0x6d0] sm:$0xff]
        %v3314 = vld [vmem:[#allocation16 + $0x6d8] sm:$0xff]
        %v3315 = vld [vmem:[#allocation16 + $0x6e0] sm:$0xf]
        %v3316 = vld [vmem:[#allocation16 + $0x6e4] sm:$0xff]
        %v3317 = vld [vmem:[#allocation16 + $0x6ec] sm:$0xff]
        %v3318 = vld [vmem:[#allocation16 + $0x6f4] sm:$0xff]
        %v3319 = vld [vmem:[#allocation16 + $0x6fc] sm:$0xf]
        %v3320 = vld [vmem:[#allocation17] sm:$0xff]
        %v3322 = vlaneseq
        %v3323 = vshrl.u32 %v3322, 7
        %v3324 = vsub.s32 0, %v3323
        %v3325 = vrot.slane %v3320, %v3324
        %v3326 = vlaneseq
        %v3327 = vshrl.u32 %v3326, 7
        %v3328 = vsub.s32 1, %v3327
        %v3329 = vrot.slane %v3320, %v3328
        %v3330 = vlaneseq
        %v3331 = vshrl.u32 %v3330, 7
        %v3332 = vsub.s32 2, %v3331
        %v3333 = vrot.slane %v3320, %v3332
        %v3334 = vlaneseq
        %v3335 = vshrl.u32 %v3334, 7
        %v3336 = vsub.s32 3, %v3335
        %v3337 = vrot.slane %v3320, %v3336
        %v3338 = vlaneseq
        %v3339 = vshrl.u32 %v3338, 7
        %v3340 = vsub.s32 4, %v3339
        %v3341 = vrot.slane %v3320, %v3340
        %v3342 = vlaneseq
        %v3343 = vshrl.u32 %v3342, 7
        %v3344 = vsub.s32 5, %v3343
        %v3345 = vrot.slane %v3320, %v3344
        %v3346 = vlaneseq
        %v3347 = vshrl.u32 %v3346, 7
        %v3348 = vsub.s32 6, %v3347
        %v3349 = vrot.slane %v3320, %v3348
        %v3613 = vunpack.c.l.b16 %v3064
        %v3614 = vunpack.c.h.b16 %v3064
        %v3615 = vunpack.c.l.b16 %v3065
        %v3616 = vunpack.c.h.b16 %v3065
        %v3617 = vunpack.c.l.b16 %v3066
        %v3618 = vunpack.c.h.b16 %v3066
        %v3619 = vunpack.c.l.b16 %v3067
        %v3620 = vunpack.c.l.b16 %v3068
        %v3621 = vunpack.c.h.b16 %v3068
        %v3622 = vunpack.c.l.b16 %v3069
        %v3623 = vunpack.c.h.b16 %v3069
        %v3624 = vunpack.c.l.b16 %v3070
        %v3625 = vunpack.c.h.b16 %v3070
        %v3626 = vunpack.c.l.b16 %v3071
        %v3627 = vunpack.c.l.b16 %v3072
        %v3628 = vunpack.c.h.b16 %v3072
        %v3629 = vunpack.c.l.b16 %v3073
        %v3630 = vunpack.c.h.b16 %v3073
        %v3631 = vunpack.c.l.b16 %v3074
        %v3632 = vunpack.c.h.b16 %v3074
        %v3633 = vunpack.c.l.b16 %v3075
        %v3634 = vunpack.c.l.b16 %v3076
        %v3635 = vunpack.c.h.b16 %v3076
        %v3636 = vunpack.c.l.b16 %v3077
        %v3637 = vunpack.c.h.b16 %v3077
        %v3638 = vunpack.c.l.b16 %v3078
        %v3639 = vunpack.c.h.b16 %v3078
        %v3640 = vunpack.c.l.b16 %v3079
        %v3641 = vunpack.c.l.b16 %v3080
        %v3642 = vunpack.c.h.b16 %v3080
        %v3643 = vunpack.c.l.b16 %v3081
        %v3644 = vunpack.c.h.b16 %v3081
        %v3645 = vunpack.c.l.b16 %v3082
        %v3646 = vunpack.c.h.b16 %v3082
        %v3647 = vunpack.c.l.b16 %v3083
        %v3648 = vunpack.c.l.b16 %v3084
        %v3649 = vunpack.c.h.b16 %v3084
        %v3650 = vunpack.c.l.b16 %v3085
        %v3651 = vunpack.c.h.b16 %v3085
        %v3652 = vunpack.c.l.b16 %v3086
        %v3653 = vunpack.c.h.b16 %v3086
        %v3654 = vunpack.c.l.b16 %v3087
        %v3655 = vunpack.c.l.b16 %v3088
        %v3656 = vunpack.c.h.b16 %v3088
        %v3657 = vunpack.c.l.b16 %v3089
        %v3658 = vunpack.c.h.b16 %v3089
        %v3659 = vunpack.c.l.b16 %v3090
        %v3660 = vunpack.c.h.b16 %v3090
        %v3661 = vunpack.c.l.b16 %v3091
        %v3662 = vunpack.c.l.b16 %v3092
        %v3663 = vunpack.c.h.b16 %v3092
        %v3664 = vunpack.c.l.b16 %v3093
        %v3665 = vunpack.c.h.b16 %v3093
        %v3666 = vunpack.c.l.b16 %v3094
        %v3667 = vunpack.c.h.b16 %v3094
        %v3668 = vunpack.c.l.b16 %v3095
        %v3669 = vunpack.c.l.b16 %v3096
        %v3670 = vunpack.c.h.b16 %v3096
        %v3671 = vunpack.c.l.b16 %v3097
        %v3672 = vunpack.c.h.b16 %v3097
        %v3673 = vunpack.c.l.b16 %v3098
        %v3674 = vunpack.c.h.b16 %v3098
        %v3675 = vunpack.c.l.b16 %v3099
        %v3676 = vunpack.c.l.b16 %v3100
        %v3677 = vunpack.c.h.b16 %v3100
        %v3678 = vunpack.c.l.b16 %v3101
        %v3679 = vunpack.c.h.b16 %v3101
        %v3680 = vunpack.c.l.b16 %v3102
        %v3681 = vunpack.c.h.b16 %v3102
        %v3682 = vunpack.c.l.b16 %v3103
        %v3683 = vunpack.c.l.b16 %v3104
        %v3684 = vunpack.c.h.b16 %v3104
        %v3685 = vunpack.c.l.b16 %v3105
        %v3686 = vunpack.c.h.b16 %v3105
        %v3687 = vunpack.c.l.b16 %v3106
        %v3688 = vunpack.c.h.b16 %v3106
        %v3689 = vunpack.c.l.b16 %v3107
        %v3690 = vunpack.c.l.b16 %v3108
        %v3691 = vunpack.c.h.b16 %v3108
        %v3692 = vunpack.c.l.b16 %v3109
        %v3693 = vunpack.c.h.b16 %v3109
        %v3694 = vunpack.c.l.b16 %v3110
        %v3695 = vunpack.c.h.b16 %v3110
        %v3696 = vunpack.c.l.b16 %v3111
        %v3697 = vunpack.c.l.b16 %v3112
        %v3698 = vunpack.c.h.b16 %v3112
        %v3699 = vunpack.c.l.b16 %v3113
        %v3700 = vunpack.c.h.b16 %v3113
        %v3701 = vunpack.c.l.b16 %v3114
        %v3702 = vunpack.c.h.b16 %v3114
        %v3703 = vunpack.c.l.b16 %v3115
        %v3704 = vunpack.c.l.b16 %v3116
        %v3705 = vunpack.c.h.b16 %v3116
        %v3706 = vunpack.c.l.b16 %v3117
        %v3707 = vunpack.c.h.b16 %v3117
        %v3708 = vunpack.c.l.b16 %v3118
        %v3709 = vunpack.c.h.b16 %v3118
        %v3710 = vunpack.c.l.b16 %v3119
        %v3711 = vunpack.c.l.b16 %v3120
        %v3712 = vunpack.c.h.b16 %v3120
        %v3713 = vunpack.c.l.b16 %v3121
        %v3714 = vunpack.c.h.b16 %v3121
        %v3715 = vunpack.c.l.b16 %v3122
        %v3716 = vunpack.c.h.b16 %v3122
        %v3717 = vunpack.c.l.b16 %v3123
        %v3718 = vunpack.c.l.b16 %v3124
        %v3719 = vunpack.c.h.b16 %v3124
        %v3720 = vunpack.c.l.b16 %v3125
        %v3721 = vunpack.c.h.b16 %v3125
        %v3722 = vunpack.c.l.b16 %v3126
        %v3723 = vunpack.c.h.b16 %v3126
        %v3724 = vunpack.c.l.b16 %v3127
        %v3725 = vunpack.c.l.b16 %v3128
        %v3726 = vunpack.c.h.b16 %v3128
        %v3727 = vunpack.c.l.b16 %v3129
        %v3728 = vunpack.c.h.b16 %v3129
        %v3729 = vunpack.c.l.b16 %v3130
        %v3730 = vunpack.c.h.b16 %v3130
        %v3731 = vunpack.c.l.b16 %v3131
        %v3732 = vunpack.c.l.b16 %v3132
        %v3733 = vunpack.c.h.b16 %v3132
        %v3734 = vunpack.c.l.b16 %v3133
        %v3735 = vunpack.c.h.b16 %v3133
        %v3736 = vunpack.c.l.b16 %v3134
        %v3737 = vunpack.c.h.b16 %v3134
        %v3738 = vunpack.c.l.b16 %v3135
        %v3739 = vunpack.c.l.b16 %v3136
        %v3740 = vunpack.c.h.b16 %v3136
        %v3741 = vunpack.c.l.b16 %v3137
        %v3742 = vunpack.c.h.b16 %v3137
        %v3743 = vunpack.c.l.b16 %v3138
        %v3744 = vunpack.c.h.b16 %v3138
        %v3745 = vunpack.c.l.b16 %v3139
        %v3746 = vunpack.c.l.b16 %v3140
        %v3747 = vunpack.c.h.b16 %v3140
        %v3748 = vunpack.c.l.b16 %v3141
        %v3749 = vunpack.c.h.b16 %v3141
        %v3750 = vunpack.c.l.b16 %v3142
        %v3751 = vunpack.c.h.b16 %v3142
        %v3752 = vunpack.c.l.b16 %v3143
        %v3753 = vunpack.c.l.b16 %v3144
        %v3754 = vunpack.c.h.b16 %v3144
        %v3755 = vunpack.c.l.b16 %v3145
        %v3756 = vunpack.c.h.b16 %v3145
        %v3757 = vunpack.c.l.b16 %v3146
        %v3758 = vunpack.c.h.b16 %v3146
        %v3759 = vunpack.c.l.b16 %v3147
        %v3760 = vunpack.c.l.b16 %v3148
        %v3761 = vunpack.c.h.b16 %v3148
        %v3762 = vunpack.c.l.b16 %v3149
        %v3763 = vunpack.c.h.b16 %v3149
        %v3764 = vunpack.c.l.b16 %v3150
        %v3765 = vunpack.c.h.b16 %v3150
        %v3766 = vunpack.c.l.b16 %v3151
        %v3767 = vunpack.c.l.b16 %v3152
        %v3768 = vunpack.c.h.b16 %v3152
        %v3769 = vunpack.c.l.b16 %v3153
        %v3770 = vunpack.c.h.b16 %v3153
        %v3771 = vunpack.c.l.b16 %v3154
        %v3772 = vunpack.c.h.b16 %v3154
        %v3773 = vunpack.c.l.b16 %v3155
        %v3774 = vunpack.c.l.b16 %v3156
        %v3775 = vunpack.c.h.b16 %v3156
        %v3776 = vunpack.c.l.b16 %v3157
        %v3777 = vunpack.c.h.b16 %v3157
        %v3778 = vunpack.c.l.b16 %v3158
        %v3779 = vunpack.c.h.b16 %v3158
        %v3780 = vunpack.c.l.b16 %v3159
        %v3781 = vunpack.c.l.b16 %v3160
        %v3782 = vunpack.c.h.b16 %v3160
        %v3783 = vunpack.c.l.b16 %v3161
        %v3784 = vunpack.c.h.b16 %v3161
        %v3785 = vunpack.c.l.b16 %v3162
        %v3786 = vunpack.c.h.b16 %v3162
        %v3787 = vunpack.c.l.b16 %v3163
        %v3788 = vunpack.c.l.b16 %v3164
        %v3789 = vunpack.c.h.b16 %v3164
        %v3790 = vunpack.c.l.b16 %v3165
        %v3791 = vunpack.c.h.b16 %v3165
        %v3792 = vunpack.c.l.b16 %v3166
        %v3793 = vunpack.c.h.b16 %v3166
        %v3794 = vunpack.c.l.b16 %v3167
        %v3795 = vunpack.c.l.b16 %v3168
        %v3796 = vunpack.c.h.b16 %v3168
        %v3797 = vunpack.c.l.b16 %v3169
        %v3798 = vunpack.c.h.b16 %v3169
        %v3799 = vunpack.c.l.b16 %v3170
        %v3800 = vunpack.c.h.b16 %v3170
        %v3801 = vunpack.c.l.b16 %v3171
        %v3802 = vunpack.c.l.b16 %v3172
        %v3803 = vunpack.c.h.b16 %v3172
        %v3804 = vunpack.c.l.b16 %v3173
        %v3805 = vunpack.c.h.b16 %v3173
        %v3806 = vunpack.c.l.b16 %v3174
        %v3807 = vunpack.c.h.b16 %v3174
        %v3808 = vunpack.c.l.b16 %v3175
        %v3809 = vunpack.c.l.b16 %v3176
        %v3810 = vunpack.c.h.b16 %v3176
        %v3811 = vunpack.c.l.b16 %v3177
        %v3812 = vunpack.c.h.b16 %v3177
        %v3813 = vunpack.c.l.b16 %v3178
        %v3814 = vunpack.c.h.b16 %v3178
        %v3815 = vunpack.c.l.b16 %v3179
        %v3816 = vunpack.c.l.b16 %v3180
        %v3817 = vunpack.c.h.b16 %v3180
        %v3818 = vunpack.c.l.b16 %v3181
        %v3819 = vunpack.c.h.b16 %v3181
        %v3820 = vunpack.c.l.b16 %v3182
        %v3821 = vunpack.c.h.b16 %v3182
        %v3822 = vunpack.c.l.b16 %v3183
        %v3823 = vunpack.c.l.b16 %v3184
        %v3824 = vunpack.c.h.b16 %v3184
        %v3825 = vunpack.c.l.b16 %v3185
        %v3826 = vunpack.c.h.b16 %v3185
        %v3827 = vunpack.c.l.b16 %v3186
        %v3828 = vunpack.c.h.b16 %v3186
        %v3829 = vunpack.c.l.b16 %v3187
        %v3830 = vunpack.c.l.b16 %v3188
        %v3831 = vunpack.c.h.b16 %v3188
        %v3832 = vunpack.c.l.b16 %v3189
        %v3833 = vunpack.c.h.b16 %v3189
        %v3834 = vunpack.c.l.b16 %v3190
        %v3835 = vunpack.c.h.b16 %v3190
        %v3836 = vunpack.c.l.b16 %v3191
        %v3837 = vunpack.c.l.b16 %v3192
        %v3838 = vunpack.c.h.b16 %v3192
        %v3839 = vunpack.c.l.b16 %v3193
        %v3840 = vunpack.c.h.b16 %v3193
        %v3841 = vunpack.c.l.b16 %v3194
        %v3842 = vunpack.c.h.b16 %v3194
        %v3843 = vunpack.c.l.b16 %v3195
        %v3844 = vunpack.c.l.b16 %v3196
        %v3845 = vunpack.c.h.b16 %v3196
        %v3846 = vunpack.c.l.b16 %v3197
        %v3847 = vunpack.c.h.b16 %v3197
        %v3848 = vunpack.c.l.b16 %v3198
        %v3849 = vunpack.c.h.b16 %v3198
        %v3850 = vunpack.c.l.b16 %v3199
        %v3851 = vunpack.c.l.b16 %v3200
        %v3852 = vunpack.c.h.b16 %v3200
        %v3853 = vunpack.c.l.b16 %v3201
        %v3854 = vunpack.c.h.b16 %v3201
        %v3855 = vunpack.c.l.b16 %v3202
        %v3856 = vunpack.c.h.b16 %v3202
        %v3857 = vunpack.c.l.b16 %v3203
        %v3858 = vunpack.c.l.b16 %v3204
        %v3859 = vunpack.c.h.b16 %v3204
        %v3860 = vunpack.c.l.b16 %v3205
        %v3861 = vunpack.c.h.b16 %v3205
        %v3862 = vunpack.c.l.b16 %v3206
        %v3863 = vunpack.c.h.b16 %v3206
        %v3864 = vunpack.c.l.b16 %v3207
        %v3865 = vunpack.c.l.b16 %v3208
        %v3866 = vunpack.c.h.b16 %v3208
        %v3867 = vunpack.c.l.b16 %v3209
        %v3868 = vunpack.c.h.b16 %v3209
        %v3869 = vunpack.c.l.b16 %v3210
        %v3870 = vunpack.c.h.b16 %v3210
        %v3871 = vunpack.c.l.b16 %v3211
        %v3872 = vunpack.c.l.b16 %v3212
        %v3873 = vunpack.c.h.b16 %v3212
        %v3874 = vunpack.c.l.b16 %v3213
        %v3875 = vunpack.c.h.b16 %v3213
        %v3876 = vunpack.c.l.b16 %v3214
        %v3877 = vunpack.c.h.b16 %v3214
        %v3878 = vunpack.c.l.b16 %v3215
        %v3879 = vunpack.c.l.b16 %v3216
        %v3880 = vunpack.c.h.b16 %v3216
        %v3881 = vunpack.c.l.b16 %v3217
        %v3882 = vunpack.c.h.b16 %v3217
        %v3883 = vunpack.c.l.b16 %v3218
        %v3884 = vunpack.c.h.b16 %v3218
        %v3885 = vunpack.c.l.b16 %v3219
        %v3886 = vunpack.c.l.b16 %v3220
        %v3887 = vunpack.c.h.b16 %v3220
        %v3888 = vunpack.c.l.b16 %v3221
        %v3889 = vunpack.c.h.b16 %v3221
        %v3890 = vunpack.c.l.b16 %v3222
        %v3891 = vunpack.c.h.b16 %v3222
        %v3892 = vunpack.c.l.b16 %v3223
        %v3893 = vunpack.c.l.b16 %v3224
        %v3894 = vunpack.c.h.b16 %v3224
        %v3895 = vunpack.c.l.b16 %v3225
        %v3896 = vunpack.c.h.b16 %v3225
        %v3897 = vunpack.c.l.b16 %v3226
        %v3898 = vunpack.c.h.b16 %v3226
        %v3899 = vunpack.c.l.b16 %v3227
        %v3900 = vunpack.c.l.b16 %v3228
        %v3901 = vunpack.c.h.b16 %v3228
        %v3902 = vunpack.c.l.b16 %v3229
        %v3903 = vunpack.c.h.b16 %v3229
        %v3904 = vunpack.c.l.b16 %v3230
        %v3905 = vunpack.c.h.b16 %v3230
        %v3906 = vunpack.c.l.b16 %v3231
        %v3907 = vunpack.c.l.b16 %v3232
        %v3908 = vunpack.c.h.b16 %v3232
        %v3909 = vunpack.c.l.b16 %v3233
        %v3910 = vunpack.c.h.b16 %v3233
        %v3911 = vunpack.c.l.b16 %v3234
        %v3912 = vunpack.c.h.b16 %v3234
        %v3913 = vunpack.c.l.b16 %v3235
        %v3914 = vunpack.c.l.b16 %v3236
        %v3915 = vunpack.c.h.b16 %v3236
        %v3916 = vunpack.c.l.b16 %v3237
        %v3917 = vunpack.c.h.b16 %v3237
        %v3918 = vunpack.c.l.b16 %v3238
        %v3919 = vunpack.c.h.b16 %v3238
        %v3920 = vunpack.c.l.b16 %v3239
        %v3921 = vunpack.c.l.b16 %v3240
        %v3922 = vunpack.c.h.b16 %v3240
        %v3923 = vunpack.c.l.b16 %v3241
        %v3924 = vunpack.c.h.b16 %v3241
        %v3925 = vunpack.c.l.b16 %v3242
        %v3926 = vunpack.c.h.b16 %v3242
        %v3927 = vunpack.c.l.b16 %v3243
        %v3928 = vunpack.c.l.b16 %v3244
        %v3929 = vunpack.c.h.b16 %v3244
        %v3930 = vunpack.c.l.b16 %v3245
        %v3931 = vunpack.c.h.b16 %v3245
        %v3932 = vunpack.c.l.b16 %v3246
        %v3933 = vunpack.c.h.b16 %v3246
        %v3934 = vunpack.c.l.b16 %v3247
        %v3935 = vunpack.c.l.b16 %v3248
        %v3936 = vunpack.c.h.b16 %v3248
        %v3937 = vunpack.c.l.b16 %v3249
        %v3938 = vunpack.c.h.b16 %v3249
        %v3939 = vunpack.c.l.b16 %v3250
        %v3940 = vunpack.c.h.b16 %v3250
        %v3941 = vunpack.c.l.b16 %v3251
        %v3942 = vunpack.c.l.b16 %v3252
        %v3943 = vunpack.c.h.b16 %v3252
        %v3944 = vunpack.c.l.b16 %v3253
        %v3945 = vunpack.c.h.b16 %v3253
        %v3946 = vunpack.c.l.b16 %v3254
        %v3947 = vunpack.c.h.b16 %v3254
        %v3948 = vunpack.c.l.b16 %v3255
        %v3949 = vunpack.c.l.b16 %v3256
        %v3950 = vunpack.c.h.b16 %v3256
        %v3951 = vunpack.c.l.b16 %v3257
        %v3952 = vunpack.c.h.b16 %v3257
        %v3953 = vunpack.c.l.b16 %v3258
        %v3954 = vunpack.c.h.b16 %v3258
        %v3955 = vunpack.c.l.b16 %v3259
        %v3956 = vunpack.c.l.b16 %v3260
        %v3957 = vunpack.c.h.b16 %v3260
        %v3958 = vunpack.c.l.b16 %v3261
        %v3959 = vunpack.c.h.b16 %v3261
        %v3960 = vunpack.c.l.b16 %v3262
        %v3961 = vunpack.c.h.b16 %v3262
        %v3962 = vunpack.c.l.b16 %v3263
        %v3963 = vunpack.c.l.b16 %v3264
        %v3964 = vunpack.c.h.b16 %v3264
        %v3965 = vunpack.c.l.b16 %v3265
        %v3966 = vunpack.c.h.b16 %v3265
        %v3967 = vunpack.c.l.b16 %v3266
        %v3968 = vunpack.c.h.b16 %v3266
        %v3969 = vunpack.c.l.b16 %v3267
        %v3970 = vunpack.c.l.b16 %v3268
        %v3971 = vunpack.c.h.b16 %v3268
        %v3972 = vunpack.c.l.b16 %v3269
        %v3973 = vunpack.c.h.b16 %v3269
        %v3974 = vunpack.c.l.b16 %v3270
        %v3975 = vunpack.c.h.b16 %v3270
        %v3976 = vunpack.c.l.b16 %v3271
        %v3977 = vunpack.c.l.b16 %v3272
        %v3978 = vunpack.c.h.b16 %v3272
        %v3979 = vunpack.c.l.b16 %v3273
        %v3980 = vunpack.c.h.b16 %v3273
        %v3981 = vunpack.c.l.b16 %v3274
        %v3982 = vunpack.c.h.b16 %v3274
        %v3983 = vunpack.c.l.b16 %v3275
        %v3984 = vunpack.c.l.b16 %v3276
        %v3985 = vunpack.c.h.b16 %v3276
        %v3986 = vunpack.c.l.b16 %v3277
        %v3987 = vunpack.c.h.b16 %v3277
        %v3988 = vunpack.c.l.b16 %v3278
        %v3989 = vunpack.c.h.b16 %v3278
        %v3990 = vunpack.c.l.b16 %v3279
        %v3991 = vunpack.c.l.b16 %v3280
        %v3992 = vunpack.c.h.b16 %v3280
        %v3993 = vunpack.c.l.b16 %v3281
        %v3994 = vunpack.c.h.b16 %v3281
        %v3995 = vunpack.c.l.b16 %v3282
        %v3996 = vunpack.c.h.b16 %v3282
        %v3997 = vunpack.c.l.b16 %v3283
        %v3998 = vunpack.c.l.b16 %v3284
        %v3999 = vunpack.c.h.b16 %v3284
        %v4000 = vunpack.c.l.b16 %v3285
        %v4001 = vunpack.c.h.b16 %v3285
        %v4002 = vunpack.c.l.b16 %v3286
        %v4003 = vunpack.c.h.b16 %v3286
        %v4004 = vunpack.c.l.b16 %v3287
        %v4005 = vunpack.c.l.b16 %v3288
        %v4006 = vunpack.c.h.b16 %v3288
        %v4007 = vunpack.c.l.b16 %v3289
        %v4008 = vunpack.c.h.b16 %v3289
        %v4009 = vunpack.c.l.b16 %v3290
        %v4010 = vunpack.c.h.b16 %v3290
        %v4011 = vunpack.c.l.b16 %v3291
        %v4012 = vunpack.c.l.b16 %v3292
        %v4013 = vunpack.c.h.b16 %v3292
        %v4014 = vunpack.c.l.b16 %v3293
        %v4015 = vunpack.c.h.b16 %v3293
        %v4016 = vunpack.c.l.b16 %v3294
        %v4017 = vunpack.c.h.b16 %v3294
        %v4018 = vunpack.c.l.b16 %v3295
        %v4019 = vunpack.c.l.b16 %v3296
        %v4020 = vunpack.c.h.b16 %v3296
        %v4021 = vunpack.c.l.b16 %v3297
        %v4022 = vunpack.c.h.b16 %v3297
        %v4023 = vunpack.c.l.b16 %v3298
        %v4024 = vunpack.c.h.b16 %v3298
        %v4025 = vunpack.c.l.b16 %v3299
        %v4026 = vunpack.c.l.b16 %v3300
        %v4027 = vunpack.c.h.b16 %v3300
        %v4028 = vunpack.c.l.b16 %v3301
        %v4029 = vunpack.c.h.b16 %v3301
        %v4030 = vunpack.c.l.b16 %v3302
        %v4031 = vunpack.c.h.b16 %v3302
        %v4032 = vunpack.c.l.b16 %v3303
        %v4033 = vunpack.c.l.b16 %v3304
        %v4034 = vunpack.c.h.b16 %v3304
        %v4035 = vunpack.c.l.b16 %v3305
        %v4036 = vunpack.c.h.b16 %v3305
        %v4037 = vunpack.c.l.b16 %v3306
        %v4038 = vunpack.c.h.b16 %v3306
        %v4039 = vunpack.c.l.b16 %v3307
        %v4040 = vunpack.c.l.b16 %v3308
        %v4041 = vunpack.c.h.b16 %v3308
        %v4042 = vunpack.c.l.b16 %v3309
        %v4043 = vunpack.c.h.b16 %v3309
        %v4044 = vunpack.c.l.b16 %v3310
        %v4045 = vunpack.c.h.b16 %v3310
        %v4046 = vunpack.c.l.b16 %v3311
        %v4047 = vunpack.c.l.b16 %v3312
        %v4048 = vunpack.c.h.b16 %v3312
        %v4049 = vunpack.c.l.b16 %v3313
        %v4050 = vunpack.c.h.b16 %v3313
        %v4051 = vunpack.c.l.b16 %v3314
        %v4052 = vunpack.c.h.b16 %v3314
        %v4053 = vunpack.c.l.b16 %v3315
        %v4054 = vunpack.c.l.b16 %v3316
        %v4055 = vunpack.c.h.b16 %v3316
        %v4056 = vunpack.c.l.b16 %v3317
        %v4057 = vunpack.c.h.b16 %v3317
        %v4058 = vunpack.c.l.b16 %v3318
        %v4059 = vunpack.c.h.b16 %v3318
        %v4060 = vunpack.c.l.b16 %v3319
        %v4061 = vpack.c.b16 %v3620, %v3613
        %v4062 = vpack.c.b16 %v3621, %v3614
        %v4063 = vpack.c.b16 %v3622, %v3615
        %v4064 = vpack.c.b16 %v3623, %v3616
        %v4065 = vpack.c.b16 %v3624, %v3617
        %v4066 = vpack.c.b16 %v3625, %v3618
        %v4067 = vpack.c.b16 %v3626, %v3619
        %v4068 = vpack.c.b16 %v3634, %v3627
        %v4069 = vpack.c.b16 %v3635, %v3628
        %v4070 = vpack.c.b16 %v3636, %v3629
        %v4071 = vpack.c.b16 %v3637, %v3630
        %v4072 = vpack.c.b16 %v3638, %v3631
        %v4073 = vpack.c.b16 %v3639, %v3632
        %v4074 = vpack.c.b16 %v3640, %v3633
        %v4075 = vpack.c.b16 %v3648, %v3641
        %v4076 = vpack.c.b16 %v3649, %v3642
        %v4077 = vpack.c.b16 %v3650, %v3643
        %v4078 = vpack.c.b16 %v3651, %v3644
        %v4079 = vpack.c.b16 %v3652, %v3645
        %v4080 = vpack.c.b16 %v3653, %v3646
        %v4081 = vpack.c.b16 %v3654, %v3647
        %v4082 = vpack.c.b16 %v3662, %v3655
        %v4083 = vpack.c.b16 %v3663, %v3656
        %v4084 = vpack.c.b16 %v3664, %v3657
        %v4085 = vpack.c.b16 %v3665, %v3658
        %v4086 = vpack.c.b16 %v3666, %v3659
        %v4087 = vpack.c.b16 %v3667, %v3660
        %v4088 = vpack.c.b16 %v3668, %v3661
        %v4089 = vpack.c.b16 %v3676, %v3669
        %v4090 = vpack.c.b16 %v3677, %v3670
        %v4091 = vpack.c.b16 %v3678, %v3671
        %v4092 = vpack.c.b16 %v3679, %v3672
        %v4093 = vpack.c.b16 %v3680, %v3673
        %v4094 = vpack.c.b16 %v3681, %v3674
        %v4095 = vpack.c.b16 %v3682, %v3675
        %v4096 = vpack.c.b16 %v3690, %v3683
        %v4097 = vpack.c.b16 %v3691, %v3684
        %v4098 = vpack.c.b16 %v3692, %v3685
        %v4099 = vpack.c.b16 %v3693, %v3686
        %v4100 = vpack.c.b16 %v3694, %v3687
        %v4101 = vpack.c.b16 %v3695, %v3688
        %v4102 = vpack.c.b16 %v3696, %v3689
        %v4103 = vpack.c.b16 %v3704, %v3697
        %v4104 = vpack.c.b16 %v3705, %v3698
        %v4105 = vpack.c.b16 %v3706, %v3699
        %v4106 = vpack.c.b16 %v3707, %v3700
        %v4107 = vpack.c.b16 %v3708, %v3701
        %v4108 = vpack.c.b16 %v3709, %v3702
        %v4109 = vpack.c.b16 %v3710, %v3703
        %v4110 = vpack.c.b16 %v3718, %v3711
        %v4111 = vpack.c.b16 %v3719, %v3712
        %v4112 = vpack.c.b16 %v3720, %v3713
        %v4113 = vpack.c.b16 %v3721, %v3714
        %v4114 = vpack.c.b16 %v3722, %v3715
        %v4115 = vpack.c.b16 %v3723, %v3716
        %v4116 = vpack.c.b16 %v3724, %v3717
        %v4117 = vpack.c.b16 %v3732, %v3725
        %v4118 = vpack.c.b16 %v3733, %v3726
        %v4119 = vpack.c.b16 %v3734, %v3727
        %v4120 = vpack.c.b16 %v3735, %v3728
        %v4121 = vpack.c.b16 %v3736, %v3729
        %v4122 = vpack.c.b16 %v3737, %v3730
        %v4123 = vpack.c.b16 %v3738, %v3731
        %v4124 = vpack.c.b16 %v3746, %v3739
        %v4125 = vpack.c.b16 %v3747, %v3740
        %v4126 = vpack.c.b16 %v3748, %v3741
        %v4127 = vpack.c.b16 %v3749, %v3742
        %v4128 = vpack.c.b16 %v3750, %v3743
        %v4129 = vpack.c.b16 %v3751, %v3744
        %v4130 = vpack.c.b16 %v3752, %v3745
        %v4131 = vpack.c.b16 %v3760, %v3753
        %v4132 = vpack.c.b16 %v3761, %v3754
        %v4133 = vpack.c.b16 %v3762, %v3755
        %v4134 = vpack.c.b16 %v3763, %v3756
        %v4135 = vpack.c.b16 %v3764, %v3757
        %v4136 = vpack.c.b16 %v3765, %v3758
        %v4137 = vpack.c.b16 %v3766, %v3759
        %v4138 = vpack.c.b16 %v3774, %v3767
        %v4139 = vpack.c.b16 %v3775, %v3768
        %v4140 = vpack.c.b16 %v3776, %v3769
        %v4141 = vpack.c.b16 %v3777, %v3770
        %v4142 = vpack.c.b16 %v3778, %v3771
        %v4143 = vpack.c.b16 %v3779, %v3772
        %v4144 = vpack.c.b16 %v3780, %v3773
        %v4145 = vpack.c.b16 %v3788, %v3781
        %v4146 = vpack.c.b16 %v3789, %v3782
        %v4147 = vpack.c.b16 %v3790, %v3783
        %v4148 = vpack.c.b16 %v3791, %v3784
        %v4149 = vpack.c.b16 %v3792, %v3785
        %v4150 = vpack.c.b16 %v3793, %v3786
        %v4151 = vpack.c.b16 %v3794, %v3787
        %v4152 = vpack.c.b16 %v3802, %v3795
        %v4153 = vpack.c.b16 %v3803, %v3796
        %v4154 = vpack.c.b16 %v3804, %v3797
        %v4155 = vpack.c.b16 %v3805, %v3798
        %v4156 = vpack.c.b16 %v3806, %v3799
        %v4157 = vpack.c.b16 %v3807, %v3800
        %v4158 = vpack.c.b16 %v3808, %v3801
        %v4159 = vpack.c.b16 %v3816, %v3809
        %v4160 = vpack.c.b16 %v3817, %v3810
        %v4161 = vpack.c.b16 %v3818, %v3811
        %v4162 = vpack.c.b16 %v3819, %v3812
        %v4163 = vpack.c.b16 %v3820, %v3813
        %v4164 = vpack.c.b16 %v3821, %v3814
        %v4165 = vpack.c.b16 %v3822, %v3815
        %v4166 = vpack.c.b16 %v3830, %v3823
        %v4167 = vpack.c.b16 %v3831, %v3824
        %v4168 = vpack.c.b16 %v3832, %v3825
        %v4169 = vpack.c.b16 %v3833, %v3826
        %v4170 = vpack.c.b16 %v3834, %v3827
        %v4171 = vpack.c.b16 %v3835, %v3828
        %v4172 = vpack.c.b16 %v3836, %v3829
        %v4173 = vpack.c.b16 %v3844, %v3837
        %v4174 = vpack.c.b16 %v3845, %v3838
        %v4175 = vpack.c.b16 %v3846, %v3839
        %v4176 = vpack.c.b16 %v3847, %v3840
        %v4177 = vpack.c.b16 %v3848, %v3841
        %v4178 = vpack.c.b16 %v3849, %v3842
        %v4179 = vpack.c.b16 %v3850, %v3843
        %v4180 = vpack.c.b16 %v3858, %v3851
        %v4181 = vpack.c.b16 %v3859, %v3852
        %v4182 = vpack.c.b16 %v3860, %v3853
        %v4183 = vpack.c.b16 %v3861, %v3854
        %v4184 = vpack.c.b16 %v3862, %v3855
        %v4185 = vpack.c.b16 %v3863, %v3856
        %v4186 = vpack.c.b16 %v3864, %v3857
        %v4187 = vpack.c.b16 %v3872, %v3865
        %v4188 = vpack.c.b16 %v3873, %v3866
        %v4189 = vpack.c.b16 %v3874, %v3867
        %v4190 = vpack.c.b16 %v3875, %v3868
        %v4191 = vpack.c.b16 %v3876, %v3869
        %v4192 = vpack.c.b16 %v3877, %v3870
        %v4193 = vpack.c.b16 %v3878, %v3871
        %v4194 = vpack.c.b16 %v3886, %v3879
        %v4195 = vpack.c.b16 %v3887, %v3880
        %v4196 = vpack.c.b16 %v3888, %v3881
        %v4197 = vpack.c.b16 %v3889, %v3882
        %v4198 = vpack.c.b16 %v3890, %v3883
        %v4199 = vpack.c.b16 %v3891, %v3884
        %v4200 = vpack.c.b16 %v3892, %v3885
        %v4201 = vpack.c.b16 %v3900, %v3893
        %v4202 = vpack.c.b16 %v3901, %v3894
        %v4203 = vpack.c.b16 %v3902, %v3895
        %v4204 = vpack.c.b16 %v3903, %v3896
        %v4205 = vpack.c.b16 %v3904, %v3897
        %v4206 = vpack.c.b16 %v3905, %v3898
        %v4207 = vpack.c.b16 %v3906, %v3899
        %v4208 = vpack.c.b16 %v3914, %v3907
        %v4209 = vpack.c.b16 %v3915, %v3908
        %v4210 = vpack.c.b16 %v3916, %v3909
        %v4211 = vpack.c.b16 %v3917, %v3910
        %v4212 = vpack.c.b16 %v3918, %v3911
        %v4213 = vpack.c.b16 %v3919, %v3912
        %v4214 = vpack.c.b16 %v3920, %v3913
        %v4215 = vpack.c.b16 %v3928, %v3921
        %v4216 = vpack.c.b16 %v3929, %v3922
        %v4217 = vpack.c.b16 %v3930, %v3923
        %v4218 = vpack.c.b16 %v3931, %v3924
        %v4219 = vpack.c.b16 %v3932, %v3925
        %v4220 = vpack.c.b16 %v3933, %v3926
        %v4221 = vpack.c.b16 %v3934, %v3927
        %v4222 = vpack.c.b16 %v3942, %v3935
        %v4223 = vpack.c.b16 %v3943, %v3936
        %v4224 = vpack.c.b16 %v3944, %v3937
        %v4225 = vpack.c.b16 %v3945, %v3938
        %v4226 = vpack.c.b16 %v3946, %v3939
        %v4227 = vpack.c.b16 %v3947, %v3940
        %v4228 = vpack.c.b16 %v3948, %v3941
        %v4229 = vpack.c.b16 %v3956, %v3949
        %v4230 = vpack.c.b16 %v3957, %v3950
        %v4231 = vpack.c.b16 %v3958, %v3951
        %v4232 = vpack.c.b16 %v3959, %v3952
        %v4233 = vpack.c.b16 %v3960, %v3953
        %v4234 = vpack.c.b16 %v3961, %v3954
        %v4235 = vpack.c.b16 %v3962, %v3955
        %v4236 = vpack.c.b16 %v3970, %v3963
        %v4237 = vpack.c.b16 %v3971, %v3964
        %v4238 = vpack.c.b16 %v3972, %v3965
        %v4239 = vpack.c.b16 %v3973, %v3966
        %v4240 = vpack.c.b16 %v3974, %v3967
        %v4241 = vpack.c.b16 %v3975, %v3968
        %v4242 = vpack.c.b16 %v3976, %v3969
        %v4243 = vpack.c.b16 %v3984, %v3977
        %v4244 = vpack.c.b16 %v3985, %v3978
        %v4245 = vpack.c.b16 %v3986, %v3979
        %v4246 = vpack.c.b16 %v3987, %v3980
        %v4247 = vpack.c.b16 %v3988, %v3981
        %v4248 = vpack.c.b16 %v3989, %v3982
        %v4249 = vpack.c.b16 %v3990, %v3983
        %v4250 = vpack.c.b16 %v3998, %v3991
        %v4251 = vpack.c.b16 %v3999, %v3992
        %v4252 = vpack.c.b16 %v4000, %v3993
        %v4253 = vpack.c.b16 %v4001, %v3994
        %v4254 = vpack.c.b16 %v4002, %v3995
        %v4255 = vpack.c.b16 %v4003, %v3996
        %v4256 = vpack.c.b16 %v4004, %v3997
        %v4257 = vpack.c.b16 %v4012, %v4005
        %v4258 = vpack.c.b16 %v4013, %v4006
        %v4259 = vpack.c.b16 %v4014, %v4007
        %v4260 = vpack.c.b16 %v4015, %v4008
        %v4261 = vpack.c.b16 %v4016, %v4009
        %v4262 = vpack.c.b16 %v4017, %v4010
        %v4263 = vpack.c.b16 %v4018, %v4011
        %v4264 = vpack.c.b16 %v4026, %v4019
        %v4265 = vpack.c.b16 %v4027, %v4020
        %v4266 = vpack.c.b16 %v4028, %v4021
        %v4267 = vpack.c.b16 %v4029, %v4022
        %v4268 = vpack.c.b16 %v4030, %v4023
        %v4269 = vpack.c.b16 %v4031, %v4024
        %v4270 = vpack.c.b16 %v4032, %v4025
        %v4271 = vpack.c.b16 %v4040, %v4033
        %v4272 = vpack.c.b16 %v4041, %v4034
        %v4273 = vpack.c.b16 %v4042, %v4035
        %v4274 = vpack.c.b16 %v4043, %v4036
        %v4275 = vpack.c.b16 %v4044, %v4037
        %v4276 = vpack.c.b16 %v4045, %v4038
        %v4277 = vpack.c.b16 %v4046, %v4039
        %v4278 = vpack.c.b16 %v4054, %v4047
        %v4279 = vpack.c.b16 %v4055, %v4048
        %v4280 = vpack.c.b16 %v4056, %v4049
        %v4281 = vpack.c.b16 %v4057, %v4050
        %v4282 = vpack.c.b16 %v4058, %v4051
        %v4283 = vpack.c.b16 %v4059, %v4052
        %v4284 = vpack.c.b16 %v4060, %v4053
        %4509 = vmatprep.subr.bf16.mxu0 %v4062
        %4510 = vmatpush1.bf16.msra.mxu0 %v4061
        %4511 = vmatprep.subr.bf16.mxu0 %v4069
        %4512 = vmatpush1.bf16.msra.mxu0 %v4068
        %4513 = vmatprep.subr.bf16.mxu0 %v4076
        %4514 = vmatpush1.bf16.msra.mxu0 %v4075
        %4515 = vmatprep.subr.bf16.mxu0 %v4083
        %4516 = vmatpush1.bf16.msra.mxu0 %v4082
        %4517 = vmatprep.subr.bf16.mxu0 %v4090
        %4518 = vmatpush1.bf16.msra.mxu0 %v4089
        %4519 = vmatprep.subr.bf16.mxu0 %v4097
        %4520 = vmatpush1.bf16.msra.mxu0 %v4096
        %4521 = vmatprep.subr.bf16.mxu0 %v4104
        %4522 = vmatpush1.bf16.msra.mxu0 %v4103
        %4523 = vmatprep.subr.bf16.mxu0 %v4111
        %4524 = vmatpush1.bf16.msra.mxu0 %v4110
        %4525 = vmatprep.subr.bf16.mxu0 %v4118
        %4526 = vmatpush1.bf16.msra.mxu0 %v4117
        %4527 = vmatprep.subr.bf16.mxu0 %v4125
        %4528 = vmatpush1.bf16.msra.mxu0 %v4124
        %4529 = vmatprep.subr.bf16.mxu0 %v4132
        %4530 = vmatpush1.bf16.msra.mxu0 %v4131
        %4531 = vmatprep.subr.bf16.mxu0 %v4139
        %4532 = vmatpush1.bf16.msra.mxu0 %v4138
        %4533 = vmatprep.subr.bf16.mxu0 %v4146
        %4534 = vmatpush1.bf16.msra.mxu0 %v4145
        %4535 = vmatprep.subr.bf16.mxu0 %v4153
        %4536 = vmatpush1.bf16.msra.mxu0 %v4152
        %4537 = vmatprep.subr.bf16.mxu0 %v4160
        %4538 = vmatpush1.bf16.msra.mxu0 %v4159
        %4539 = vmatprep.subr.bf16.mxu0 %v4167
        %4540 = vmatpush1.bf16.msra.mxu0 %v4166
        %4541 = vmatprep.mubr.bf16.mxu0 %v3061
        %4542 = vmatmul.mubr.bf16.gmra.mrb[0].mxu0 %v3060
        %v4543 = vpop.f32.mrb[0].mxu0
        %v4544 = vadd.f32 %v3325, %v4543
        %v4545 = vpop.f32.mrb[0].mxu0
        %v4546 = vadd.f32 %v3329, %v4545
        %v4547 = vpop.f32.mrb[0].mxu0
        %v4548 = vpop.f32.mrb[0].mxu0
        %4549 = vdwg.mxu0
        %4550 = vmatprep.subr.bf16.mxu0 %v4174
        %4551 = vmatpush1.bf16.msra.mxu0 %v4173
        %4552 = vmatprep.subr.bf16.mxu0 %v4181
        %4553 = vmatpush1.bf16.msra.mxu0 %v4180
        %4554 = vmatprep.subr.bf16.mxu0 %v4188
        %4555 = vmatpush1.bf16.msra.mxu0 %v4187
        %4556 = vmatprep.subr.bf16.mxu0 %v4195
        %4557 = vmatpush1.bf16.msra.mxu0 %v4194
        %4558 = vmatprep.subr.bf16.mxu0 %v4202
        %4559 = vmatpush1.bf16.msra.mxu0 %v4201
        %4560 = vmatprep.subr.bf16.mxu0 %v4209
        %4561 = vmatpush1.bf16.msra.mxu0 %v4208
        %4562 = vmatprep.subr.bf16.mxu0 %v4216
        %4563 = vmatpush1.bf16.msra.mxu0 %v4215
        %4564 = vmatprep.subr.bf16.mxu0 %v4223
        %4565 = vmatpush1.bf16.msra.mxu0 %v4222
        %4566 = vmatprep.subr.bf16.mxu0 %v4230
        %4567 = vmatpush1.bf16.msra.mxu0 %v4229
        %4568 = vmatprep.subr.bf16.mxu0 %v4237
        %4569 = vmatpush1.bf16.msra.mxu0 %v4236
        %4570 = vmatprep.subr.bf16.mxu0 %v4244
        %4571 = vmatpush1.bf16.msra.mxu0 %v4243
        %4572 = vmatprep.subr.bf16.mxu0 %v4251
        %4573 = vmatpush1.bf16.msra.mxu0 %v4250
        %4574 = vmatprep.subr.bf16.mxu0 %v4258
        %4575 = vmatpush1.bf16.msra.mxu0 %v4257
        %4576 = vmatprep.subr.bf16.mxu0 %v4265
        %4577 = vmatpush1.bf16.msra.mxu0 %v4264
        %4578 = vmatprep.subr.bf16.mxu0 %v4272
        %4579 = vmatpush1.bf16.msra.mxu0 %v4271
        %4580 = vmatprep.subr.bf16.mxu0 %v4279
        %4581 = vmatpush1.bf16.msra.mxu0 %v4278
        %4582 = vmatprep.mubr.bf16.mxu0 %v3063
        %4583 = vmatmul.mubr.bf16.gmra.mrb[0].mxu0 %v3062
        %v4584 = vpop.f32.mrb[0].mxu0
        %v4585 = vadd.f32 %v4544, %v4584
        %v4586 = vpop.f32.mrb[0].mxu0
        %v4587 = vadd.f32 %v4546, %v4586
        %v4588 = vpop.f32.mrb[0].mxu0
        %v4589 = vpop.f32.mrb[0].mxu0
        %4590 = vdwg.mxu0
        %4591 = vmatprep.subr.bf16.mxu0 %v4064
        %4592 = vmatpush1.bf16.msra.mxu0 %v4063
        %4593 = vmatprep.subr.bf16.mxu0 %v4071
        %4594 = vmatpush1.bf16.msra.mxu0 %v4070
        %4595 = vmatprep.subr.bf16.mxu0 %v4078
        %4596 = vmatpush1.bf16.msra.mxu0 %v4077
        %4597 = vmatprep.subr.bf16.mxu0 %v4085
        %4598 = vmatpush1.bf16.msra.mxu0 %v4084
        %4599 = vmatprep.subr.bf16.mxu0 %v4092
        %4600 = vmatpush1.bf16.msra.mxu0 %v4091
        %4601 = vmatprep.subr.bf16.mxu0 %v4099
        %4602 = vmatpush1.bf16.msra.mxu0 %v4098
        %4603 = vmatprep.subr.bf16.mxu0 %v4106
        %4604 = vmatpush1.bf16.msra.mxu0 %v4105
        %4605 = vmatprep.subr.bf16.mxu0 %v4113
        %4606 = vmatpush1.bf16.msra.mxu0 %v4112
        %4607 = vmatprep.subr.bf16.mxu0 %v4120
        %4608 = vmatpush1.bf16.msra.mxu0 %v4119
        %4609 = vmatprep.subr.bf16.mxu0 %v4127
        %4610 = vmatpush1.bf16.msra.mxu0 %v4126
        %4611 = vmatprep.subr.bf16.mxu0 %v4134
        %4612 = vmatpush1.bf16.msra.mxu0 %v4133
        %4613 = vmatprep.subr.bf16.mxu0 %v4141
        %4614 = vmatpush1.bf16.msra.mxu0 %v4140
        %4615 = vmatprep.subr.bf16.mxu0 %v4148
        %4616 = vmatpush1.bf16.msra.mxu0 %v4147
        %4617 = vmatprep.subr.bf16.mxu0 %v4155
        %4618 = vmatpush1.bf16.msra.mxu0 %v4154
        %4619 = vmatprep.subr.bf16.mxu0 %v4162
        %4620 = vmatpush1.bf16.msra.mxu0 %v4161
        %4621 = vmatprep.subr.bf16.mxu0 %v4169
        %4622 = vmatpush1.bf16.msra.mxu0 %v4168
        %4623 = vmatprep.mubr.bf16.mxu0 %v3061
        %4624 = vmatmul.mubr.bf16.gmra.mrb[0].mxu0 %v3060
        %v4625 = vpop.f32.mrb[0].mxu0
        %v4626 = vadd.f32 %v3333, %v4625
        %v4627 = vpop.f32.mrb[0].mxu0
        %v4628 = vadd.f32 %v3337, %v4627
        %v4629 = vpop.f32.mrb[0].mxu0
        %v4630 = vpop.f32.mrb[0].mxu0
        %4631 = vdwg.mxu0
        %4632 = vmatprep.subr.bf16.mxu0 %v4176
        %4633 = vmatpush1.bf16.msra.mxu0 %v4175
        %4634 = vmatprep.subr.bf16.mxu0 %v4183
        %4635 = vmatpush1.bf16.msra.mxu0 %v4182
        %4636 = vmatprep.subr.bf16.mxu0 %v4190
        %4637 = vmatpush1.bf16.msra.mxu0 %v4189
        %4638 = vmatprep.subr.bf16.mxu0 %v4197
        %4639 = vmatpush1.bf16.msra.mxu0 %v4196
        %4640 = vmatprep.subr.bf16.mxu0 %v4204
        %4641 = vmatpush1.bf16.msra.mxu0 %v4203
        %4642 = vmatprep.subr.bf16.mxu0 %v4211
        %4643 = vmatpush1.bf16.msra.mxu0 %v4210
        %4644 = vmatprep.subr.bf16.mxu0 %v4218
        %4645 = vmatpush1.bf16.msra.mxu0 %v4217
        %4646 = vmatprep.subr.bf16.mxu0 %v4225
        %4647 = vmatpush1.bf16.msra.mxu0 %v4224
        %4648 = vmatprep.subr.bf16.mxu0 %v4232
        %4649 = vmatpush1.bf16.msra.mxu0 %v4231
        %4650 = vmatprep.subr.bf16.mxu0 %v4239
        %4651 = vmatpush1.bf16.msra.mxu0 %v4238
        %4652 = vmatprep.subr.bf16.mxu0 %v4246
        %4653 = vmatpush1.bf16.msra.mxu0 %v4245
        %4654 = vmatprep.subr.bf16.mxu0 %v4253
        %4655 = vmatpush1.bf16.msra.mxu0 %v4252
        %4656 = vmatprep.subr.bf16.mxu0 %v4260
        %4657 = vmatpush1.bf16.msra.mxu0 %v4259
        %4658 = vmatprep.subr.bf16.mxu0 %v4267
        %4659 = vmatpush1.bf16.msra.mxu0 %v4266
        %4660 = vmatprep.subr.bf16.mxu0 %v4274
        %4661 = vmatpush1.bf16.msra.mxu0 %v4273
        %4662 = vmatprep.subr.bf16.mxu0 %v4281
        %4663 = vmatpush1.bf16.msra.mxu0 %v4280
        %4664 = vmatprep.mubr.bf16.mxu0 %v3063
        %4665 = vmatmul.mubr.bf16.gmra.mrb[0].mxu0 %v3062
        %v4666 = vpop.f32.mrb[0].mxu0
        %v4667 = vadd.f32 %v4626, %v4666
        %v4668 = vpop.f32.mrb[0].mxu0
        %v4669 = vadd.f32 %v4628, %v4668
        %v4670 = vpop.f32.mrb[0].mxu0
        %v4671 = vpop.f32.mrb[0].mxu0
        %4672 = vdwg.mxu0
        %4673 = vmatprep.subr.bf16.mxu0 %v4066
        %4674 = vmatpush1.bf16.msra.mxu0 %v4065
        %4675 = vmatprep.subr.bf16.mxu0 %v4073
        %4676 = vmatpush1.bf16.msra.mxu0 %v4072
        %4677 = vmatprep.subr.bf16.mxu0 %v4080
        %4678 = vmatpush1.bf16.msra.mxu0 %v4079
        %4679 = vmatprep.subr.bf16.mxu0 %v4087
        %4680 = vmatpush1.bf16.msra.mxu0 %v4086
        %4681 = vmatprep.subr.bf16.mxu0 %v4094
        %4682 = vmatpush1.bf16.msra.mxu0 %v4093
        %4683 = vmatprep.subr.bf16.mxu0 %v4101
        %4684 = vmatpush1.bf16.msra.mxu0 %v4100
        %4685 = vmatprep.subr.bf16.mxu0 %v4108
        %4686 = vmatpush1.bf16.msra.mxu0 %v4107
        %4687 = vmatprep.subr.bf16.mxu0 %v4115
        %4688 = vmatpush1.bf16.msra.mxu0 %v4114
        %4689 = vmatprep.subr.bf16.mxu0 %v4122
        %4690 = vmatpush1.bf16.msra.mxu0 %v4121
        %4691 = vmatprep.subr.bf16.mxu0 %v4129
        %4692 = vmatpush1.bf16.msra.mxu0 %v4128
        %4693 = vmatprep.subr.bf16.mxu0 %v4136
        %4694 = vmatpush1.bf16.msra.mxu0 %v4135
        %4695 = vmatprep.subr.bf16.mxu0 %v4143
        %4696 = vmatpush1.bf16.msra.mxu0 %v4142
        %4697 = vmatprep.subr.bf16.mxu0 %v4150
        %4698 = vmatpush1.bf16.msra.mxu0 %v4149
        %4699 = vmatprep.subr.bf16.mxu0 %v4157
        %4700 = vmatpush1.bf16.msra.mxu0 %v4156
        %4701 = vmatprep.subr.bf16.mxu0 %v4164
        %4702 = vmatpush1.bf16.msra.mxu0 %v4163
        %4703 = vmatprep.subr.bf16.mxu0 %v4171
        %4704 = vmatpush1.bf16.msra.mxu0 %v4170
        %4705 = vmatprep.mubr.bf16.mxu0 %v3061
        %4706 = vmatmul.mubr.bf16.gmra.mrb[0].mxu0 %v3060
        %v4707 = vpop.f32.mrb[0].mxu0
        %v4708 = vadd.f32 %v3341, %v4707
        %v4709 = vpop.f32.mrb[0].mxu0
        %v4710 = vadd.f32 %v3345, %v4709
        %v4711 = vpop.f32.mrb[0].mxu0
        %v4712 = vpop.f32.mrb[0].mxu0
        %4713 = vdwg.mxu0
        %4714 = vmatprep.subr.bf16.mxu0 %v4178
        %4715 = vmatpush1.bf16.msra.mxu0 %v4177
        %4716 = vmatprep.subr.bf16.mxu0 %v4185
        %4717 = vmatpush1.bf16.msra.mxu0 %v4184
        %4718 = vmatprep.subr.bf16.mxu0 %v4192
        %4719 = vmatpush1.bf16.msra.mxu0 %v4191
        %4720 = vmatprep.subr.bf16.mxu0 %v4199
        %4721 = vmatpush1.bf16.msra.mxu0 %v4198
        %4722 = vmatprep.subr.bf16.mxu0 %v4206
        %4723 = vmatpush1.bf16.msra.mxu0 %v4205
        %4724 = vmatprep.subr.bf16.mxu0 %v4213
        %4725 = vmatpush1.bf16.msra.mxu0 %v4212
        %4726 = vmatprep.subr.bf16.mxu0 %v4220
        %4727 = vmatpush1.bf16.msra.mxu0 %v4219
        %4728 = vmatprep.subr.bf16.mxu0 %v4227
        %4729 = vmatpush1.bf16.msra.mxu0 %v4226
        %4730 = vmatprep.subr.bf16.mxu0 %v4234
        %4731 = vmatpush1.bf16.msra.mxu0 %v4233
        %4732 = vmatprep.subr.bf16.mxu0 %v4241
        %4733 = vmatpush1.bf16.msra.mxu0 %v4240
        %4734 = vmatprep.subr.bf16.mxu0 %v4248
        %4735 = vmatpush1.bf16.msra.mxu0 %v4247
        %4736 = vmatprep.subr.bf16.mxu0 %v4255
        %4737 = vmatpush1.bf16.msra.mxu0 %v4254
        %4738 = vmatprep.subr.bf16.mxu0 %v4262
        %4739 = vmatpush1.bf16.msra.mxu0 %v4261
        %4740 = vmatprep.subr.bf16.mxu0 %v4269
        %4741 = vmatpush1.bf16.msra.mxu0 %v4268
        %4742 = vmatprep.subr.bf16.mxu0 %v4276
        %4743 = vmatpush1.bf16.msra.mxu0 %v4275
        %4744 = vmatprep.subr.bf16.mxu0 %v4283
        %4745 = vmatpush1.bf16.msra.mxu0 %v4282
        %4746 = vmatprep.mubr.bf16.mxu0 %v3063
        %4747 = vmatmul.mubr.bf16.gmra.mrb[0].mxu0 %v3062
        %v4748 = vpop.f32.mrb[0].mxu0
        %v4749 = vadd.f32 %v4708, %v4748
        %v4750 = vpop.f32.mrb[0].mxu0
        %v4751 = vadd.f32 %v4710, %v4750
        %v4752 = vpop.f32.mrb[0].mxu0
        %v4753 = vpop.f32.mrb[0].mxu0
        %4754 = vdwg.mxu0
        %4755 = vmatprep.subr.bf16.mxu0 0
        %4756 = vmatpush1.bf16.msra.mxu0 %v4067
        %4757 = vmatprep.subr.bf16.mxu0 0
        %4758 = vmatpush1.bf16.msra.mxu0 %v4074
        %4759 = vmatprep.subr.bf16.mxu0 0
        %4760 = vmatpush1.bf16.msra.mxu0 %v4081
        %4761 = vmatprep.subr.bf16.mxu0 0
        %4762 = vmatpush1.bf16.msra.mxu0 %v4088
        %4763 = vmatprep.subr.bf16.mxu0 0
        %4764 = vmatpush1.bf16.msra.mxu0 %v4095
        %4765 = vmatprep.subr.bf16.mxu0 0
        %4766 = vmatpush1.bf16.msra.mxu0 %v4102
        %4767 = vmatprep.subr.bf16.mxu0 0
        %4768 = vmatpush1.bf16.msra.mxu0 %v4109
        %4769 = vmatprep.subr.bf16.mxu0 0
        %4770 = vmatpush1.bf16.msra.mxu0 %v4116
        %4771 = vmatprep.subr.bf16.mxu0 0
        %4772 = vmatpush1.bf16.msra.mxu0 %v4123
        %4773 = vmatprep.subr.bf16.mxu0 0
        %4774 = vmatpush1.bf16.msra.mxu0 %v4130
        %4775 = vmatprep.subr.bf16.mxu0 0
        %4776 = vmatpush1.bf16.msra.mxu0 %v4137
        %4777 = vmatprep.subr.bf16.mxu0 0
        %4778 = vmatpush1.bf16.msra.mxu0 %v4144
        %4779 = vmatprep.subr.bf16.mxu0 0
        %4780 = vmatpush1.bf16.msra.mxu0 %v4151
        %4781 = vmatprep.subr.bf16.mxu0 0
        %4782 = vmatpush1.bf16.msra.mxu0 %v4158
        %4783 = vmatprep.subr.bf16.mxu0 0
        %4784 = vmatpush1.bf16.msra.mxu0 %v4165
        %4785 = vmatprep.subr.bf16.mxu0 0
        %4786 = vmatpush1.bf16.msra.mxu0 %v4172
        %4787 = vmatprep.mubr.bf16.mxu0 %v3061
        %4788 = vmatmul.mubr.bf16.gmra.mrb[0].mxu0 %v3060
        %v4789 = vpop.f32.mrb[0].mxu0
        %v4790 = vadd.f32 %v3349, %v4789
        %v4791 = vpop.f32.mrb[0].mxu0
        %v4792 = vpop.f32.mrb[0].mxu0
        %v4793 = vpop.f32.mrb[0].mxu0
        %4794 = vdwg.mxu0
        %4795 = vmatprep.subr.bf16.mxu0 0
        %4796 = vmatpush1.bf16.msra.mxu0 %v4179
        %4797 = vmatprep.subr.bf16.mxu0 0
        %4798 = vmatpush1.bf16.msra.mxu0 %v4186
        %4799 = vmatprep.subr.bf16.mxu0 0
        %4800 = vmatpush1.bf16.msra.mxu0 %v4193
        %4801 = vmatprep.subr.bf16.mxu0 0
        %4802 = vmatpush1.bf16.msra.mxu0 %v4200
        %4803 = vmatprep.subr.bf16.mxu0 0
        %4804 = vmatpush1.bf16.msra.mxu0 %v4207
        %4805 = vmatprep.subr.bf16.mxu0 0
        %4806 = vmatpush1.bf16.msra.mxu0 %v4214
        %4807 = vmatprep.subr.bf16.mxu0 0
        %4808 = vmatpush1.bf16.msra.mxu0 %v4221
        %4809 = vmatprep.subr.bf16.mxu0 0
        %4810 = vmatpush1.bf16.msra.mxu0 %v4228
        %4811 = vmatprep.subr.bf16.mxu0 0
        %4812 = vmatpush1.bf16.msra.mxu0 %v4235
        %4813 = vmatprep.subr.bf16.mxu0 0
        %4814 = vmatpush1.bf16.msra.mxu0 %v4242
        %4815 = vmatprep.subr.bf16.mxu0 0
        %4816 = vmatpush1.bf16.msra.mxu0 %v4249
        %4817 = vmatprep.subr.bf16.mxu0 0
        %4818 = vmatpush1.bf16.msra.mxu0 %v4256
        %4819 = vmatprep.subr.bf16.mxu0 0
        %4820 = vmatpush1.bf16.msra.mxu0 %v4263
        %4821 = vmatprep.subr.bf16.mxu0 0
        %4822 = vmatpush1.bf16.msra.mxu0 %v4270
        %4823 = vmatprep.subr.bf16.mxu0 0
        %4824 = vmatpush1.bf16.msra.mxu0 %v4277
        %4825 = vmatprep.subr.bf16.mxu0 0
        %4826 = vmatpush1.bf16.msra.mxu0 %v4284
        %4827 = vmatprep.mubr.bf16.mxu0 %v3063
        %4828 = vmatmul.mubr.bf16.gmra.mrb[0].mxu0 %v3062
        %v4829 = vpop.f32.mrb[0].mxu0
        %v4830 = vadd.f32 %v4790, %v4829
        %v4831 = vpop.f32.mrb[0].mxu0
        %v4832 = vpop.f32.mrb[0].mxu0
        %v4833 = vpop.f32.mrb[0].mxu0
        %4834 = vdwg.mxu0
        %v4835 = vxor.u32 %v4585, 2147483648
        %v4836 = vxor.u32 %v4587, 2147483648
        %v4837 = vxor.u32 %v4667, 2147483648
        %v4838 = vxor.u32 %v4669, 2147483648
        %v4839 = vxor.u32 %v4749, 2147483648
        %v4840 = vxor.u32 %v4751, 2147483648
        %v4841 = vxor.u32 %v4830, 2147483648
        %v4842 = vmul.f32 %v4835, 1.442695
        %v4843 = vpow.pop %v4842
        %v4844 = vmul.f32 %v4836, 1.442695
        %v4845 = vpow.pop %v4844
        %v4846 = vmul.f32 %v4837, 1.442695
        %v4847 = vpow.pop %v4846
        %v4848 = vmul.f32 %v4838, 1.442695
        %v4849 = vpow.pop %v4848
        %v4850 = vmul.f32 %v4839, 1.442695
        %v4851 = vpow.pop %v4850
        %v4852 = vmul.f32 %v4840, 1.442695
        %v4853 = vpow.pop %v4852
        %v4854 = vmul.f32 %v4841, 1.442695
        %v4855 = vpow.pop %v4854
        %v4856 = vadd.f32 %v4843, 1.0
        %v4857 = vadd.f32 %v4845, 1.0
        %v4858 = vadd.f32 %v4847, 1.0
        %v4859 = vadd.f32 %v4849, 1.0
        %v4860 = vadd.f32 %v4851, 1.0
        %v4861 = vadd.f32 %v4853, 1.0
        %v4862 = vadd.f32 %v4855, 1.0
        %v4863 = vrcp.pop %v4856
        %v4864 = vmul.f32 1.0, %v4863
        %v4865 = vrcp.pop %v4857
        %v4866 = vmul.f32 1.0, %v4865
        %v4867 = vrcp.pop %v4858
        %v4868 = vmul.f32 1.0, %v4867
        %v4869 = vrcp.pop %v4859
        %v4870 = vmul.f32 1.0, %v4869
        %v4871 = vrcp.pop %v4860
        %v4872 = vmul.f32 1.0, %v4871
        %v4873 = vrcp.pop %v4861
        %v4874 = vmul.f32 1.0, %v4873
        %v4875 = vrcp.pop %v4862
        %v4876 = vmul.f32 1.0, %v4875
        %4877 = vst [vmem:[%s551] sm:$0xff] %v4864
        %4878 = vst [vmem:[%s551 + $0x8] sm:$0xff] %v4866
        %4879 = vst [vmem:[%s551 + $0x10] sm:$0xff] %v4868
        %4880 = vst [vmem:[%s551 + $0x18] sm:$0xff] %v4870
        %4881 = vst [vmem:[%s551 + $0x20] sm:$0xff] %v4872
        %4882 = vst [vmem:[%s551 + $0x28] sm:$0xff] %v4874
        %4883 = vst [vmem:[%s551 + $0x30] sm:$0xff] %v4876
        %v4884 = vlaneseq
        %v4885 = vand.u32 %v4884, 127
        %v4886 = vmul.f32 %v2755, %v2755
        %v4887 = vmul.f32 %v2748, %v2748
        %v4888 = vadd.f32 %v4886, %v4887
        %v4889 = vsub.f32 %v4888, %v2750
        %v4890 = vsub.f32 %v4889, 0.5
        %vm4891 = vcmp.lt.s32.totalorder %v4885, 16
        %v4892 = vsel %vm4891, 1, 0
        %vm4893 = vcmp.eq.s32.totalorder %v4892, 1
        %v4894 = vsel %vm4893, %v4890, 0.0
        %4895 = vadd.xlane.f32.xlu0 %v4894
        %v4896 = vpop.xlane.xlu0 %4895
        %vm4897 = vcmask 7168
        %4898 = vst.msk [vmem:[%s558] sm:$0xff] %vm4897, %v4896
        %s4899 = sand.u32 %s267, 1
        %s4900 = scalar_lea.sflag [#allocation4], %s4899
        %s4901 = sand.u32 %s267, 1
        %s4902 = smul.addr %s4901, 56
        %s4903 = scalar_lea.vmem [#allocation19], %s4902
        %s4904 = sand.u32 %s293, 1
        %s4905 = scalar_lea.sflag [#allocation21], %s4904
        %s4906 = sand.u32 %s293, 1
        %s4907 = smul.addr %s4906, 8
        %s4908 = scalar_lea.vmem [#allocation20], %s4907
        // Predicated region
        $region101: #{tpu_custom_call.1} parent=59 // pred_check
          %p4909 = pneg %p277
        $region102: #{tpu_custom_call.1} parent=59 // pred_check_branch
          %4911 = sbr.rel (%p4909) target = $region104
        $region103: #{tpu_custom_call.1} parent=59 // pred_region
          %s4913 = ssub.s32 896, 896
          %4914 = vsyncadd %s4900, %s4913
          %s4915 = smul.addr %s39, 7
          %s4916 = smul.addr %s4915, 128
          %s4917 = scalar_lea.hbm %s10, %s4916
          %s4919 = sshll.u32 %s4903, 4
          %s4920 = int_to_ptr.vmem [resolvable:$true] %s4919
          %4922 = dma.vmem_to_hbm [thread:$0]  %s4920, 896, %s4917, %s4900
        $region104: #{tpu_custom_call.1} parent=59 // pred_fallthru
          _
        // Predicated region
        $region105: #{tpu_custom_call.1} parent=59 // pred_check
          %p4923 = pneg %p303
        $region106: #{tpu_custom_call.1} parent=59 // pred_check_branch
          %4925 = sbr.rel (%p4923) target = $region108
        $region107: #{tpu_custom_call.1} parent=59 // pred_region
          %s4927 = ssub.s32 128, 128
          %4928 = vsyncadd %s4905, %s4927
          %s4929 = smul.addr %s39, 128
          %s4930 = scalar_lea.hbm %s11, %s4929
          %s4932 = sshll.u32 %s4908, 4
          %s4933 = int_to_ptr.vmem [resolvable:$true] %s4932
          %4935 = dma.vmem_to_hbm [thread:$0]  %s4933, 128, %s4930, %s4905
        $region108: #{tpu_custom_call.1} parent=59 // pred_fallthru
          _
      $region60: #{tpu_custom_call.1} parent=5 // pred_fallthru
        _
      %p4936 = scmp.le.s32.totalorder 2, %s34
      // Predicated region
      $region109: #{tpu_custom_call.1} parent=5 // pred_check
        %p4937 = pneg %p4936
      $region110: #{tpu_custom_call.1} parent=5 // pred_check_branch
        %4939 = sbr.rel (%p4937) target = $region112
      $region111: #{tpu_custom_call.1} parent=5 // pred_region
        %s4940 = ssub.s32 %s34, 2
        // Predicated region
        $region113: #{tpu_custom_call.1} parent=111 // pred_check
          %p4941 = pneg %p283
        $region114: #{tpu_custom_call.1} parent=111 // pred_check_branch
          %4943 = sbr.rel (%p4941) target = $region116
        $region115: #{tpu_custom_call.1} parent=111 // pred_region
          %s4944 = sand.u32 %s268, 1
          %s4945 = scalar_lea.sflag [#allocation4], %s4944
          %s4946 = sand.u32 %s268, 1
          %s4947 = smul.addr %s4946, 56
          %s4948 = scalar_lea.vmem [#allocation19], %s4947
          %4949 = dma.done %s4945, 896
        $region116: #{tpu_custom_call.1} parent=111 // pred_fallthru
          _
        // Predicated region
        $region117: #{tpu_custom_call.1} parent=111 // pred_check
          %p4950 = pneg %p309
        $region118: #{tpu_custom_call.1} parent=111 // pred_check_branch
          %4952 = sbr.rel (%p4950) target = $region120
        $region119: #{tpu_custom_call.1} parent=111 // pred_region
          %s4953 = sand.u32 %s294, 1
          %s4954 = scalar_lea.sflag [#allocation21], %s4953
          %s4955 = sand.u32 %s294, 1
          %s4956 = smul.addr %s4955, 8
          %s4957 = scalar_lea.vmem [#allocation20], %s4956
          %4958 = dma.done %s4954, 128
        $region120: #{tpu_custom_call.1} parent=111 // pred_fallthru
          _
      $region112: #{tpu_custom_call.1} parent=5 // pred_fallthru
        _
    $region6: #{tpu_custom_call.1} parent=1 // loop_footer
      %s38 = sadd.s32 1, %s34
    $region7: #{tpu_custom_call.1} parent=1 // loop_footer_branch
      %33 = sbr.rel target = $region3
    $region8: #{tpu_custom_call.1} parent=1 // loop_exit
      _
    %4959 = vsyncpa [#allocation3], 1
    %s4960 = scalar_lea.sflag [#allocation3], 1
    %4961 = vsyncpa %s4960, 1
    %4962 = vsyncpa [#allocation6], 1
    %s4963 = scalar_lea.sflag [#allocation6], 1
    %4964 = vsyncpa %s4963, 1
    %4965 = vsyncpa [#allocation9], 1
    %4966 = vsyncpa [#allocation12], 1
    %4967 = vsyncpa [#allocation15], 1
    %4968 = vsyncpa [#allocation18], 1
    %4969 = vsyncpa [#allocation4], 1
    %s4970 = scalar_lea.sflag [#allocation4], 1
    %4971 = vsyncpa %s4970, 1
    %4972 = vsyncpa [#allocation21], 1
    %s4973 = scalar_lea.sflag [#allocation21], 1
    %4974 = vsyncpa %s4973, 1

</llo_original>
